<compile_context>
chip_gen: v7x
topology: tpu7x:2x2x1
jax: 0.10.0
libtpu: 0.0.40
codegen_flags: <defaults>
</compile_context>

<pallas_src>
import functools

import jax
import jax.numpy as jnp
from jax.experimental import pallas as pl
from jax.experimental.pallas import tpu as pltpu


def _gj_trace_det(rows, n):
    """Lane-batched Gauss-Jordan with partial pivoting on the augmented [A | B].

    rows[i]: (2n, L) f32.  Sublane j < n holds A[:, i, j]; sublane n+j holds
    B[:, i, j]; every batch element lives in the lane dimension.
    Returns (trace(A^{-1} B), det(A)), each of shape (1, L).
    Fully unrolled (n is a small compile-time constant).
    """
    det = jnp.ones_like(rows[0][0:1, :])
    for k in range(n):
        # Partial pivoting: bubble the row r >= k with max |A[r, k]| into row k.
        for r in range(k + 1, n):
            swap = jnp.abs(rows[r][k:k + 1, :]) > jnp.abs(rows[k][k:k + 1, :])
            rk, rr = rows[k], rows[r]
            rows[k] = jnp.where(swap, rr, rk)
            rows[r] = jnp.where(swap, rk, rr)
            det = jnp.where(swap, -det, det)
        piv = rows[k][k:k + 1, :]                     # (1, L)
        det = det * piv
        r0 = pl.reciprocal(piv, approx=True)          # EUP slot (otherwise idle)
        inv_piv = r0 * (2.0 - piv * r0)               # one Newton step -> ~f32
        rows[k] = rows[k] * inv_piv
        for i in range(n):
            if i == k:
                continue
            f = rows[i][k:k + 1, :]
            rows[i] = rows[i] - f * rows[k]
    # After GJ the B half is A^{-1} B; its diagonal gives the trace.
    trace = rows[0][n:n + 1, :]
    for k in range(1, n):
        trace = trace + rows[k][n + k:n + k + 1, :]
    return trace, det


def _kinetic_kernel(su_ref, sd_ref, kin_ref, det_ref,
                    *, nup, ndown, cb, gj, n_chunks):
    """One grid point = (batch tile, config group).  Pure VPU work, no MXU.

    su_ref: (cb, nup,   2*nup,   bt)  pre-gathered [A-cols | B-cols], batch in lanes
    sd_ref: (cb, ndown, 2*ndown, bt)
    kin_ref / det_ref: (cb, bt)        bt = n_chunks * gj
    """
    for q in range(n_chunks):                       # static lane chunks (<= 4)
        sl = slice(q * gj, (q + 1) * gj)
        kin_rows, det_rows = [], []
        for c in range(cb):                         # configs in this group
            tr_u, det_u = _gj_trace_det(
                [su_ref[c, i, :, sl] for i in range(nup)], nup)
            tr_d, det_d = _gj_trace_det(
                [sd_ref[c, i, :, sl] for i in range(ndown)], ndown)
            dp = det_u * det_d                      # (1, gj)
            kin_rows.append(-0.5 * (tr_u + tr_d) * dp)
            det_rows.append(dp)
        # Single lane-dense store per chunk per output.
        kin_ref[:, sl] = jnp.concatenate(kin_rows, axis=0)
        det_ref[:, sl] = jnp.concatenate(det_rows, axis=0)


def _gather_slab(X, Bm, conf):
    """X, Bm: (nb, n, nmo); conf: (nconf, n) int  ->  (nconf, n, 2n, nb) f32.

    slab[c, i, j, b] = X[b, i, conf[c, j]]  for j < n   (the A columns)
                     = Bm[b, i, conf[c, j-n]] for j >= n (the B columns)
    One fused XLA gather+transpose pass; replaces the in-kernel projection matmul.
    """
    A = jnp.take(X, conf, axis=2)                   # (nb, n, nconf, n)
    B = jnp.take(Bm, conf, axis=2)
    S = jnp.concatenate([A, B], axis=3)             # (nb, n, nconf, 2n)
    return jnp.transpose(S, (2, 1, 3, 0)).astype(jnp.float32)


def kinetic_pooling(MO, d2MO, confs_up, confs_down, dJdMO=None, d2JMO=None,
                    *, nup=None, ndown=None, batch_tile=None):
    """JAX/Pallas equivalent of KineticPooling.forward.

    MO, d2MO (and optional dJdMO, d2JMO): (Nbatch, Nelec, Nmo)
    confs_up:   (Nconf, nup)   int — orbital indices per determinant (spin up)
    confs_down: (Nconf, ndown) int — orbital indices per determinant (spin down)
    Returns (kinetic, det_prod), each (Nbatch, Nconf).
    """
    nb, nelec, _nmo = MO.shape
    nconf = confs_up.shape[0]
    if nup is None:
        nup = confs_up.shape[1]
    if ndown is None:
        ndown = confs_down.shape[1]
    assert nelec == nup + ndown

    Bmat = d2MO
    if dJdMO is not None:
        Bmat = Bmat + 2.0 * dJdMO
    if d2JMO is not None:
        Bmat = Bmat + d2JMO

    # Wrapper data path: gather the projected columns + batch-last transpose in
    # one pass (projectors are one-hot selectors -> no matmul anywhere).
    slab_up = _gather_slab(MO[:, :nup, :], Bmat[:, :nup, :], confs_up)
    slab_dn = _gather_slab(MO[:, nup:, :], Bmat[:, nup:, :], confs_down)

    # Config-group size: output block last-two dims are (cb, bt), so cb must be
    # a multiple of 8 or equal nconf.
    cb = nconf if (nconf <= 8 or nconf % 8 != 0) else 8

    # ---- tile selection (generation-aware) -------------------------------
    nb_pad = -(-nb // 128) * 128                    # lane granularity
    nmax = max(nup, ndown, 1)
    # vreg-safe GJ chunk: live state per spin = 2*n^2*gj*4 bytes <= ~192 KiB
    cap = max(128, min(512, ((192 * 1024) // (8 * nmax * nmax)) // 128 * 128))
    # bytes per lane held in one block (both spin slabs + padded output rows)
    per_lane = 4 * cb * (nup * 2 * nup + ndown * 2 * ndown) + 8 * max(cb, 8)
    budget = 20 << 20                               # single-buffer block budget

    if batch_tile is not None:
        bt = int(batch_tile)
        assert bt % 128 == 0 and nb_pad % bt == 0
        gj, m = 128, 256
        while m <= min(cap, bt):
            if bt % m == 0:
                gj = m
            m += 128
        n_chunks = bt // gj
    else:
        gj, m = 128, 256
        while m <= min(cap, nb_pad):
            if nb_pad % m == 0 and m * per_lane <= budget:
                gj = m
            m += 128
        n_tiles = nb_pad // gj
        n_chunks = 1
        for cand in (4, 2):                         # amortize grid-step overhead,
            if (n_tiles % cand == 0                 # but keep >= 2 batch steps
                    and n_tiles // cand >= 2        # (v7x megacore sharding)
                    and cand * gj * per_lane <= budget):
                n_chunks = cand
                break
        bt = n_chunks * gj

    if nb_pad != nb:                                # zero-pad batch (sliced off below)
        pad = ((0, 0), (0, 0), (0, 0), (0, nb_pad - nb))
        slab_up = jnp.pad(slab_up, pad)
        slab_dn = jnp.pad(slab_dn, pad)

    # VMEM request: double-buffered block + margin, capped well under v7x's 64 MiB.
    block_bytes = bt * per_lane
    vmem_limit = int(min(48 << 20, max(16 << 20, 2 * block_bytes + (8 << 20))))

    grid = (nb_pad // bt, nconf // cb)
    kern = functools.partial(_kinetic_kernel, nup=nup, ndown=ndown,
                             cb=cb, gj=gj, n_chunks=n_chunks)
    kin, det = pl.pallas_call(
        kern,
        out_shape=(jax.ShapeDtypeStruct((nconf, nb_pad), jnp.float32),
                   jax.ShapeDtypeStruct((nconf, nb_pad), jnp.float32)),
        grid_spec=pltpu.PrefetchScalarGridSpec(
            num_scalar_prefetch=0,
            grid=grid,
            in_specs=[
                pl.BlockSpec((cb, nup, 2 * nup, bt), lambda t, g: (g, 0, 0, t)),
                pl.BlockSpec((cb, ndown, 2 * ndown, bt), lambda t, g: (g, 0, 0, t)),
            ],
            out_specs=[
                pl.BlockSpec((cb, bt), lambda t, g: (g, t)),
                pl.BlockSpec((cb, bt), lambda t, g: (g, t)),
            ],
        ),
        compiler_params=pltpu.CompilerParams(
            dimension_semantics=("parallel", "parallel"),
            vmem_limit_bytes=vmem_limit),
    )(slab_up, slab_dn)

    # match PyTorch: (Nconf, Nbatch).transpose(0, 1) -> (Nbatch, Nconf)
    kinetic = jnp.transpose(kin[:, :nb], (1, 0))
    det_prod = jnp.transpose(det[:, :nb], (1, 0))
    return kinetic, det_prod


def _reference(MO, d2MO, confs_up, confs_down, nup):
    """Plain-JAX reference of the torch forward (for validation only)."""
    nmo = MO.shape[-1]
    PupT = jax.nn.one_hot(confs_up, nmo, dtype=jnp.float32)
    PdnT = jax.nn.one_hot(confs_down, nmo, dtype=jnp.float32)
    Aup = jnp.einsum('bim,cjm->cbij', MO[:, :nup, :], PupT)
    Adn = jnp.einsum('bim,cjm->cbij', MO[:, nup:, :], PdnT)
    Bup = jnp.einsum('bim,cjm->cbij', d2MO[:, :nup, :], PupT)
    Bdn = jnp.einsum('bim,cjm->cbij', d2MO[:, nup:, :], PdnT)
    iAup = jnp.linalg.inv(Aup)
    iAdn = jnp.linalg.inv(Adn)
    det_prod = jnp.linalg.det(Aup) * jnp.linalg.det(Adn)
    btr = lambda M: jnp.trace(M, axis1=-2, axis2=-1)
    kin = -0.5 * (btr(iAup @ Bup) + btr(iAdn @ Bdn)) * det_prod
    return kin.T, det_prod.T


if __name__ == "__main__":
    key = jax.random.PRNGKey(0)

    # Small "molecule": 4 spin-up + 4 spin-down electrons, 10 MOs, 3 determinants.
    nup, ndown = 4, 4
    nelec = nup + ndown
    nmo = 10
    nbatch = 128
    confs_up = jnp.array([[0, 1, 2, 3],
                          [0, 1, 2, 4],
                          [0, 1, 3, 5]], dtype=jnp.int32)
    confs_down = jnp.array([[0, 1, 2, 3],
                            [0, 1, 2, 5],
                            [0, 2, 3, 4]], dtype=jnp.int32)

    k1, k2 = jax.random.split(key)
    MO = jax.random.normal(k1, (nbatch, nelec, nmo), dtype=jnp.float32)
    d2MO = jax.random.normal(k2, (nbatch, nelec, nmo), dtype=jnp.float32)

    kinetic, det_prod = kinetic_pooling(MO, d2MO, confs_up, confs_down,
                                        nup=nup, ndown=ndown)
    jax.block_until_ready((kinetic, det_prod))

    assert kinetic.shape == (nbatch, confs_up.shape[0])
    assert det_prod.shape == (nbatch, confs_up.shape[0])
    assert bool(jnp.all(jnp.isfinite(kinetic)))

    ref_kin, ref_det = _reference(MO, d2MO, confs_up, confs_down, nup)
    scale_k = jnp.maximum(jnp.max(jnp.abs(ref_kin)), 1.0)
    scale_d = jnp.maximum(jnp.max(jnp.abs(ref_det)), 1.0)
    assert float(jnp.max(jnp.abs(kinetic - ref_kin)) / scale_k) < 1e-3
    assert float(jnp.max(jnp.abs(det_prod - ref_det)) / scale_d) < 1e-3

    print("KERNEL_OK")
</pallas_src>

<mosaic_0001>
module attributes {stable_mosaic.version = 11 : i64} {
  func.func @_kinetic_kernel(%arg0: i32, %arg1: i32, %arg2: memref<3x4x8x128xf32, #tpu.memory_space<vmem>>, %arg3: memref<3x4x8x128xf32, #tpu.memory_space<vmem>>, %arg4: memref<3x128xf32, #tpu.memory_space<vmem>>, %arg5: memref<3x128xf32, #tpu.memory_space<vmem>>) attributes {dimension_semantics = [#tpu.dimension_semantics<parallel>, #tpu.dimension_semantics<parallel>], iteration_bounds = array<i64: 1, 1>, scalar_prefetch = 0 : i64, scratch_operands = 0 : i64, tpu.core_type = #tpu.core_type<tc>, window_params = [{transform_indices = @transform_0, window_bounds = array<i64: 3, 4, 8, 128>}, {transform_indices = @transform_1, window_bounds = array<i64: 3, 4, 8, 128>}, {transform_indices = @transform_2, window_bounds = array<i64: 3, 128>}, {transform_indices = @transform_3, window_bounds = array<i64: 3, 128>}]} {
    %c0 = arith.constant 0 : index
    %c0_0 = arith.constant 0 : index
    %c0_1 = arith.constant 0 : index
    %c0_2 = arith.constant 0 : index
    %0 = vector.load %arg2[%c0, %c0_0, %c0_1, %c0_2] : memref<3x4x8x128xf32, #tpu.memory_space<vmem>>, vector<1x1x8x128xf32>
    %1 = vector.shape_cast %0 : vector<1x1x8x128xf32> to vector<8x128xf32>
    %c0_3 = arith.constant 0 : index
    %c1 = arith.constant 1 : index
    %c0_4 = arith.constant 0 : index
    %c0_5 = arith.constant 0 : index
    %2 = vector.load %arg2[%c0_3, %c1, %c0_4, %c0_5] : memref<3x4x8x128xf32, #tpu.memory_space<vmem>>, vector<1x1x8x128xf32>
    %3 = vector.shape_cast %2 : vector<1x1x8x128xf32> to vector<8x128xf32>
    %c0_6 = arith.constant 0 : index
    %c2 = arith.constant 2 : index
    %c0_7 = arith.constant 0 : index
    %c0_8 = arith.constant 0 : index
    %4 = vector.load %arg2[%c0_6, %c2, %c0_7, %c0_8] : memref<3x4x8x128xf32, #tpu.memory_space<vmem>>, vector<1x1x8x128xf32>
    %5 = vector.shape_cast %4 : vector<1x1x8x128xf32> to vector<8x128xf32>
    %c0_9 = arith.constant 0 : index
    %c3 = arith.constant 3 : index
    %c0_10 = arith.constant 0 : index
    %c0_11 = arith.constant 0 : index
    %6 = vector.load %arg2[%c0_9, %c3, %c0_10, %c0_11] : memref<3x4x8x128xf32, #tpu.memory_space<vmem>>, vector<1x1x8x128xf32>
    %7 = vector.shape_cast %6 : vector<1x1x8x128xf32> to vector<8x128xf32>
    %cst = arith.constant 1.000000e+00 : f32
    %8 = vector.broadcast %cst : f32 to vector<1x128xf32>
    %9 = vector.extract_strided_slice %3 {offsets = [0, 0], sizes = [1, 128], strides = [1, 1]} : vector<8x128xf32> to vector<1x128xf32>
    %10 = math.absf %9 : vector<1x128xf32>
    %11 = vector.extract_strided_slice %1 {offsets = [0, 0], sizes = [1, 128], strides = [1, 1]} : vector<8x128xf32> to vector<1x128xf32>
    %12 = math.absf %11 : vector<1x128xf32>
    %13 = arith.cmpf ogt, %10, %12 : vector<1x128xf32>
    %14 = vector.shape_cast %13 : vector<1x128xi1> to vector<1x128xi1>
    %15 = vector.broadcast %14 : vector<1x128xi1> to vector<8x128xi1>
    %16 = arith.select %15, %3, %1 : vector<8x128xi1>, vector<8x128xf32>
    %17 = vector.shape_cast %13 : vector<1x128xi1> to vector<1x128xi1>
    %18 = vector.broadcast %17 : vector<1x128xi1> to vector<8x128xi1>
    %19 = arith.select %18, %1, %3 : vector<8x128xi1>, vector<8x128xf32>
    %cst_12 = arith.constant 0.000000e+00 : f32
    %20 = vector.broadcast %cst_12 : f32 to vector<1x128xf32>
    %21 = arith.subf %20, %8 : vector<1x128xf32>
    %22 = arith.select %13, %21, %8 : vector<1x128xi1>, vector<1x128xf32>
    %23 = vector.extract_strided_slice %5 {offsets = [0, 0], sizes = [1, 128], strides = [1, 1]} : vector<8x128xf32> to vector<1x128xf32>
    %24 = math.absf %23 : vector<1x128xf32>
    %25 = vector.extract_strided_slice %16 {offsets = [0, 0], sizes = [1, 128], strides = [1, 1]} : vector<8x128xf32> to vector<1x128xf32>
    %26 = math.absf %25 : vector<1x128xf32>
    %27 = arith.cmpf ogt, %24, %26 : vector<1x128xf32>
    %28 = vector.shape_cast %27 : vector<1x128xi1> to vector<1x128xi1>
    %29 = vector.broadcast %28 : vector<1x128xi1> to vector<8x128xi1>
    %30 = arith.select %29, %5, %16 : vector<8x128xi1>, vector<8x128xf32>
    %31 = vector.shape_cast %27 : vector<1x128xi1> to vector<1x128xi1>
    %32 = vector.broadcast %31 : vector<1x128xi1> to vector<8x128xi1>
    %33 = arith.select %32, %16, %5 : vector<8x128xi1>, vector<8x128xf32>
    %cst_13 = arith.constant 0.000000e+00 : f32
    %34 = vector.broadcast %cst_13 : f32 to vector<1x128xf32>
    %35 = arith.subf %34, %22 : vector<1x128xf32>
    %36 = arith.select %27, %35, %22 : vector<1x128xi1>, vector<1x128xf32>
    %37 = vector.extract_strided_slice %7 {offsets = [0, 0], sizes = [1, 128], strides = [1, 1]} : vector<8x128xf32> to vector<1x128xf32>
    %38 = math.absf %37 : vector<1x128xf32>
    %39 = vector.extract_strided_slice %30 {offsets = [0, 0], sizes = [1, 128], strides = [1, 1]} : vector<8x128xf32> to vector<1x128xf32>
    %40 = math.absf %39 : vector<1x128xf32>
    %41 = arith.cmpf ogt, %38, %40 : vector<1x128xf32>
    %42 = vector.shape_cast %41 : vector<1x128xi1> to vector<1x128xi1>
    %43 = vector.broadcast %42 : vector<1x128xi1> to vector<8x128xi1>
    %44 = arith.select %43, %7, %30 : vector<8x128xi1>, vector<8x128xf32>
    %45 = vector.shape_cast %41 : vector<1x128xi1> to vector<1x128xi1>
    %46 = vector.broadcast %45 : vector<1x128xi1> to vector<8x128xi1>
    %47 = arith.select %46, %30, %7 : vector<8x128xi1>, vector<8x128xf32>
    %cst_14 = arith.constant 0.000000e+00 : f32
    %48 = vector.broadcast %cst_14 : f32 to vector<1x128xf32>
    %49 = arith.subf %48, %36 : vector<1x128xf32>
    %50 = arith.select %41, %49, %36 : vector<1x128xi1>, vector<1x128xf32>
    %51 = vector.extract_strided_slice %44 {offsets = [0, 0], sizes = [1, 128], strides = [1, 1]} : vector<8x128xf32> to vector<1x128xf32>
    %52 = arith.mulf %50, %51 : vector<1x128xf32>
    %53 = tpu.reciprocal %51 {approx = true} : vector<1x128xf32> -> vector<1x128xf32>
    %54 = arith.mulf %51, %53 : vector<1x128xf32>
    %cst_15 = arith.constant 2.000000e+00 : f32
    %55 = vector.broadcast %cst_15 : f32 to vector<1x128xf32>
    %56 = arith.subf %55, %54 : vector<1x128xf32>
    %57 = arith.mulf %53, %56 : vector<1x128xf32>
    %58 = vector.broadcast %57 : vector<1x128xf32> to vector<8x128xf32>
    %59 = arith.mulf %44, %58 : vector<8x128xf32>
    %60 = vector.extract_strided_slice %19 {offsets = [0, 0], sizes = [1, 128], strides = [1, 1]} : vector<8x128xf32> to vector<1x128xf32>
    %61 = vector.broadcast %60 : vector<1x128xf32> to vector<8x128xf32>
    %62 = arith.mulf %61, %59 : vector<8x128xf32>
    %63 = arith.subf %19, %62 : vector<8x128xf32>
    %64 = vector.extract_strided_slice %33 {offsets = [0, 0], sizes = [1, 128], strides = [1, 1]} : vector<8x128xf32> to vector<1x128xf32>
    %65 = vector.broadcast %64 : vector<1x128xf32> to vector<8x128xf32>
    %66 = arith.mulf %65, %59 : vector<8x128xf32>
    %67 = arith.subf %33, %66 : vector<8x128xf32>
    %68 = vector.extract_strided_slice %47 {offsets = [0, 0], sizes = [1, 128], strides = [1, 1]} : vector<8x128xf32> to vector<1x128xf32>
    %69 = vector.broadcast %68 : vector<1x128xf32> to vector<8x128xf32>
    %70 = arith.mulf %69, %59 : vector<8x128xf32>
    %71 = arith.subf %47, %70 : vector<8x128xf32>
    %72 = vector.extract_strided_slice %67 {offsets = [1, 0], sizes = [1, 128], strides = [1, 1]} : vector<8x128xf32> to vector<1x128xf32>
    %73 = math.absf %72 : vector<1x128xf32>
    %74 = vector.extract_strided_slice %63 {offsets = [1, 0], sizes = [1, 128], strides = [1, 1]} : vector<8x128xf32> to vector<1x128xf32>
    %75 = math.absf %74 : vector<1x128xf32>
    %76 = arith.cmpf ogt, %73, %75 : vector<1x128xf32>
    %77 = vector.shape_cast %76 : vector<1x128xi1> to vector<1x128xi1>
    %78 = vector.broadcast %77 : vector<1x128xi1> to vector<8x128xi1>
    %79 = arith.select %78, %67, %63 : vector<8x128xi1>, vector<8x128xf32>
    %80 = vector.shape_cast %76 : vector<1x128xi1> to vector<1x128xi1>
    %81 = vector.broadcast %80 : vector<1x128xi1> to vector<8x128xi1>
    %82 = arith.select %81, %63, %67 : vector<8x128xi1>, vector<8x128xf32>
    %cst_16 = arith.constant 0.000000e+00 : f32
    %83 = vector.broadcast %cst_16 : f32 to vector<1x128xf32>
    %84 = arith.subf %83, %52 : vector<1x128xf32>
    %85 = arith.select %76, %84, %52 : vector<1x128xi1>, vector<1x128xf32>
    %86 = vector.extract_strided_slice %71 {offsets = [1, 0], sizes = [1, 128], strides = [1, 1]} : vector<8x128xf32> to vector<1x128xf32>
    %87 = math.absf %86 : vector<1x128xf32>
    %88 = vector.extract_strided_slice %79 {offsets = [1, 0], sizes = [1, 128], strides = [1, 1]} : vector<8x128xf32> to vector<1x128xf32>
    %89 = math.absf %88 : vector<1x128xf32>
    %90 = arith.cmpf ogt, %87, %89 : vector<1x128xf32>
    %91 = vector.shape_cast %90 : vector<1x128xi1> to vector<1x128xi1>
    %92 = vector.broadcast %91 : vector<1x128xi1> to vector<8x128xi1>
    %93 = arith.select %92, %71, %79 : vector<8x128xi1>, vector<8x128xf32>
    %94 = vector.shape_cast %90 : vector<1x128xi1> to vector<1x128xi1>
    %95 = vector.broadcast %94 : vector<1x128xi1> to vector<8x128xi1>
    %96 = arith.select %95, %79, %71 : vector<8x128xi1>, vector<8x128xf32>
    %cst_17 = arith.constant 0.000000e+00 : f32
    %97 = vector.broadcast %cst_17 : f32 to vector<1x128xf32>
    %98 = arith.subf %97, %85 : vector<1x128xf32>
    %99 = arith.select %90, %98, %85 : vector<1x128xi1>, vector<1x128xf32>
    %100 = vector.extract_strided_slice %93 {offsets = [1, 0], sizes = [1, 128], strides = [1, 1]} : vector<8x128xf32> to vector<1x128xf32>
    %101 = arith.mulf %99, %100 : vector<1x128xf32>
    %102 = tpu.reciprocal %100 {approx = true} : vector<1x128xf32> -> vector<1x128xf32>
    %103 = arith.mulf %100, %102 : vector<1x128xf32>
    %cst_18 = arith.constant 2.000000e+00 : f32
    %104 = vector.broadcast %cst_18 : f32 to vector<1x128xf32>
    %105 = arith.subf %104, %103 : vector<1x128xf32>
    %106 = arith.mulf %102, %105 : vector<1x128xf32>
    %107 = vector.broadcast %106 : vector<1x128xf32> to vector<8x128xf32>
    %108 = arith.mulf %93, %107 : vector<8x128xf32>
    %109 = vector.extract_strided_slice %59 {offsets = [1, 0], sizes = [1, 128], strides = [1, 1]} : vector<8x128xf32> to vector<1x128xf32>
    %110 = vector.broadcast %109 : vector<1x128xf32> to vector<8x128xf32>
    %111 = arith.mulf %110, %108 : vector<8x128xf32>
    %112 = arith.subf %59, %111 : vector<8x128xf32>
    %113 = vector.extract_strided_slice %82 {offsets = [1, 0], sizes = [1, 128], strides = [1, 1]} : vector<8x128xf32> to vector<1x128xf32>
    %114 = vector.broadcast %113 : vector<1x128xf32> to vector<8x128xf32>
    %115 = arith.mulf %114, %108 : vector<8x128xf32>
    %116 = arith.subf %82, %115 : vector<8x128xf32>
    %117 = vector.extract_strided_slice %96 {offsets = [1, 0], sizes = [1, 128], strides = [1, 1]} : vector<8x128xf32> to vector<1x128xf32>
    %118 = vector.broadcast %117 : vector<1x128xf32> to vector<8x128xf32>
    %119 = arith.mulf %118, %108 : vector<8x128xf32>
    %120 = arith.subf %96, %119 : vector<8x128xf32>
    %121 = vector.extract_strided_slice %120 {offsets = [2, 0], sizes = [1, 128], strides = [1, 1]} : vector<8x128xf32> to vector<1x128xf32>
    %122 = math.absf %121 : vector<1x128xf32>
    %123 = vector.extract_strided_slice %116 {offsets = [2, 0], sizes = [1, 128], strides = [1, 1]} : vector<8x128xf32> to vector<1x128xf32>
    %124 = math.absf %123 : vector<1x128xf32>
    %125 = arith.cmpf ogt, %122, %124 : vector<1x128xf32>
    %126 = vector.shape_cast %125 : vector<1x128xi1> to vector<1x128xi1>
    %127 = vector.broadcast %126 : vector<1x128xi1> to vector<8x128xi1>
    %128 = arith.select %127, %120, %116 : vector<8x128xi1>, vector<8x128xf32>
    %129 = vector.shape_cast %125 : vector<1x128xi1> to vector<1x128xi1>
    %130 = vector.broadcast %129 : vector<1x128xi1> to vector<8x128xi1>
    %131 = arith.select %130, %116, %120 : vector<8x128xi1>, vector<8x128xf32>
    %cst_19 = arith.constant 0.000000e+00 : f32
    %132 = vector.broadcast %cst_19 : f32 to vector<1x128xf32>
    %133 = arith.subf %132, %101 : vector<1x128xf32>
    %134 = arith.select %125, %133, %101 : vector<1x128xi1>, vector<1x128xf32>
    %135 = vector.extract_strided_slice %128 {offsets = [2, 0], sizes = [1, 128], strides = [1, 1]} : vector<8x128xf32> to vector<1x128xf32>
    %136 = arith.mulf %134, %135 : vector<1x128xf32>
    %137 = tpu.reciprocal %135 {approx = true} : vector<1x128xf32> -> vector<1x128xf32>
    %138 = arith.mulf %135, %137 : vector<1x128xf32>
    %cst_20 = arith.constant 2.000000e+00 : f32
    %139 = vector.broadcast %cst_20 : f32 to vector<1x128xf32>
    %140 = arith.subf %139, %138 : vector<1x128xf32>
    %141 = arith.mulf %137, %140 : vector<1x128xf32>
    %142 = vector.broadcast %141 : vector<1x128xf32> to vector<8x128xf32>
    %143 = arith.mulf %128, %142 : vector<8x128xf32>
    %144 = vector.extract_strided_slice %112 {offsets = [2, 0], sizes = [1, 128], strides = [1, 1]} : vector<8x128xf32> to vector<1x128xf32>
    %145 = vector.broadcast %144 : vector<1x128xf32> to vector<8x128xf32>
    %146 = arith.mulf %145, %143 : vector<8x128xf32>
    %147 = arith.subf %112, %146 : vector<8x128xf32>
    %148 = vector.extract_strided_slice %108 {offsets = [2, 0], sizes = [1, 128], strides = [1, 1]} : vector<8x128xf32> to vector<1x128xf32>
    %149 = vector.broadcast %148 : vector<1x128xf32> to vector<8x128xf32>
    %150 = arith.mulf %149, %143 : vector<8x128xf32>
    %151 = arith.subf %108, %150 : vector<8x128xf32>
    %152 = vector.extract_strided_slice %131 {offsets = [2, 0], sizes = [1, 128], strides = [1, 1]} : vector<8x128xf32> to vector<1x128xf32>
    %153 = vector.broadcast %152 : vector<1x128xf32> to vector<8x128xf32>
    %154 = arith.mulf %153, %143 : vector<8x128xf32>
    %155 = arith.subf %131, %154 : vector<8x128xf32>
    %156 = vector.extract_strided_slice %155 {offsets = [3, 0], sizes = [1, 128], strides = [1, 1]} : vector<8x128xf32> to vector<1x128xf32>
    %157 = arith.mulf %136, %156 : vector<1x128xf32>
    %158 = tpu.reciprocal %156 {approx = true} : vector<1x128xf32> -> vector<1x128xf32>
    %159 = arith.mulf %156, %158 : vector<1x128xf32>
    %cst_21 = arith.constant 2.000000e+00 : f32
    %160 = vector.broadcast %cst_21 : f32 to vector<1x128xf32>
    %161 = arith.subf %160, %159 : vector<1x128xf32>
    %162 = arith.mulf %158, %161 : vector<1x128xf32>
    %163 = vector.broadcast %162 : vector<1x128xf32> to vector<8x128xf32>
    %164 = arith.mulf %155, %163 : vector<8x128xf32>
    %165 = vector.extract_strided_slice %147 {offsets = [3, 0], sizes = [1, 128], strides = [1, 1]} : vector<8x128xf32> to vector<1x128xf32>
    %166 = vector.broadcast %165 : vector<1x128xf32> to vector<8x128xf32>
    %167 = arith.mulf %166, %164 : vector<8x128xf32>
    %168 = arith.subf %147, %167 : vector<8x128xf32>
    %169 = vector.extract_strided_slice %151 {offsets = [3, 0], sizes = [1, 128], strides = [1, 1]} : vector<8x128xf32> to vector<1x128xf32>
    %170 = vector.broadcast %169 : vector<1x128xf32> to vector<8x128xf32>
    %171 = arith.mulf %170, %164 : vector<8x128xf32>
    %172 = arith.subf %151, %171 : vector<8x128xf32>
    %173 = vector.extract_strided_slice %143 {offsets = [3, 0], sizes = [1, 128], strides = [1, 1]} : vector<8x128xf32> to vector<1x128xf32>
    %174 = vector.broadcast %173 : vector<1x128xf32> to vector<8x128xf32>
    %175 = arith.mulf %174, %164 : vector<8x128xf32>
    %176 = arith.subf %143, %175 : vector<8x128xf32>
    %177 = vector.extract_strided_slice %168 {offsets = [4, 0], sizes = [1, 128], strides = [1, 1]} : vector<8x128xf32> to vector<1x128xf32>
    %178 = vector.extract_strided_slice %172 {offsets = [5, 0], sizes = [1, 128], strides = [1, 1]} : vector<8x128xf32> to vector<1x128xf32>
    %179 = arith.addf %177, %178 : vector<1x128xf32>
    %180 = vector.extract_strided_slice %176 {offsets = [6, 0], sizes = [1, 128], strides = [1, 1]} : vector<8x128xf32> to vector<1x128xf32>
    %181 = arith.addf %179, %180 : vector<1x128xf32>
    %182 = vector.extract_strided_slice %164 {offsets = [7, 0], sizes = [1, 128], strides = [1, 1]} : vector<8x128xf32> to vector<1x128xf32>
    %183 = arith.addf %181, %182 : vector<1x128xf32>
    %c0_22 = arith.constant 0 : index
    %c0_23 = arith.constant 0 : index
    %c0_24 = arith.constant 0 : index
    %c0_25 = arith.constant 0 : index
    %184 = vector.load %arg3[%c0_22, %c0_23, %c0_24, %c0_25] : memref<3x4x8x128xf32, #tpu.memory_space<vmem>>, vector<1x1x8x128xf32>
    %185 = vector.shape_cast %184 : vector<1x1x8x128xf32> to vector<8x128xf32>
    %c0_26 = arith.constant 0 : index
    %c1_27 = arith.constant 1 : index
    %c0_28 = arith.constant 0 : index
    %c0_29 = arith.constant 0 : index
    %186 = vector.load %arg3[%c0_26, %c1_27, %c0_28, %c0_29] : memref<3x4x8x128xf32, #tpu.memory_space<vmem>>, vector<1x1x8x128xf32>
    %187 = vector.shape_cast %186 : vector<1x1x8x128xf32> to vector<8x128xf32>
    %c0_30 = arith.constant 0 : index
    %c2_31 = arith.constant 2 : index
    %c0_32 = arith.constant 0 : index
    %c0_33 = arith.constant 0 : index
    %188 = vector.load %arg3[%c0_30, %c2_31, %c0_32, %c0_33] : memref<3x4x8x128xf32, #tpu.memory_space<vmem>>, vector<1x1x8x128xf32>
    %189 = vector.shape_cast %188 : vector<1x1x8x128xf32> to vector<8x128xf32>
    %c0_34 = arith.constant 0 : index
    %c3_35 = arith.constant 3 : index
    %c0_36 = arith.constant 0 : index
    %c0_37 = arith.constant 0 : index
    %190 = vector.load %arg3[%c0_34, %c3_35, %c0_36, %c0_37] : memref<3x4x8x128xf32, #tpu.memory_space<vmem>>, vector<1x1x8x128xf32>
    %191 = vector.shape_cast %190 : vector<1x1x8x128xf32> to vector<8x128xf32>
    %cst_38 = arith.constant 1.000000e+00 : f32
    %192 = vector.broadcast %cst_38 : f32 to vector<1x128xf32>
    %193 = vector.extract_strided_slice %187 {offsets = [0, 0], sizes = [1, 128], strides = [1, 1]} : vector<8x128xf32> to vector<1x128xf32>
    %194 = math.absf %193 : vector<1x128xf32>
    %195 = vector.extract_strided_slice %185 {offsets = [0, 0], sizes = [1, 128], strides = [1, 1]} : vector<8x128xf32> to vector<1x128xf32>
    %196 = math.absf %195 : vector<1x128xf32>
    %197 = arith.cmpf ogt, %194, %196 : vector<1x128xf32>
    %198 = vector.shape_cast %197 : vector<1x128xi1> to vector<1x128xi1>
    %199 = vector.broadcast %198 : vector<1x128xi1> to vector<8x128xi1>
    %200 = arith.select %199, %187, %185 : vector<8x128xi1>, vector<8x128xf32>
    %201 = vector.shape_cast %197 : vector<1x128xi1> to vector<1x128xi1>
    %202 = vector.broadcast %201 : vector<1x128xi1> to vector<8x128xi1>
    %203 = arith.select %202, %185, %187 : vector<8x128xi1>, vector<8x128xf32>
    %cst_39 = arith.constant 0.000000e+00 : f32
    %204 = vector.broadcast %cst_39 : f32 to vector<1x128xf32>
    %205 = arith.subf %204, %192 : vector<1x128xf32>
    %206 = arith.select %197, %205, %192 : vector<1x128xi1>, vector<1x128xf32>
    %207 = vector.extract_strided_slice %189 {offsets = [0, 0], sizes = [1, 128], strides = [1, 1]} : vector<8x128xf32> to vector<1x128xf32>
    %208 = math.absf %207 : vector<1x128xf32>
    %209 = vector.extract_strided_slice %200 {offsets = [0, 0], sizes = [1, 128], strides = [1, 1]} : vector<8x128xf32> to vector<1x128xf32>
    %210 = math.absf %209 : vector<1x128xf32>
    %211 = arith.cmpf ogt, %208, %210 : vector<1x128xf32>
    %212 = vector.shape_cast %211 : vector<1x128xi1> to vector<1x128xi1>
    %213 = vector.broadcast %212 : vector<1x128xi1> to vector<8x128xi1>
    %214 = arith.select %213, %189, %200 : vector<8x128xi1>, vector<8x128xf32>
    %215 = vector.shape_cast %211 : vector<1x128xi1> to vector<1x128xi1>
    %216 = vector.broadcast %215 : vector<1x128xi1> to vector<8x128xi1>
    %217 = arith.select %216, %200, %189 : vector<8x128xi1>, vector<8x128xf32>
    %cst_40 = arith.constant 0.000000e+00 : f32
    %218 = vector.broadcast %cst_40 : f32 to vector<1x128xf32>
    %219 = arith.subf %218, %206 : vector<1x128xf32>
    %220 = arith.select %211, %219, %206 : vector<1x128xi1>, vector<1x128xf32>
    %221 = vector.extract_strided_slice %191 {offsets = [0, 0], sizes = [1, 128], strides = [1, 1]} : vector<8x128xf32> to vector<1x128xf32>
    %222 = math.absf %221 : vector<1x128xf32>
    %223 = vector.extract_strided_slice %214 {offsets = [0, 0], sizes = [1, 128], strides = [1, 1]} : vector<8x128xf32> to vector<1x128xf32>
    %224 = math.absf %223 : vector<1x128xf32>
    %225 = arith.cmpf ogt, %222, %224 : vector<1x128xf32>
    %226 = vector.shape_cast %225 : vector<1x128xi1> to vector<1x128xi1>
    %227 = vector.broadcast %226 : vector<1x128xi1> to vector<8x128xi1>
    %228 = arith.select %227, %191, %214 : vector<8x128xi1>, vector<8x128xf32>
    %229 = vector.shape_cast %225 : vector<1x128xi1> to vector<1x128xi1>
    %230 = vector.broadcast %229 : vector<1x128xi1> to vector<8x128xi1>
    %231 = arith.select %230, %214, %191 : vector<8x128xi1>, vector<8x128xf32>
    %cst_41 = arith.constant 0.000000e+00 : f32
    %232 = vector.broadcast %cst_41 : f32 to vector<1x128xf32>
    %233 = arith.subf %232, %220 : vector<1x128xf32>
    %234 = arith.select %225, %233, %220 : vector<1x128xi1>, vector<1x128xf32>
    %235 = vector.extract_strided_slice %228 {offsets = [0, 0], sizes = [1, 128], strides = [1, 1]} : vector<8x128xf32> to vector<1x128xf32>
    %236 = arith.mulf %234, %235 : vector<1x128xf32>
    %237 = tpu.reciprocal %235 {approx = true} : vector<1x128xf32> -> vector<1x128xf32>
    %238 = arith.mulf %235, %237 : vector<1x128xf32>
    %cst_42 = arith.constant 2.000000e+00 : f32
    %239 = vector.broadcast %cst_42 : f32 to vector<1x128xf32>
    %240 = arith.subf %239, %238 : vector<1x128xf32>
    %241 = arith.mulf %237, %240 : vector<1x128xf32>
    %242 = vector.broadcast %241 : vector<1x128xf32> to vector<8x128xf32>
    %243 = arith.mulf %228, %242 : vector<8x128xf32>
    %244 = vector.extract_strided_slice %203 {offsets = [0, 0], sizes = [1, 128], strides = [1, 1]} : vector<8x128xf32> to vector<1x128xf32>
    %245 = vector.broadcast %244 : vector<1x128xf32> to vector<8x128xf32>
    %246 = arith.mulf %245, %243 : vector<8x128xf32>
    %247 = arith.subf %203, %246 : vector<8x128xf32>
    %248 = vector.extract_strided_slice %217 {offsets = [0, 0], sizes = [1, 128], strides = [1, 1]} : vector<8x128xf32> to vector<1x128xf32>
    %249 = vector.broadcast %248 : vector<1x128xf32> to vector<8x128xf32>
    %250 = arith.mulf %249, %243 : vector<8x128xf32>
    %251 = arith.subf %217, %250 : vector<8x128xf32>
    %252 = vector.extract_strided_slice %231 {offsets = [0, 0], sizes = [1, 128], strides = [1, 1]} : vector<8x128xf32> to vector<1x128xf32>
    %253 = vector.broadcast %252 : vector<1x128xf32> to vector<8x128xf32>
    %254 = arith.mulf %253, %243 : vector<8x128xf32>
    %255 = arith.subf %231, %254 : vector<8x128xf32>
    %256 = vector.extract_strided_slice %251 {offsets = [1, 0], sizes = [1, 128], strides = [1, 1]} : vector<8x128xf32> to vector<1x128xf32>
    %257 = math.absf %256 : vector<1x128xf32>
    %258 = vector.extract_strided_slice %247 {offsets = [1, 0], sizes = [1, 128], strides = [1, 1]} : vector<8x128xf32> to vector<1x128xf32>
    %259 = math.absf %258 : vector<1x128xf32>
    %260 = arith.cmpf ogt, %257, %259 : vector<1x128xf32>
    %261 = vector.shape_cast %260 : vector<1x128xi1> to vector<1x128xi1>
    %262 = vector.broadcast %261 : vector<1x128xi1> to vector<8x128xi1>
    %263 = arith.select %262, %251, %247 : vector<8x128xi1>, vector<8x128xf32>
    %264 = vector.shape_cast %260 : vector<1x128xi1> to vector<1x128xi1>
    %265 = vector.broadcast %264 : vector<1x128xi1> to vector<8x128xi1>
    %266 = arith.select %265, %247, %251 : vector<8x128xi1>, vector<8x128xf32>
    %cst_43 = arith.constant 0.000000e+00 : f32
    %267 = vector.broadcast %cst_43 : f32 to vector<1x128xf32>
    %268 = arith.subf %267, %236 : vector<1x128xf32>
    %269 = arith.select %260, %268, %236 : vector<1x128xi1>, vector<1x128xf32>
    %270 = vector.extract_strided_slice %255 {offsets = [1, 0], sizes = [1, 128], strides = [1, 1]} : vector<8x128xf32> to vector<1x128xf32>
    %271 = math.absf %270 : vector<1x128xf32>
    %272 = vector.extract_strided_slice %263 {offsets = [1, 0], sizes = [1, 128], strides = [1, 1]} : vector<8x128xf32> to vector<1x128xf32>
    %273 = math.absf %272 : vector<1x128xf32>
    %274 = arith.cmpf ogt, %271, %273 : vector<1x128xf32>
    %275 = vector.shape_cast %274 : vector<1x128xi1> to vector<1x128xi1>
    %276 = vector.broadcast %275 : vector<1x128xi1> to vector<8x128xi1>
    %277 = arith.select %276, %255, %263 : vector<8x128xi1>, vector<8x128xf32>
    %278 = vector.shape_cast %274 : vector<1x128xi1> to vector<1x128xi1>
    %279 = vector.broadcast %278 : vector<1x128xi1> to vector<8x128xi1>
    %280 = arith.select %279, %263, %255 : vector<8x128xi1>, vector<8x128xf32>
    %cst_44 = arith.constant 0.000000e+00 : f32
    %281 = vector.broadcast %cst_44 : f32 to vector<1x128xf32>
    %282 = arith.subf %281, %269 : vector<1x128xf32>
    %283 = arith.select %274, %282, %269 : vector<1x128xi1>, vector<1x128xf32>
    %284 = vector.extract_strided_slice %277 {offsets = [1, 0], sizes = [1, 128], strides = [1, 1]} : vector<8x128xf32> to vector<1x128xf32>
    %285 = arith.mulf %283, %284 : vector<1x128xf32>
    %286 = tpu.reciprocal %284 {approx = true} : vector<1x128xf32> -> vector<1x128xf32>
    %287 = arith.mulf %284, %286 : vector<1x128xf32>
    %cst_45 = arith.constant 2.000000e+00 : f32
    %288 = vector.broadcast %cst_45 : f32 to vector<1x128xf32>
    %289 = arith.subf %288, %287 : vector<1x128xf32>
    %290 = arith.mulf %286, %289 : vector<1x128xf32>
    %291 = vector.broadcast %290 : vector<1x128xf32> to vector<8x128xf32>
    %292 = arith.mulf %277, %291 : vector<8x128xf32>
    %293 = vector.extract_strided_slice %243 {offsets = [1, 0], sizes = [1, 128], strides = [1, 1]} : vector<8x128xf32> to vector<1x128xf32>
    %294 = vector.broadcast %293 : vector<1x128xf32> to vector<8x128xf32>
    %295 = arith.mulf %294, %292 : vector<8x128xf32>
    %296 = arith.subf %243, %295 : vector<8x128xf32>
    %297 = vector.extract_strided_slice %266 {offsets = [1, 0], sizes = [1, 128], strides = [1, 1]} : vector<8x128xf32> to vector<1x128xf32>
    %298 = vector.broadcast %297 : vector<1x128xf32> to vector<8x128xf32>
    %299 = arith.mulf %298, %292 : vector<8x128xf32>
    %300 = arith.subf %266, %299 : vector<8x128xf32>
    %301 = vector.extract_strided_slice %280 {offsets = [1, 0], sizes = [1, 128], strides = [1, 1]} : vector<8x128xf32> to vector<1x128xf32>
    %302 = vector.broadcast %301 : vector<1x128xf32> to vector<8x128xf32>
    %303 = arith.mulf %302, %292 : vector<8x128xf32>
    %304 = arith.subf %280, %303 : vector<8x128xf32>
    %305 = vector.extract_strided_slice %304 {offsets = [2, 0], sizes = [1, 128], strides = [1, 1]} : vector<8x128xf32> to vector<1x128xf32>
    %306 = math.absf %305 : vector<1x128xf32>
    %307 = vector.extract_strided_slice %300 {offsets = [2, 0], sizes = [1, 128], strides = [1, 1]} : vector<8x128xf32> to vector<1x128xf32>
    %308 = math.absf %307 : vector<1x128xf32>
    %309 = arith.cmpf ogt, %306, %308 : vector<1x128xf32>
    %310 = vector.shape_cast %309 : vector<1x128xi1> to vector<1x128xi1>
    %311 = vector.broadcast %310 : vector<1x128xi1> to vector<8x128xi1>
    %312 = arith.select %311, %304, %300 : vector<8x128xi1>, vector<8x128xf32>
    %313 = vector.shape_cast %309 : vector<1x128xi1> to vector<1x128xi1>
    %314 = vector.broadcast %313 : vector<1x128xi1> to vector<8x128xi1>
    %315 = arith.select %314, %300, %304 : vector<8x128xi1>, vector<8x128xf32>
    %cst_46 = arith.constant 0.000000e+00 : f32
    %316 = vector.broadcast %cst_46 : f32 to vector<1x128xf32>
    %317 = arith.subf %316, %285 : vector<1x128xf32>
    %318 = arith.select %309, %317, %285 : vector<1x128xi1>, vector<1x128xf32>
    %319 = vector.extract_strided_slice %312 {offsets = [2, 0], sizes = [1, 128], strides = [1, 1]} : vector<8x128xf32> to vector<1x128xf32>
    %320 = arith.mulf %318, %319 : vector<1x128xf32>
    %321 = tpu.reciprocal %319 {approx = true} : vector<1x128xf32> -> vector<1x128xf32>
    %322 = arith.mulf %319, %321 : vector<1x128xf32>
    %cst_47 = arith.constant 2.000000e+00 : f32
    %323 = vector.broadcast %cst_47 : f32 to vector<1x128xf32>
    %324 = arith.subf %323, %322 : vector<1x128xf32>
    %325 = arith.mulf %321, %324 : vector<1x128xf32>
    %326 = vector.broadcast %325 : vector<1x128xf32> to vector<8x128xf32>
    %327 = arith.mulf %312, %326 : vector<8x128xf32>
    %328 = vector.extract_strided_slice %296 {offsets = [2, 0], sizes = [1, 128], strides = [1, 1]} : vector<8x128xf32> to vector<1x128xf32>
    %329 = vector.broadcast %328 : vector<1x128xf32> to vector<8x128xf32>
    %330 = arith.mulf %329, %327 : vector<8x128xf32>
    %331 = arith.subf %296, %330 : vector<8x128xf32>
    %332 = vector.extract_strided_slice %292 {offsets = [2, 0], sizes = [1, 128], strides = [1, 1]} : vector<8x128xf32> to vector<1x128xf32>
    %333 = vector.broadcast %332 : vector<1x128xf32> to vector<8x128xf32>
    %334 = arith.mulf %333, %327 : vector<8x128xf32>
    %335 = arith.subf %292, %334 : vector<8x128xf32>
    %336 = vector.extract_strided_slice %315 {offsets = [2, 0], sizes = [1, 128], strides = [1, 1]} : vector<8x128xf32> to vector<1x128xf32>
    %337 = vector.broadcast %336 : vector<1x128xf32> to vector<8x128xf32>
    %338 = arith.mulf %337, %327 : vector<8x128xf32>
    %339 = arith.subf %315, %338 : vector<8x128xf32>
    %340 = vector.extract_strided_slice %339 {offsets = [3, 0], sizes = [1, 128], strides = [1, 1]} : vector<8x128xf32> to vector<1x128xf32>
    %341 = arith.mulf %320, %340 : vector<1x128xf32>
    %342 = tpu.reciprocal %340 {approx = true} : vector<1x128xf32> -> vector<1x128xf32>
    %343 = arith.mulf %340, %342 : vector<1x128xf32>
    %cst_48 = arith.constant 2.000000e+00 : f32
    %344 = vector.broadcast %cst_48 : f32 to vector<1x128xf32>
    %345 = arith.subf %344, %343 : vector<1x128xf32>
    %346 = arith.mulf %342, %345 : vector<1x128xf32>
    %347 = vector.broadcast %346 : vector<1x128xf32> to vector<8x128xf32>
    %348 = arith.mulf %339, %347 : vector<8x128xf32>
    %349 = vector.extract_strided_slice %331 {offsets = [3, 0], sizes = [1, 128], strides = [1, 1]} : vector<8x128xf32> to vector<1x128xf32>
    %350 = vector.broadcast %349 : vector<1x128xf32> to vector<8x128xf32>
    %351 = arith.mulf %350, %348 : vector<8x128xf32>
    %352 = arith.subf %331, %351 : vector<8x128xf32>
    %353 = vector.extract_strided_slice %335 {offsets = [3, 0], sizes = [1, 128], strides = [1, 1]} : vector<8x128xf32> to vector<1x128xf32>
    %354 = vector.broadcast %353 : vector<1x128xf32> to vector<8x128xf32>
    %355 = arith.mulf %354, %348 : vector<8x128xf32>
    %356 = arith.subf %335, %355 : vector<8x128xf32>
    %357 = vector.extract_strided_slice %327 {offsets = [3, 0], sizes = [1, 128], strides = [1, 1]} : vector<8x128xf32> to vector<1x128xf32>
    %358 = vector.broadcast %357 : vector<1x128xf32> to vector<8x128xf32>
    %359 = arith.mulf %358, %348 : vector<8x128xf32>
    %360 = arith.subf %327, %359 : vector<8x128xf32>
    %361 = vector.extract_strided_slice %352 {offsets = [4, 0], sizes = [1, 128], strides = [1, 1]} : vector<8x128xf32> to vector<1x128xf32>
    %362 = vector.extract_strided_slice %356 {offsets = [5, 0], sizes = [1, 128], strides = [1, 1]} : vector<8x128xf32> to vector<1x128xf32>
    %363 = arith.addf %361, %362 : vector<1x128xf32>
    %364 = vector.extract_strided_slice %360 {offsets = [6, 0], sizes = [1, 128], strides = [1, 1]} : vector<8x128xf32> to vector<1x128xf32>
    %365 = arith.addf %363, %364 : vector<1x128xf32>
    %366 = vector.extract_strided_slice %348 {offsets = [7, 0], sizes = [1, 128], strides = [1, 1]} : vector<8x128xf32> to vector<1x128xf32>
    %367 = arith.addf %365, %366 : vector<1x128xf32>
    %368 = arith.mulf %157, %341 : vector<1x128xf32>
    %369 = arith.addf %183, %367 : vector<1x128xf32>
    %cst_49 = arith.constant -5.000000e-01 : f32
    %370 = vector.broadcast %cst_49 : f32 to vector<1x128xf32>
    %371 = arith.mulf %370, %369 : vector<1x128xf32>
    %372 = arith.mulf %371, %368 : vector<1x128xf32>
    %c1_50 = arith.constant 1 : index
    %c0_51 = arith.constant 0 : index
    %c0_52 = arith.constant 0 : index
    %c0_53 = arith.constant 0 : index
    %373 = vector.load %arg2[%c1_50, %c0_51, %c0_52, %c0_53] : memref<3x4x8x128xf32, #tpu.memory_space<vmem>>, vector<1x1x8x128xf32>
    %374 = vector.shape_cast %373 : vector<1x1x8x128xf32> to vector<8x128xf32>
    %c1_54 = arith.constant 1 : index
    %c1_55 = arith.constant 1 : index
    %c0_56 = arith.constant 0 : index
    %c0_57 = arith.constant 0 : index
    %375 = vector.load %arg2[%c1_54, %c1_55, %c0_56, %c0_57] : memref<3x4x8x128xf32, #tpu.memory_space<vmem>>, vector<1x1x8x128xf32>
    %376 = vector.shape_cast %375 : vector<1x1x8x128xf32> to vector<8x128xf32>
    %c1_58 = arith.constant 1 : index
    %c2_59 = arith.constant 2 : index
    %c0_60 = arith.constant 0 : index
    %c0_61 = arith.constant 0 : index
    %377 = vector.load %arg2[%c1_58, %c2_59, %c0_60, %c0_61] : memref<3x4x8x128xf32, #tpu.memory_space<vmem>>, vector<1x1x8x128xf32>
    %378 = vector.shape_cast %377 : vector<1x1x8x128xf32> to vector<8x128xf32>
    %c1_62 = arith.constant 1 : index
    %c3_63 = arith.constant 3 : index
    %c0_64 = arith.constant 0 : index
    %c0_65 = arith.constant 0 : index
    %379 = vector.load %arg2[%c1_62, %c3_63, %c0_64, %c0_65] : memref<3x4x8x128xf32, #tpu.memory_space<vmem>>, vector<1x1x8x128xf32>
    %380 = vector.shape_cast %379 : vector<1x1x8x128xf32> to vector<8x128xf32>
    %cst_66 = arith.constant 1.000000e+00 : f32
    %381 = vector.broadcast %cst_66 : f32 to vector<1x128xf32>
    %382 = vector.extract_strided_slice %376 {offsets = [0, 0], sizes = [1, 128], strides = [1, 1]} : vector<8x128xf32> to vector<1x128xf32>
    %383 = math.absf %382 : vector<1x128xf32>
    %384 = vector.extract_strided_slice %374 {offsets = [0, 0], sizes = [1, 128], strides = [1, 1]} : vector<8x128xf32> to vector<1x128xf32>
    %385 = math.absf %384 : vector<1x128xf32>
    %386 = arith.cmpf ogt, %383, %385 : vector<1x128xf32>
    %387 = vector.shape_cast %386 : vector<1x128xi1> to vector<1x128xi1>
    %388 = vector.broadcast %387 : vector<1x128xi1> to vector<8x128xi1>
    %389 = arith.select %388, %376, %374 : vector<8x128xi1>, vector<8x128xf32>
    %390 = vector.shape_cast %386 : vector<1x128xi1> to vector<1x128xi1>
    %391 = vector.broadcast %390 : vector<1x128xi1> to vector<8x128xi1>
    %392 = arith.select %391, %374, %376 : vector<8x128xi1>, vector<8x128xf32>
    %cst_67 = arith.constant 0.000000e+00 : f32
    %393 = vector.broadcast %cst_67 : f32 to vector<1x128xf32>
    %394 = arith.subf %393, %381 : vector<1x128xf32>
    %395 = arith.select %386, %394, %381 : vector<1x128xi1>, vector<1x128xf32>
    %396 = vector.extract_strided_slice %378 {offsets = [0, 0], sizes = [1, 128], strides = [1, 1]} : vector<8x128xf32> to vector<1x128xf32>
    %397 = math.absf %396 : vector<1x128xf32>
    %398 = vector.extract_strided_slice %389 {offsets = [0, 0], sizes = [1, 128], strides = [1, 1]} : vector<8x128xf32> to vector<1x128xf32>
    %399 = math.absf %398 : vector<1x128xf32>
    %400 = arith.cmpf ogt, %397, %399 : vector<1x128xf32>
    %401 = vector.shape_cast %400 : vector<1x128xi1> to vector<1x128xi1>
    %402 = vector.broadcast %401 : vector<1x128xi1> to vector<8x128xi1>
    %403 = arith.select %402, %378, %389 : vector<8x128xi1>, vector<8x128xf32>
    %404 = vector.shape_cast %400 : vector<1x128xi1> to vector<1x128xi1>
    %405 = vector.broadcast %404 : vector<1x128xi1> to vector<8x128xi1>
    %406 = arith.select %405, %389, %378 : vector<8x128xi1>, vector<8x128xf32>
    %cst_68 = arith.constant 0.000000e+00 : f32
    %407 = vector.broadcast %cst_68 : f32 to vector<1x128xf32>
    %408 = arith.subf %407, %395 : vector<1x128xf32>
    %409 = arith.select %400, %408, %395 : vector<1x128xi1>, vector<1x128xf32>
    %410 = vector.extract_strided_slice %380 {offsets = [0, 0], sizes = [1, 128], strides = [1, 1]} : vector<8x128xf32> to vector<1x128xf32>
    %411 = math.absf %410 : vector<1x128xf32>
    %412 = vector.extract_strided_slice %403 {offsets = [0, 0], sizes = [1, 128], strides = [1, 1]} : vector<8x128xf32> to vector<1x128xf32>
    %413 = math.absf %412 : vector<1x128xf32>
    %414 = arith.cmpf ogt, %411, %413 : vector<1x128xf32>
    %415 = vector.shape_cast %414 : vector<1x128xi1> to vector<1x128xi1>
    %416 = vector.broadcast %415 : vector<1x128xi1> to vector<8x128xi1>
    %417 = arith.select %416, %380, %403 : vector<8x128xi1>, vector<8x128xf32>
    %418 = vector.shape_cast %414 : vector<1x128xi1> to vector<1x128xi1>
    %419 = vector.broadcast %418 : vector<1x128xi1> to vector<8x128xi1>
    %420 = arith.select %419, %403, %380 : vector<8x128xi1>, vector<8x128xf32>
    %cst_69 = arith.constant 0.000000e+00 : f32
    %421 = vector.broadcast %cst_69 : f32 to vector<1x128xf32>
    %422 = arith.subf %421, %409 : vector<1x128xf32>
    %423 = arith.select %414, %422, %409 : vector<1x128xi1>, vector<1x128xf32>
    %424 = vector.extract_strided_slice %417 {offsets = [0, 0], sizes = [1, 128], strides = [1, 1]} : vector<8x128xf32> to vector<1x128xf32>
    %425 = arith.mulf %423, %424 : vector<1x128xf32>
    %426 = tpu.reciprocal %424 {approx = true} : vector<1x128xf32> -> vector<1x128xf32>
    %427 = arith.mulf %424, %426 : vector<1x128xf32>
    %cst_70 = arith.constant 2.000000e+00 : f32
    %428 = vector.broadcast %cst_70 : f32 to vector<1x128xf32>
    %429 = arith.subf %428, %427 : vector<1x128xf32>
    %430 = arith.mulf %426, %429 : vector<1x128xf32>
    %431 = vector.broadcast %430 : vector<1x128xf32> to vector<8x128xf32>
    %432 = arith.mulf %417, %431 : vector<8x128xf32>
    %433 = vector.extract_strided_slice %392 {offsets = [0, 0], sizes = [1, 128], strides = [1, 1]} : vector<8x128xf32> to vector<1x128xf32>
    %434 = vector.broadcast %433 : vector<1x128xf32> to vector<8x128xf32>
    %435 = arith.mulf %434, %432 : vector<8x128xf32>
    %436 = arith.subf %392, %435 : vector<8x128xf32>
    %437 = vector.extract_strided_slice %406 {offsets = [0, 0], sizes = [1, 128], strides = [1, 1]} : vector<8x128xf32> to vector<1x128xf32>
    %438 = vector.broadcast %437 : vector<1x128xf32> to vector<8x128xf32>
    %439 = arith.mulf %438, %432 : vector<8x128xf32>
    %440 = arith.subf %406, %439 : vector<8x128xf32>
    %441 = vector.extract_strided_slice %420 {offsets = [0, 0], sizes = [1, 128], strides = [1, 1]} : vector<8x128xf32> to vector<1x128xf32>
    %442 = vector.broadcast %441 : vector<1x128xf32> to vector<8x128xf32>
    %443 = arith.mulf %442, %432 : vector<8x128xf32>
    %444 = arith.subf %420, %443 : vector<8x128xf32>
    %445 = vector.extract_strided_slice %440 {offsets = [1, 0], sizes = [1, 128], strides = [1, 1]} : vector<8x128xf32> to vector<1x128xf32>
    %446 = math.absf %445 : vector<1x128xf32>
    %447 = vector.extract_strided_slice %436 {offsets = [1, 0], sizes = [1, 128], strides = [1, 1]} : vector<8x128xf32> to vector<1x128xf32>
    %448 = math.absf %447 : vector<1x128xf32>
    %449 = arith.cmpf ogt, %446, %448 : vector<1x128xf32>
    %450 = vector.shape_cast %449 : vector<1x128xi1> to vector<1x128xi1>
    %451 = vector.broadcast %450 : vector<1x128xi1> to vector<8x128xi1>
    %452 = arith.select %451, %440, %436 : vector<8x128xi1>, vector<8x128xf32>
    %453 = vector.shape_cast %449 : vector<1x128xi1> to vector<1x128xi1>
    %454 = vector.broadcast %453 : vector<1x128xi1> to vector<8x128xi1>
    %455 = arith.select %454, %436, %440 : vector<8x128xi1>, vector<8x128xf32>
    %cst_71 = arith.constant 0.000000e+00 : f32
    %456 = vector.broadcast %cst_71 : f32 to vector<1x128xf32>
    %457 = arith.subf %456, %425 : vector<1x128xf32>
    %458 = arith.select %449, %457, %425 : vector<1x128xi1>, vector<1x128xf32>
    %459 = vector.extract_strided_slice %444 {offsets = [1, 0], sizes = [1, 128], strides = [1, 1]} : vector<8x128xf32> to vector<1x128xf32>
    %460 = math.absf %459 : vector<1x128xf32>
    %461 = vector.extract_strided_slice %452 {offsets = [1, 0], sizes = [1, 128], strides = [1, 1]} : vector<8x128xf32> to vector<1x128xf32>
    %462 = math.absf %461 : vector<1x128xf32>
    %463 = arith.cmpf ogt, %460, %462 : vector<1x128xf32>
    %464 = vector.shape_cast %463 : vector<1x128xi1> to vector<1x128xi1>
    %465 = vector.broadcast %464 : vector<1x128xi1> to vector<8x128xi1>
    %466 = arith.select %465, %444, %452 : vector<8x128xi1>, vector<8x128xf32>
    %467 = vector.shape_cast %463 : vector<1x128xi1> to vector<1x128xi1>
    %468 = vector.broadcast %467 : vector<1x128xi1> to vector<8x128xi1>
    %469 = arith.select %468, %452, %444 : vector<8x128xi1>, vector<8x128xf32>
    %cst_72 = arith.constant 0.000000e+00 : f32
    %470 = vector.broadcast %cst_72 : f32 to vector<1x128xf32>
    %471 = arith.subf %470, %458 : vector<1x128xf32>
    %472 = arith.select %463, %471, %458 : vector<1x128xi1>, vector<1x128xf32>
    %473 = vector.extract_strided_slice %466 {offsets = [1, 0], sizes = [1, 128], strides = [1, 1]} : vector<8x128xf32> to vector<1x128xf32>
    %474 = arith.mulf %472, %473 : vector<1x128xf32>
    %475 = tpu.reciprocal %473 {approx = true} : vector<1x128xf32> -> vector<1x128xf32>
    %476 = arith.mulf %473, %475 : vector<1x128xf32>
    %cst_73 = arith.constant 2.000000e+00 : f32
    %477 = vector.broadcast %cst_73 : f32 to vector<1x128xf32>
    %478 = arith.subf %477, %476 : vector<1x128xf32>
    %479 = arith.mulf %475, %478 : vector<1x128xf32>
    %480 = vector.broadcast %479 : vector<1x128xf32> to vector<8x128xf32>
    %481 = arith.mulf %466, %480 : vector<8x128xf32>
    %482 = vector.extract_strided_slice %432 {offsets = [1, 0], sizes = [1, 128], strides = [1, 1]} : vector<8x128xf32> to vector<1x128xf32>
    %483 = vector.broadcast %482 : vector<1x128xf32> to vector<8x128xf32>
    %484 = arith.mulf %483, %481 : vector<8x128xf32>
    %485 = arith.subf %432, %484 : vector<8x128xf32>
    %486 = vector.extract_strided_slice %455 {offsets = [1, 0], sizes = [1, 128], strides = [1, 1]} : vector<8x128xf32> to vector<1x128xf32>
    %487 = vector.broadcast %486 : vector<1x128xf32> to vector<8x128xf32>
    %488 = arith.mulf %487, %481 : vector<8x128xf32>
    %489 = arith.subf %455, %488 : vector<8x128xf32>
    %490 = vector.extract_strided_slice %469 {offsets = [1, 0], sizes = [1, 128], strides = [1, 1]} : vector<8x128xf32> to vector<1x128xf32>
    %491 = vector.broadcast %490 : vector<1x128xf32> to vector<8x128xf32>
    %492 = arith.mulf %491, %481 : vector<8x128xf32>
    %493 = arith.subf %469, %492 : vector<8x128xf32>
    %494 = vector.extract_strided_slice %493 {offsets = [2, 0], sizes = [1, 128], strides = [1, 1]} : vector<8x128xf32> to vector<1x128xf32>
    %495 = math.absf %494 : vector<1x128xf32>
    %496 = vector.extract_strided_slice %489 {offsets = [2, 0], sizes = [1, 128], strides = [1, 1]} : vector<8x128xf32> to vector<1x128xf32>
    %497 = math.absf %496 : vector<1x128xf32>
    %498 = arith.cmpf ogt, %495, %497 : vector<1x128xf32>
    %499 = vector.shape_cast %498 : vector<1x128xi1> to vector<1x128xi1>
    %500 = vector.broadcast %499 : vector<1x128xi1> to vector<8x128xi1>
    %501 = arith.select %500, %493, %489 : vector<8x128xi1>, vector<8x128xf32>
    %502 = vector.shape_cast %498 : vector<1x128xi1> to vector<1x128xi1>
    %503 = vector.broadcast %502 : vector<1x128xi1> to vector<8x128xi1>
    %504 = arith.select %503, %489, %493 : vector<8x128xi1>, vector<8x128xf32>
    %cst_74 = arith.constant 0.000000e+00 : f32
    %505 = vector.broadcast %cst_74 : f32 to vector<1x128xf32>
    %506 = arith.subf %505, %474 : vector<1x128xf32>
    %507 = arith.select %498, %506, %474 : vector<1x128xi1>, vector<1x128xf32>
    %508 = vector.extract_strided_slice %501 {offsets = [2, 0], sizes = [1, 128], strides = [1, 1]} : vector<8x128xf32> to vector<1x128xf32>
    %509 = arith.mulf %507, %508 : vector<1x128xf32>
    %510 = tpu.reciprocal %508 {approx = true} : vector<1x128xf32> -> vector<1x128xf32>
    %511 = arith.mulf %508, %510 : vector<1x128xf32>
    %cst_75 = arith.constant 2.000000e+00 : f32
    %512 = vector.broadcast %cst_75 : f32 to vector<1x128xf32>
    %513 = arith.subf %512, %511 : vector<1x128xf32>
    %514 = arith.mulf %510, %513 : vector<1x128xf32>
    %515 = vector.broadcast %514 : vector<1x128xf32> to vector<8x128xf32>
    %516 = arith.mulf %501, %515 : vector<8x128xf32>
    %517 = vector.extract_strided_slice %485 {offsets = [2, 0], sizes = [1, 128], strides = [1, 1]} : vector<8x128xf32> to vector<1x128xf32>
    %518 = vector.broadcast %517 : vector<1x128xf32> to vector<8x128xf32>
    %519 = arith.mulf %518, %516 : vector<8x128xf32>
    %520 = arith.subf %485, %519 : vector<8x128xf32>
    %521 = vector.extract_strided_slice %481 {offsets = [2, 0], sizes = [1, 128], strides = [1, 1]} : vector<8x128xf32> to vector<1x128xf32>
    %522 = vector.broadcast %521 : vector<1x128xf32> to vector<8x128xf32>
    %523 = arith.mulf %522, %516 : vector<8x128xf32>
    %524 = arith.subf %481, %523 : vector<8x128xf32>
    %525 = vector.extract_strided_slice %504 {offsets = [2, 0], sizes = [1, 128], strides = [1, 1]} : vector<8x128xf32> to vector<1x128xf32>
    %526 = vector.broadcast %525 : vector<1x128xf32> to vector<8x128xf32>
    %527 = arith.mulf %526, %516 : vector<8x128xf32>
    %528 = arith.subf %504, %527 : vector<8x128xf32>
    %529 = vector.extract_strided_slice %528 {offsets = [3, 0], sizes = [1, 128], strides = [1, 1]} : vector<8x128xf32> to vector<1x128xf32>
    %530 = arith.mulf %509, %529 : vector<1x128xf32>
    %531 = tpu.reciprocal %529 {approx = true} : vector<1x128xf32> -> vector<1x128xf32>
    %532 = arith.mulf %529, %531 : vector<1x128xf32>
    %cst_76 = arith.constant 2.000000e+00 : f32
    %533 = vector.broadcast %cst_76 : f32 to vector<1x128xf32>
    %534 = arith.subf %533, %532 : vector<1x128xf32>
    %535 = arith.mulf %531, %534 : vector<1x128xf32>
    %536 = vector.broadcast %535 : vector<1x128xf32> to vector<8x128xf32>
    %537 = arith.mulf %528, %536 : vector<8x128xf32>
    %538 = vector.extract_strided_slice %520 {offsets = [3, 0], sizes = [1, 128], strides = [1, 1]} : vector<8x128xf32> to vector<1x128xf32>
    %539 = vector.broadcast %538 : vector<1x128xf32> to vector<8x128xf32>
    %540 = arith.mulf %539, %537 : vector<8x128xf32>
    %541 = arith.subf %520, %540 : vector<8x128xf32>
    %542 = vector.extract_strided_slice %524 {offsets = [3, 0], sizes = [1, 128], strides = [1, 1]} : vector<8x128xf32> to vector<1x128xf32>
    %543 = vector.broadcast %542 : vector<1x128xf32> to vector<8x128xf32>
    %544 = arith.mulf %543, %537 : vector<8x128xf32>
    %545 = arith.subf %524, %544 : vector<8x128xf32>
    %546 = vector.extract_strided_slice %516 {offsets = [3, 0], sizes = [1, 128], strides = [1, 1]} : vector<8x128xf32> to vector<1x128xf32>
    %547 = vector.broadcast %546 : vector<1x128xf32> to vector<8x128xf32>
    %548 = arith.mulf %547, %537 : vector<8x128xf32>
    %549 = arith.subf %516, %548 : vector<8x128xf32>
    %550 = vector.extract_strided_slice %541 {offsets = [4, 0], sizes = [1, 128], strides = [1, 1]} : vector<8x128xf32> to vector<1x128xf32>
    %551 = vector.extract_strided_slice %545 {offsets = [5, 0], sizes = [1, 128], strides = [1, 1]} : vector<8x128xf32> to vector<1x128xf32>
    %552 = arith.addf %550, %551 : vector<1x128xf32>
    %553 = vector.extract_strided_slice %549 {offsets = [6, 0], sizes = [1, 128], strides = [1, 1]} : vector<8x128xf32> to vector<1x128xf32>
    %554 = arith.addf %552, %553 : vector<1x128xf32>
    %555 = vector.extract_strided_slice %537 {offsets = [7, 0], sizes = [1, 128], strides = [1, 1]} : vector<8x128xf32> to vector<1x128xf32>
    %556 = arith.addf %554, %555 : vector<1x128xf32>
    %c1_77 = arith.constant 1 : index
    %c0_78 = arith.constant 0 : index
    %c0_79 = arith.constant 0 : index
    %c0_80 = arith.constant 0 : index
    %557 = vector.load %arg3[%c1_77, %c0_78, %c0_79, %c0_80] : memref<3x4x8x128xf32, #tpu.memory_space<vmem>>, vector<1x1x8x128xf32>
    %558 = vector.shape_cast %557 : vector<1x1x8x128xf32> to vector<8x128xf32>
    %c1_81 = arith.constant 1 : index
    %c1_82 = arith.constant 1 : index
    %c0_83 = arith.constant 0 : index
    %c0_84 = arith.constant 0 : index
    %559 = vector.load %arg3[%c1_81, %c1_82, %c0_83, %c0_84] : memref<3x4x8x128xf32, #tpu.memory_space<vmem>>, vector<1x1x8x128xf32>
    %560 = vector.shape_cast %559 : vector<1x1x8x128xf32> to vector<8x128xf32>
    %c1_85 = arith.constant 1 : index
    %c2_86 = arith.constant 2 : index
    %c0_87 = arith.constant 0 : index
    %c0_88 = arith.constant 0 : index
    %561 = vector.load %arg3[%c1_85, %c2_86, %c0_87, %c0_88] : memref<3x4x8x128xf32, #tpu.memory_space<vmem>>, vector<1x1x8x128xf32>
    %562 = vector.shape_cast %561 : vector<1x1x8x128xf32> to vector<8x128xf32>
    %c1_89 = arith.constant 1 : index
    %c3_90 = arith.constant 3 : index
    %c0_91 = arith.constant 0 : index
    %c0_92 = arith.constant 0 : index
    %563 = vector.load %arg3[%c1_89, %c3_90, %c0_91, %c0_92] : memref<3x4x8x128xf32, #tpu.memory_space<vmem>>, vector<1x1x8x128xf32>
    %564 = vector.shape_cast %563 : vector<1x1x8x128xf32> to vector<8x128xf32>
    %cst_93 = arith.constant 1.000000e+00 : f32
    %565 = vector.broadcast %cst_93 : f32 to vector<1x128xf32>
    %566 = vector.extract_strided_slice %560 {offsets = [0, 0], sizes = [1, 128], strides = [1, 1]} : vector<8x128xf32> to vector<1x128xf32>
    %567 = math.absf %566 : vector<1x128xf32>
    %568 = vector.extract_strided_slice %558 {offsets = [0, 0], sizes = [1, 128], strides = [1, 1]} : vector<8x128xf32> to vector<1x128xf32>
    %569 = math.absf %568 : vector<1x128xf32>
    %570 = arith.cmpf ogt, %567, %569 : vector<1x128xf32>
    %571 = vector.shape_cast %570 : vector<1x128xi1> to vector<1x128xi1>
    %572 = vector.broadcast %571 : vector<1x128xi1> to vector<8x128xi1>
    %573 = arith.select %572, %560, %558 : vector<8x128xi1>, vector<8x128xf32>
    %574 = vector.shape_cast %570 : vector<1x128xi1> to vector<1x128xi1>
    %575 = vector.broadcast %574 : vector<1x128xi1> to vector<8x128xi1>
    %576 = arith.select %575, %558, %560 : vector<8x128xi1>, vector<8x128xf32>
    %cst_94 = arith.constant 0.000000e+00 : f32
    %577 = vector.broadcast %cst_94 : f32 to vector<1x128xf32>
    %578 = arith.subf %577, %565 : vector<1x128xf32>
    %579 = arith.select %570, %578, %565 : vector<1x128xi1>, vector<1x128xf32>
    %580 = vector.extract_strided_slice %562 {offsets = [0, 0], sizes = [1, 128], strides = [1, 1]} : vector<8x128xf32> to vector<1x128xf32>
    %581 = math.absf %580 : vector<1x128xf32>
    %582 = vector.extract_strided_slice %573 {offsets = [0, 0], sizes = [1, 128], strides = [1, 1]} : vector<8x128xf32> to vector<1x128xf32>
    %583 = math.absf %582 : vector<1x128xf32>
    %584 = arith.cmpf ogt, %581, %583 : vector<1x128xf32>
    %585 = vector.shape_cast %584 : vector<1x128xi1> to vector<1x128xi1>
    %586 = vector.broadcast %585 : vector<1x128xi1> to vector<8x128xi1>
    %587 = arith.select %586, %562, %573 : vector<8x128xi1>, vector<8x128xf32>
    %588 = vector.shape_cast %584 : vector<1x128xi1> to vector<1x128xi1>
    %589 = vector.broadcast %588 : vector<1x128xi1> to vector<8x128xi1>
    %590 = arith.select %589, %573, %562 : vector<8x128xi1>, vector<8x128xf32>
    %cst_95 = arith.constant 0.000000e+00 : f32
    %591 = vector.broadcast %cst_95 : f32 to vector<1x128xf32>
    %592 = arith.subf %591, %579 : vector<1x128xf32>
    %593 = arith.select %584, %592, %579 : vector<1x128xi1>, vector<1x128xf32>
    %594 = vector.extract_strided_slice %564 {offsets = [0, 0], sizes = [1, 128], strides = [1, 1]} : vector<8x128xf32> to vector<1x128xf32>
    %595 = math.absf %594 : vector<1x128xf32>
    %596 = vector.extract_strided_slice %587 {offsets = [0, 0], sizes = [1, 128], strides = [1, 1]} : vector<8x128xf32> to vector<1x128xf32>
    %597 = math.absf %596 : vector<1x128xf32>
    %598 = arith.cmpf ogt, %595, %597 : vector<1x128xf32>
    %599 = vector.shape_cast %598 : vector<1x128xi1> to vector<1x128xi1>
    %600 = vector.broadcast %599 : vector<1x128xi1> to vector<8x128xi1>
    %601 = arith.select %600, %564, %587 : vector<8x128xi1>, vector<8x128xf32>
    %602 = vector.shape_cast %598 : vector<1x128xi1> to vector<1x128xi1>
    %603 = vector.broadcast %602 : vector<1x128xi1> to vector<8x128xi1>
    %604 = arith.select %603, %587, %564 : vector<8x128xi1>, vector<8x128xf32>
    %cst_96 = arith.constant 0.000000e+00 : f32
    %605 = vector.broadcast %cst_96 : f32 to vector<1x128xf32>
    %606 = arith.subf %605, %593 : vector<1x128xf32>
    %607 = arith.select %598, %606, %593 : vector<1x128xi1>, vector<1x128xf32>
    %608 = vector.extract_strided_slice %601 {offsets = [0, 0], sizes = [1, 128], strides = [1, 1]} : vector<8x128xf32> to vector<1x128xf32>
    %609 = arith.mulf %607, %608 : vector<1x128xf32>
    %610 = tpu.reciprocal %608 {approx = true} : vector<1x128xf32> -> vector<1x128xf32>
    %611 = arith.mulf %608, %610 : vector<1x128xf32>
    %cst_97 = arith.constant 2.000000e+00 : f32
    %612 = vector.broadcast %cst_97 : f32 to vector<1x128xf32>
    %613 = arith.subf %612, %611 : vector<1x128xf32>
    %614 = arith.mulf %610, %613 : vector<1x128xf32>
    %615 = vector.broadcast %614 : vector<1x128xf32> to vector<8x128xf32>
    %616 = arith.mulf %601, %615 : vector<8x128xf32>
    %617 = vector.extract_strided_slice %576 {offsets = [0, 0], sizes = [1, 128], strides = [1, 1]} : vector<8x128xf32> to vector<1x128xf32>
    %618 = vector.broadcast %617 : vector<1x128xf32> to vector<8x128xf32>
    %619 = arith.mulf %618, %616 : vector<8x128xf32>
    %620 = arith.subf %576, %619 : vector<8x128xf32>
    %621 = vector.extract_strided_slice %590 {offsets = [0, 0], sizes = [1, 128], strides = [1, 1]} : vector<8x128xf32> to vector<1x128xf32>
    %622 = vector.broadcast %621 : vector<1x128xf32> to vector<8x128xf32>
    %623 = arith.mulf %622, %616 : vector<8x128xf32>
    %624 = arith.subf %590, %623 : vector<8x128xf32>
    %625 = vector.extract_strided_slice %604 {offsets = [0, 0], sizes = [1, 128], strides = [1, 1]} : vector<8x128xf32> to vector<1x128xf32>
    %626 = vector.broadcast %625 : vector<1x128xf32> to vector<8x128xf32>
    %627 = arith.mulf %626, %616 : vector<8x128xf32>
    %628 = arith.subf %604, %627 : vector<8x128xf32>
    %629 = vector.extract_strided_slice %624 {offsets = [1, 0], sizes = [1, 128], strides = [1, 1]} : vector<8x128xf32> to vector<1x128xf32>
    %630 = math.absf %629 : vector<1x128xf32>
    %631 = vector.extract_strided_slice %620 {offsets = [1, 0], sizes = [1, 128], strides = [1, 1]} : vector<8x128xf32> to vector<1x128xf32>
    %632 = math.absf %631 : vector<1x128xf32>
    %633 = arith.cmpf ogt, %630, %632 : vector<1x128xf32>
    %634 = vector.shape_cast %633 : vector<1x128xi1> to vector<1x128xi1>
    %635 = vector.broadcast %634 : vector<1x128xi1> to vector<8x128xi1>
    %636 = arith.select %635, %624, %620 : vector<8x128xi1>, vector<8x128xf32>
    %637 = vector.shape_cast %633 : vector<1x128xi1> to vector<1x128xi1>
    %638 = vector.broadcast %637 : vector<1x128xi1> to vector<8x128xi1>
    %639 = arith.select %638, %620, %624 : vector<8x128xi1>, vector<8x128xf32>
    %cst_98 = arith.constant 0.000000e+00 : f32
    %640 = vector.broadcast %cst_98 : f32 to vector<1x128xf32>
    %641 = arith.subf %640, %609 : vector<1x128xf32>
    %642 = arith.select %633, %641, %609 : vector<1x128xi1>, vector<1x128xf32>
    %643 = vector.extract_strided_slice %628 {offsets = [1, 0], sizes = [1, 128], strides = [1, 1]} : vector<8x128xf32> to vector<1x128xf32>
    %644 = math.absf %643 : vector<1x128xf32>
    %645 = vector.extract_strided_slice %636 {offsets = [1, 0], sizes = [1, 128], strides = [1, 1]} : vector<8x128xf32> to vector<1x128xf32>
    %646 = math.absf %645 : vector<1x128xf32>
    %647 = arith.cmpf ogt, %644, %646 : vector<1x128xf32>
    %648 = vector.shape_cast %647 : vector<1x128xi1> to vector<1x128xi1>
    %649 = vector.broadcast %648 : vector<1x128xi1> to vector<8x128xi1>
    %650 = arith.select %649, %628, %636 : vector<8x128xi1>, vector<8x128xf32>
    %651 = vector.shape_cast %647 : vector<1x128xi1> to vector<1x128xi1>
    %652 = vector.broadcast %651 : vector<1x128xi1> to vector<8x128xi1>
    %653 = arith.select %652, %636, %628 : vector<8x128xi1>, vector<8x128xf32>
    %cst_99 = arith.constant 0.000000e+00 : f32
    %654 = vector.broadcast %cst_99 : f32 to vector<1x128xf32>
    %655 = arith.subf %654, %642 : vector<1x128xf32>
    %656 = arith.select %647, %655, %642 : vector<1x128xi1>, vector<1x128xf32>
    %657 = vector.extract_strided_slice %650 {offsets = [1, 0], sizes = [1, 128], strides = [1, 1]} : vector<8x128xf32> to vector<1x128xf32>
    %658 = arith.mulf %656, %657 : vector<1x128xf32>
    %659 = tpu.reciprocal %657 {approx = true} : vector<1x128xf32> -> vector<1x128xf32>
    %660 = arith.mulf %657, %659 : vector<1x128xf32>
    %cst_100 = arith.constant 2.000000e+00 : f32
    %661 = vector.broadcast %cst_100 : f32 to vector<1x128xf32>
    %662 = arith.subf %661, %660 : vector<1x128xf32>
    %663 = arith.mulf %659, %662 : vector<1x128xf32>
    %664 = vector.broadcast %663 : vector<1x128xf32> to vector<8x128xf32>
    %665 = arith.mulf %650, %664 : vector<8x128xf32>
    %666 = vector.extract_strided_slice %616 {offsets = [1, 0], sizes = [1, 128], strides = [1, 1]} : vector<8x128xf32> to vector<1x128xf32>
    %667 = vector.broadcast %666 : vector<1x128xf32> to vector<8x128xf32>
    %668 = arith.mulf %667, %665 : vector<8x128xf32>
    %669 = arith.subf %616, %668 : vector<8x128xf32>
    %670 = vector.extract_strided_slice %639 {offsets = [1, 0], sizes = [1, 128], strides = [1, 1]} : vector<8x128xf32> to vector<1x128xf32>
    %671 = vector.broadcast %670 : vector<1x128xf32> to vector<8x128xf32>
    %672 = arith.mulf %671, %665 : vector<8x128xf32>
    %673 = arith.subf %639, %672 : vector<8x128xf32>
    %674 = vector.extract_strided_slice %653 {offsets = [1, 0], sizes = [1, 128], strides = [1, 1]} : vector<8x128xf32> to vector<1x128xf32>
    %675 = vector.broadcast %674 : vector<1x128xf32> to vector<8x128xf32>
    %676 = arith.mulf %675, %665 : vector<8x128xf32>
    %677 = arith.subf %653, %676 : vector<8x128xf32>
    %678 = vector.extract_strided_slice %677 {offsets = [2, 0], sizes = [1, 128], strides = [1, 1]} : vector<8x128xf32> to vector<1x128xf32>
    %679 = math.absf %678 : vector<1x128xf32>
    %680 = vector.extract_strided_slice %673 {offsets = [2, 0], sizes = [1, 128], strides = [1, 1]} : vector<8x128xf32> to vector<1x128xf32>
    %681 = math.absf %680 : vector<1x128xf32>
    %682 = arith.cmpf ogt, %679, %681 : vector<1x128xf32>
    %683 = vector.shape_cast %682 : vector<1x128xi1> to vector<1x128xi1>
    %684 = vector.broadcast %683 : vector<1x128xi1> to vector<8x128xi1>
    %685 = arith.select %684, %677, %673 : vector<8x128xi1>, vector<8x128xf32>
    %686 = vector.shape_cast %682 : vector<1x128xi1> to vector<1x128xi1>
    %687 = vector.broadcast %686 : vector<1x128xi1> to vector<8x128xi1>
    %688 = arith.select %687, %673, %677 : vector<8x128xi1>, vector<8x128xf32>
    %cst_101 = arith.constant 0.000000e+00 : f32
    %689 = vector.broadcast %cst_101 : f32 to vector<1x128xf32>
    %690 = arith.subf %689, %658 : vector<1x128xf32>
    %691 = arith.select %682, %690, %658 : vector<1x128xi1>, vector<1x128xf32>
    %692 = vector.extract_strided_slice %685 {offsets = [2, 0], sizes = [1, 128], strides = [1, 1]} : vector<8x128xf32> to vector<1x128xf32>
    %693 = arith.mulf %691, %692 : vector<1x128xf32>
    %694 = tpu.reciprocal %692 {approx = true} : vector<1x128xf32> -> vector<1x128xf32>
    %695 = arith.mulf %692, %694 : vector<1x128xf32>
    %cst_102 = arith.constant 2.000000e+00 : f32
    %696 = vector.broadcast %cst_102 : f32 to vector<1x128xf32>
    %697 = arith.subf %696, %695 : vector<1x128xf32>
    %698 = arith.mulf %694, %697 : vector<1x128xf32>
    %699 = vector.broadcast %698 : vector<1x128xf32> to vector<8x128xf32>
    %700 = arith.mulf %685, %699 : vector<8x128xf32>
    %701 = vector.extract_strided_slice %669 {offsets = [2, 0], sizes = [1, 128], strides = [1, 1]} : vector<8x128xf32> to vector<1x128xf32>
    %702 = vector.broadcast %701 : vector<1x128xf32> to vector<8x128xf32>
    %703 = arith.mulf %702, %700 : vector<8x128xf32>
    %704 = arith.subf %669, %703 : vector<8x128xf32>
    %705 = vector.extract_strided_slice %665 {offsets = [2, 0], sizes = [1, 128], strides = [1, 1]} : vector<8x128xf32> to vector<1x128xf32>
    %706 = vector.broadcast %705 : vector<1x128xf32> to vector<8x128xf32>
    %707 = arith.mulf %706, %700 : vector<8x128xf32>
    %708 = arith.subf %665, %707 : vector<8x128xf32>
    %709 = vector.extract_strided_slice %688 {offsets = [2, 0], sizes = [1, 128], strides = [1, 1]} : vector<8x128xf32> to vector<1x128xf32>
    %710 = vector.broadcast %709 : vector<1x128xf32> to vector<8x128xf32>
    %711 = arith.mulf %710, %700 : vector<8x128xf32>
    %712 = arith.subf %688, %711 : vector<8x128xf32>
    %713 = vector.extract_strided_slice %712 {offsets = [3, 0], sizes = [1, 128], strides = [1, 1]} : vector<8x128xf32> to vector<1x128xf32>
    %714 = arith.mulf %693, %713 : vector<1x128xf32>
    %715 = tpu.reciprocal %713 {approx = true} : vector<1x128xf32> -> vector<1x128xf32>
    %716 = arith.mulf %713, %715 : vector<1x128xf32>
    %cst_103 = arith.constant 2.000000e+00 : f32
    %717 = vector.broadcast %cst_103 : f32 to vector<1x128xf32>
    %718 = arith.subf %717, %716 : vector<1x128xf32>
    %719 = arith.mulf %715, %718 : vector<1x128xf32>
    %720 = vector.broadcast %719 : vector<1x128xf32> to vector<8x128xf32>
    %721 = arith.mulf %712, %720 : vector<8x128xf32>
    %722 = vector.extract_strided_slice %704 {offsets = [3, 0], sizes = [1, 128], strides = [1, 1]} : vector<8x128xf32> to vector<1x128xf32>
    %723 = vector.broadcast %722 : vector<1x128xf32> to vector<8x128xf32>
    %724 = arith.mulf %723, %721 : vector<8x128xf32>
    %725 = arith.subf %704, %724 : vector<8x128xf32>
    %726 = vector.extract_strided_slice %708 {offsets = [3, 0], sizes = [1, 128], strides = [1, 1]} : vector<8x128xf32> to vector<1x128xf32>
    %727 = vector.broadcast %726 : vector<1x128xf32> to vector<8x128xf32>
    %728 = arith.mulf %727, %721 : vector<8x128xf32>
    %729 = arith.subf %708, %728 : vector<8x128xf32>
    %730 = vector.extract_strided_slice %700 {offsets = [3, 0], sizes = [1, 128], strides = [1, 1]} : vector<8x128xf32> to vector<1x128xf32>
    %731 = vector.broadcast %730 : vector<1x128xf32> to vector<8x128xf32>
    %732 = arith.mulf %731, %721 : vector<8x128xf32>
    %733 = arith.subf %700, %732 : vector<8x128xf32>
    %734 = vector.extract_strided_slice %725 {offsets = [4, 0], sizes = [1, 128], strides = [1, 1]} : vector<8x128xf32> to vector<1x128xf32>
    %735 = vector.extract_strided_slice %729 {offsets = [5, 0], sizes = [1, 128], strides = [1, 1]} : vector<8x128xf32> to vector<1x128xf32>
    %736 = arith.addf %734, %735 : vector<1x128xf32>
    %737 = vector.extract_strided_slice %733 {offsets = [6, 0], sizes = [1, 128], strides = [1, 1]} : vector<8x128xf32> to vector<1x128xf32>
    %738 = arith.addf %736, %737 : vector<1x128xf32>
    %739 = vector.extract_strided_slice %721 {offsets = [7, 0], sizes = [1, 128], strides = [1, 1]} : vector<8x128xf32> to vector<1x128xf32>
    %740 = arith.addf %738, %739 : vector<1x128xf32>
    %741 = arith.mulf %530, %714 : vector<1x128xf32>
    %742 = arith.addf %556, %740 : vector<1x128xf32>
    %cst_104 = arith.constant -5.000000e-01 : f32
    %743 = vector.broadcast %cst_104 : f32 to vector<1x128xf32>
    %744 = arith.mulf %743, %742 : vector<1x128xf32>
    %745 = arith.mulf %744, %741 : vector<1x128xf32>
    %c2_105 = arith.constant 2 : index
    %c0_106 = arith.constant 0 : index
    %c0_107 = arith.constant 0 : index
    %c0_108 = arith.constant 0 : index
    %746 = vector.load %arg2[%c2_105, %c0_106, %c0_107, %c0_108] : memref<3x4x8x128xf32, #tpu.memory_space<vmem>>, vector<1x1x8x128xf32>
    %747 = vector.shape_cast %746 : vector<1x1x8x128xf32> to vector<8x128xf32>
    %c2_109 = arith.constant 2 : index
    %c1_110 = arith.constant 1 : index
    %c0_111 = arith.constant 0 : index
    %c0_112 = arith.constant 0 : index
    %748 = vector.load %arg2[%c2_109, %c1_110, %c0_111, %c0_112] : memref<3x4x8x128xf32, #tpu.memory_space<vmem>>, vector<1x1x8x128xf32>
    %749 = vector.shape_cast %748 : vector<1x1x8x128xf32> to vector<8x128xf32>
    %c2_113 = arith.constant 2 : index
    %c2_114 = arith.constant 2 : index
    %c0_115 = arith.constant 0 : index
    %c0_116 = arith.constant 0 : index
    %750 = vector.load %arg2[%c2_113, %c2_114, %c0_115, %c0_116] : memref<3x4x8x128xf32, #tpu.memory_space<vmem>>, vector<1x1x8x128xf32>
    %751 = vector.shape_cast %750 : vector<1x1x8x128xf32> to vector<8x128xf32>
    %c2_117 = arith.constant 2 : index
    %c3_118 = arith.constant 3 : index
    %c0_119 = arith.constant 0 : index
    %c0_120 = arith.constant 0 : index
    %752 = vector.load %arg2[%c2_117, %c3_118, %c0_119, %c0_120] : memref<3x4x8x128xf32, #tpu.memory_space<vmem>>, vector<1x1x8x128xf32>
    %753 = vector.shape_cast %752 : vector<1x1x8x128xf32> to vector<8x128xf32>
    %cst_121 = arith.constant 1.000000e+00 : f32
    %754 = vector.broadcast %cst_121 : f32 to vector<1x128xf32>
    %755 = vector.extract_strided_slice %749 {offsets = [0, 0], sizes = [1, 128], strides = [1, 1]} : vector<8x128xf32> to vector<1x128xf32>
    %756 = math.absf %755 : vector<1x128xf32>
    %757 = vector.extract_strided_slice %747 {offsets = [0, 0], sizes = [1, 128], strides = [1, 1]} : vector<8x128xf32> to vector<1x128xf32>
    %758 = math.absf %757 : vector<1x128xf32>
    %759 = arith.cmpf ogt, %756, %758 : vector<1x128xf32>
    %760 = vector.shape_cast %759 : vector<1x128xi1> to vector<1x128xi1>
    %761 = vector.broadcast %760 : vector<1x128xi1> to vector<8x128xi1>
    %762 = arith.select %761, %749, %747 : vector<8x128xi1>, vector<8x128xf32>
    %763 = vector.shape_cast %759 : vector<1x128xi1> to vector<1x128xi1>
    %764 = vector.broadcast %763 : vector<1x128xi1> to vector<8x128xi1>
    %765 = arith.select %764, %747, %749 : vector<8x128xi1>, vector<8x128xf32>
    %cst_122 = arith.constant 0.000000e+00 : f32
    %766 = vector.broadcast %cst_122 : f32 to vector<1x128xf32>
    %767 = arith.subf %766, %754 : vector<1x128xf32>
    %768 = arith.select %759, %767, %754 : vector<1x128xi1>, vector<1x128xf32>
    %769 = vector.extract_strided_slice %751 {offsets = [0, 0], sizes = [1, 128], strides = [1, 1]} : vector<8x128xf32> to vector<1x128xf32>
    %770 = math.absf %769 : vector<1x128xf32>
    %771 = vector.extract_strided_slice %762 {offsets = [0, 0], sizes = [1, 128], strides = [1, 1]} : vector<8x128xf32> to vector<1x128xf32>
    %772 = math.absf %771 : vector<1x128xf32>
    %773 = arith.cmpf ogt, %770, %772 : vector<1x128xf32>
    %774 = vector.shape_cast %773 : vector<1x128xi1> to vector<1x128xi1>
    %775 = vector.broadcast %774 : vector<1x128xi1> to vector<8x128xi1>
    %776 = arith.select %775, %751, %762 : vector<8x128xi1>, vector<8x128xf32>
    %777 = vector.shape_cast %773 : vector<1x128xi1> to vector<1x128xi1>
    %778 = vector.broadcast %777 : vector<1x128xi1> to vector<8x128xi1>
    %779 = arith.select %778, %762, %751 : vector<8x128xi1>, vector<8x128xf32>
    %cst_123 = arith.constant 0.000000e+00 : f32
    %780 = vector.broadcast %cst_123 : f32 to vector<1x128xf32>
    %781 = arith.subf %780, %768 : vector<1x128xf32>
    %782 = arith.select %773, %781, %768 : vector<1x128xi1>, vector<1x128xf32>
    %783 = vector.extract_strided_slice %753 {offsets = [0, 0], sizes = [1, 128], strides = [1, 1]} : vector<8x128xf32> to vector<1x128xf32>
    %784 = math.absf %783 : vector<1x128xf32>
    %785 = vector.extract_strided_slice %776 {offsets = [0, 0], sizes = [1, 128], strides = [1, 1]} : vector<8x128xf32> to vector<1x128xf32>
    %786 = math.absf %785 : vector<1x128xf32>
    %787 = arith.cmpf ogt, %784, %786 : vector<1x128xf32>
    %788 = vector.shape_cast %787 : vector<1x128xi1> to vector<1x128xi1>
    %789 = vector.broadcast %788 : vector<1x128xi1> to vector<8x128xi1>
    %790 = arith.select %789, %753, %776 : vector<8x128xi1>, vector<8x128xf32>
    %791 = vector.shape_cast %787 : vector<1x128xi1> to vector<1x128xi1>
    %792 = vector.broadcast %791 : vector<1x128xi1> to vector<8x128xi1>
    %793 = arith.select %792, %776, %753 : vector<8x128xi1>, vector<8x128xf32>
    %cst_124 = arith.constant 0.000000e+00 : f32
    %794 = vector.broadcast %cst_124 : f32 to vector<1x128xf32>
    %795 = arith.subf %794, %782 : vector<1x128xf32>
    %796 = arith.select %787, %795, %782 : vector<1x128xi1>, vector<1x128xf32>
    %797 = vector.extract_strided_slice %790 {offsets = [0, 0], sizes = [1, 128], strides = [1, 1]} : vector<8x128xf32> to vector<1x128xf32>
    %798 = arith.mulf %796, %797 : vector<1x128xf32>
    %799 = tpu.reciprocal %797 {approx = true} : vector<1x128xf32> -> vector<1x128xf32>
    %800 = arith.mulf %797, %799 : vector<1x128xf32>
    %cst_125 = arith.constant 2.000000e+00 : f32
    %801 = vector.broadcast %cst_125 : f32 to vector<1x128xf32>
    %802 = arith.subf %801, %800 : vector<1x128xf32>
    %803 = arith.mulf %799, %802 : vector<1x128xf32>
    %804 = vector.broadcast %803 : vector<1x128xf32> to vector<8x128xf32>
    %805 = arith.mulf %790, %804 : vector<8x128xf32>
    %806 = vector.extract_strided_slice %765 {offsets = [0, 0], sizes = [1, 128], strides = [1, 1]} : vector<8x128xf32> to vector<1x128xf32>
    %807 = vector.broadcast %806 : vector<1x128xf32> to vector<8x128xf32>
    %808 = arith.mulf %807, %805 : vector<8x128xf32>
    %809 = arith.subf %765, %808 : vector<8x128xf32>
    %810 = vector.extract_strided_slice %779 {offsets = [0, 0], sizes = [1, 128], strides = [1, 1]} : vector<8x128xf32> to vector<1x128xf32>
    %811 = vector.broadcast %810 : vector<1x128xf32> to vector<8x128xf32>
    %812 = arith.mulf %811, %805 : vector<8x128xf32>
    %813 = arith.subf %779, %812 : vector<8x128xf32>
    %814 = vector.extract_strided_slice %793 {offsets = [0, 0], sizes = [1, 128], strides = [1, 1]} : vector<8x128xf32> to vector<1x128xf32>
    %815 = vector.broadcast %814 : vector<1x128xf32> to vector<8x128xf32>
    %816 = arith.mulf %815, %805 : vector<8x128xf32>
    %817 = arith.subf %793, %816 : vector<8x128xf32>
    %818 = vector.extract_strided_slice %813 {offsets = [1, 0], sizes = [1, 128], strides = [1, 1]} : vector<8x128xf32> to vector<1x128xf32>
    %819 = math.absf %818 : vector<1x128xf32>
    %820 = vector.extract_strided_slice %809 {offsets = [1, 0], sizes = [1, 128], strides = [1, 1]} : vector<8x128xf32> to vector<1x128xf32>
    %821 = math.absf %820 : vector<1x128xf32>
    %822 = arith.cmpf ogt, %819, %821 : vector<1x128xf32>
    %823 = vector.shape_cast %822 : vector<1x128xi1> to vector<1x128xi1>
    %824 = vector.broadcast %823 : vector<1x128xi1> to vector<8x128xi1>
    %825 = arith.select %824, %813, %809 : vector<8x128xi1>, vector<8x128xf32>
    %826 = vector.shape_cast %822 : vector<1x128xi1> to vector<1x128xi1>
    %827 = vector.broadcast %826 : vector<1x128xi1> to vector<8x128xi1>
    %828 = arith.select %827, %809, %813 : vector<8x128xi1>, vector<8x128xf32>
    %cst_126 = arith.constant 0.000000e+00 : f32
    %829 = vector.broadcast %cst_126 : f32 to vector<1x128xf32>
    %830 = arith.subf %829, %798 : vector<1x128xf32>
    %831 = arith.select %822, %830, %798 : vector<1x128xi1>, vector<1x128xf32>
    %832 = vector.extract_strided_slice %817 {offsets = [1, 0], sizes = [1, 128], strides = [1, 1]} : vector<8x128xf32> to vector<1x128xf32>
    %833 = math.absf %832 : vector<1x128xf32>
    %834 = vector.extract_strided_slice %825 {offsets = [1, 0], sizes = [1, 128], strides = [1, 1]} : vector<8x128xf32> to vector<1x128xf32>
    %835 = math.absf %834 : vector<1x128xf32>
    %836 = arith.cmpf ogt, %833, %835 : vector<1x128xf32>
    %837 = vector.shape_cast %836 : vector<1x128xi1> to vector<1x128xi1>
    %838 = vector.broadcast %837 : vector<1x128xi1> to vector<8x128xi1>
    %839 = arith.select %838, %817, %825 : vector<8x128xi1>, vector<8x128xf32>
    %840 = vector.shape_cast %836 : vector<1x128xi1> to vector<1x128xi1>
    %841 = vector.broadcast %840 : vector<1x128xi1> to vector<8x128xi1>
    %842 = arith.select %841, %825, %817 : vector<8x128xi1>, vector<8x128xf32>
    %cst_127 = arith.constant 0.000000e+00 : f32
    %843 = vector.broadcast %cst_127 : f32 to vector<1x128xf32>
    %844 = arith.subf %843, %831 : vector<1x128xf32>
    %845 = arith.select %836, %844, %831 : vector<1x128xi1>, vector<1x128xf32>
    %846 = vector.extract_strided_slice %839 {offsets = [1, 0], sizes = [1, 128], strides = [1, 1]} : vector<8x128xf32> to vector<1x128xf32>
    %847 = arith.mulf %845, %846 : vector<1x128xf32>
    %848 = tpu.reciprocal %846 {approx = true} : vector<1x128xf32> -> vector<1x128xf32>
    %849 = arith.mulf %846, %848 : vector<1x128xf32>
    %cst_128 = arith.constant 2.000000e+00 : f32
    %850 = vector.broadcast %cst_128 : f32 to vector<1x128xf32>
    %851 = arith.subf %850, %849 : vector<1x128xf32>
    %852 = arith.mulf %848, %851 : vector<1x128xf32>
    %853 = vector.broadcast %852 : vector<1x128xf32> to vector<8x128xf32>
    %854 = arith.mulf %839, %853 : vector<8x128xf32>
    %855 = vector.extract_strided_slice %805 {offsets = [1, 0], sizes = [1, 128], strides = [1, 1]} : vector<8x128xf32> to vector<1x128xf32>
    %856 = vector.broadcast %855 : vector<1x128xf32> to vector<8x128xf32>
    %857 = arith.mulf %856, %854 : vector<8x128xf32>
    %858 = arith.subf %805, %857 : vector<8x128xf32>
    %859 = vector.extract_strided_slice %828 {offsets = [1, 0], sizes = [1, 128], strides = [1, 1]} : vector<8x128xf32> to vector<1x128xf32>
    %860 = vector.broadcast %859 : vector<1x128xf32> to vector<8x128xf32>
    %861 = arith.mulf %860, %854 : vector<8x128xf32>
    %862 = arith.subf %828, %861 : vector<8x128xf32>
    %863 = vector.extract_strided_slice %842 {offsets = [1, 0], sizes = [1, 128], strides = [1, 1]} : vector<8x128xf32> to vector<1x128xf32>
    %864 = vector.broadcast %863 : vector<1x128xf32> to vector<8x128xf32>
    %865 = arith.mulf %864, %854 : vector<8x128xf32>
    %866 = arith.subf %842, %865 : vector<8x128xf32>
    %867 = vector.extract_strided_slice %866 {offsets = [2, 0], sizes = [1, 128], strides = [1, 1]} : vector<8x128xf32> to vector<1x128xf32>
    %868 = math.absf %867 : vector<1x128xf32>
    %869 = vector.extract_strided_slice %862 {offsets = [2, 0], sizes = [1, 128], strides = [1, 1]} : vector<8x128xf32> to vector<1x128xf32>
    %870 = math.absf %869 : vector<1x128xf32>
    %871 = arith.cmpf ogt, %868, %870 : vector<1x128xf32>
    %872 = vector.shape_cast %871 : vector<1x128xi1> to vector<1x128xi1>
    %873 = vector.broadcast %872 : vector<1x128xi1> to vector<8x128xi1>
    %874 = arith.select %873, %866, %862 : vector<8x128xi1>, vector<8x128xf32>
    %875 = vector.shape_cast %871 : vector<1x128xi1> to vector<1x128xi1>
    %876 = vector.broadcast %875 : vector<1x128xi1> to vector<8x128xi1>
    %877 = arith.select %876, %862, %866 : vector<8x128xi1>, vector<8x128xf32>
    %cst_129 = arith.constant 0.000000e+00 : f32
    %878 = vector.broadcast %cst_129 : f32 to vector<1x128xf32>
    %879 = arith.subf %878, %847 : vector<1x128xf32>
    %880 = arith.select %871, %879, %847 : vector<1x128xi1>, vector<1x128xf32>
    %881 = vector.extract_strided_slice %874 {offsets = [2, 0], sizes = [1, 128], strides = [1, 1]} : vector<8x128xf32> to vector<1x128xf32>
    %882 = arith.mulf %880, %881 : vector<1x128xf32>
    %883 = tpu.reciprocal %881 {approx = true} : vector<1x128xf32> -> vector<1x128xf32>
    %884 = arith.mulf %881, %883 : vector<1x128xf32>
    %cst_130 = arith.constant 2.000000e+00 : f32
    %885 = vector.broadcast %cst_130 : f32 to vector<1x128xf32>
    %886 = arith.subf %885, %884 : vector<1x128xf32>
    %887 = arith.mulf %883, %886 : vector<1x128xf32>
    %888 = vector.broadcast %887 : vector<1x128xf32> to vector<8x128xf32>
    %889 = arith.mulf %874, %888 : vector<8x128xf32>
    %890 = vector.extract_strided_slice %858 {offsets = [2, 0], sizes = [1, 128], strides = [1, 1]} : vector<8x128xf32> to vector<1x128xf32>
    %891 = vector.broadcast %890 : vector<1x128xf32> to vector<8x128xf32>
    %892 = arith.mulf %891, %889 : vector<8x128xf32>
    %893 = arith.subf %858, %892 : vector<8x128xf32>
    %894 = vector.extract_strided_slice %854 {offsets = [2, 0], sizes = [1, 128], strides = [1, 1]} : vector<8x128xf32> to vector<1x128xf32>
    %895 = vector.broadcast %894 : vector<1x128xf32> to vector<8x128xf32>
    %896 = arith.mulf %895, %889 : vector<8x128xf32>
    %897 = arith.subf %854, %896 : vector<8x128xf32>
    %898 = vector.extract_strided_slice %877 {offsets = [2, 0], sizes = [1, 128], strides = [1, 1]} : vector<8x128xf32> to vector<1x128xf32>
    %899 = vector.broadcast %898 : vector<1x128xf32> to vector<8x128xf32>
    %900 = arith.mulf %899, %889 : vector<8x128xf32>
    %901 = arith.subf %877, %900 : vector<8x128xf32>
    %902 = vector.extract_strided_slice %901 {offsets = [3, 0], sizes = [1, 128], strides = [1, 1]} : vector<8x128xf32> to vector<1x128xf32>
    %903 = arith.mulf %882, %902 : vector<1x128xf32>
    %904 = tpu.reciprocal %902 {approx = true} : vector<1x128xf32> -> vector<1x128xf32>
    %905 = arith.mulf %902, %904 : vector<1x128xf32>
    %cst_131 = arith.constant 2.000000e+00 : f32
    %906 = vector.broadcast %cst_131 : f32 to vector<1x128xf32>
    %907 = arith.subf %906, %905 : vector<1x128xf32>
    %908 = arith.mulf %904, %907 : vector<1x128xf32>
    %909 = vector.broadcast %908 : vector<1x128xf32> to vector<8x128xf32>
    %910 = arith.mulf %901, %909 : vector<8x128xf32>
    %911 = vector.extract_strided_slice %893 {offsets = [3, 0], sizes = [1, 128], strides = [1, 1]} : vector<8x128xf32> to vector<1x128xf32>
    %912 = vector.broadcast %911 : vector<1x128xf32> to vector<8x128xf32>
    %913 = arith.mulf %912, %910 : vector<8x128xf32>
    %914 = arith.subf %893, %913 : vector<8x128xf32>
    %915 = vector.extract_strided_slice %897 {offsets = [3, 0], sizes = [1, 128], strides = [1, 1]} : vector<8x128xf32> to vector<1x128xf32>
    %916 = vector.broadcast %915 : vector<1x128xf32> to vector<8x128xf32>
    %917 = arith.mulf %916, %910 : vector<8x128xf32>
    %918 = arith.subf %897, %917 : vector<8x128xf32>
    %919 = vector.extract_strided_slice %889 {offsets = [3, 0], sizes = [1, 128], strides = [1, 1]} : vector<8x128xf32> to vector<1x128xf32>
    %920 = vector.broadcast %919 : vector<1x128xf32> to vector<8x128xf32>
    %921 = arith.mulf %920, %910 : vector<8x128xf32>
    %922 = arith.subf %889, %921 : vector<8x128xf32>
    %923 = vector.extract_strided_slice %914 {offsets = [4, 0], sizes = [1, 128], strides = [1, 1]} : vector<8x128xf32> to vector<1x128xf32>
    %924 = vector.extract_strided_slice %918 {offsets = [5, 0], sizes = [1, 128], strides = [1, 1]} : vector<8x128xf32> to vector<1x128xf32>
    %925 = arith.addf %923, %924 : vector<1x128xf32>
    %926 = vector.extract_strided_slice %922 {offsets = [6, 0], sizes = [1, 128], strides = [1, 1]} : vector<8x128xf32> to vector<1x128xf32>
    %927 = arith.addf %925, %926 : vector<1x128xf32>
    %928 = vector.extract_strided_slice %910 {offsets = [7, 0], sizes = [1, 128], strides = [1, 1]} : vector<8x128xf32> to vector<1x128xf32>
    %929 = arith.addf %927, %928 : vector<1x128xf32>
    %c2_132 = arith.constant 2 : index
    %c0_133 = arith.constant 0 : index
    %c0_134 = arith.constant 0 : index
    %c0_135 = arith.constant 0 : index
    %930 = vector.load %arg3[%c2_132, %c0_133, %c0_134, %c0_135] : memref<3x4x8x128xf32, #tpu.memory_space<vmem>>, vector<1x1x8x128xf32>
    %931 = vector.shape_cast %930 : vector<1x1x8x128xf32> to vector<8x128xf32>
    %c2_136 = arith.constant 2 : index
    %c1_137 = arith.constant 1 : index
    %c0_138 = arith.constant 0 : index
    %c0_139 = arith.constant 0 : index
    %932 = vector.load %arg3[%c2_136, %c1_137, %c0_138, %c0_139] : memref<3x4x8x128xf32, #tpu.memory_space<vmem>>, vector<1x1x8x128xf32>
    %933 = vector.shape_cast %932 : vector<1x1x8x128xf32> to vector<8x128xf32>
    %c2_140 = arith.constant 2 : index
    %c2_141 = arith.constant 2 : index
    %c0_142 = arith.constant 0 : index
    %c0_143 = arith.constant 0 : index
    %934 = vector.load %arg3[%c2_140, %c2_141, %c0_142, %c0_143] : memref<3x4x8x128xf32, #tpu.memory_space<vmem>>, vector<1x1x8x128xf32>
    %935 = vector.shape_cast %934 : vector<1x1x8x128xf32> to vector<8x128xf32>
    %c2_144 = arith.constant 2 : index
    %c3_145 = arith.constant 3 : index
    %c0_146 = arith.constant 0 : index
    %c0_147 = arith.constant 0 : index
    %936 = vector.load %arg3[%c2_144, %c3_145, %c0_146, %c0_147] : memref<3x4x8x128xf32, #tpu.memory_space<vmem>>, vector<1x1x8x128xf32>
    %937 = vector.shape_cast %936 : vector<1x1x8x128xf32> to vector<8x128xf32>
    %cst_148 = arith.constant 1.000000e+00 : f32
    %938 = vector.broadcast %cst_148 : f32 to vector<1x128xf32>
    %939 = vector.extract_strided_slice %933 {offsets = [0, 0], sizes = [1, 128], strides = [1, 1]} : vector<8x128xf32> to vector<1x128xf32>
    %940 = math.absf %939 : vector<1x128xf32>
    %941 = vector.extract_strided_slice %931 {offsets = [0, 0], sizes = [1, 128], strides = [1, 1]} : vector<8x128xf32> to vector<1x128xf32>
    %942 = math.absf %941 : vector<1x128xf32>
    %943 = arith.cmpf ogt, %940, %942 : vector<1x128xf32>
    %944 = vector.shape_cast %943 : vector<1x128xi1> to vector<1x128xi1>
    %945 = vector.broadcast %944 : vector<1x128xi1> to vector<8x128xi1>
    %946 = arith.select %945, %933, %931 : vector<8x128xi1>, vector<8x128xf32>
    %947 = vector.shape_cast %943 : vector<1x128xi1> to vector<1x128xi1>
    %948 = vector.broadcast %947 : vector<1x128xi1> to vector<8x128xi1>
    %949 = arith.select %948, %931, %933 : vector<8x128xi1>, vector<8x128xf32>
    %cst_149 = arith.constant 0.000000e+00 : f32
    %950 = vector.broadcast %cst_149 : f32 to vector<1x128xf32>
    %951 = arith.subf %950, %938 : vector<1x128xf32>
    %952 = arith.select %943, %951, %938 : vector<1x128xi1>, vector<1x128xf32>
    %953 = vector.extract_strided_slice %935 {offsets = [0, 0], sizes = [1, 128], strides = [1, 1]} : vector<8x128xf32> to vector<1x128xf32>
    %954 = math.absf %953 : vector<1x128xf32>
    %955 = vector.extract_strided_slice %946 {offsets = [0, 0], sizes = [1, 128], strides = [1, 1]} : vector<8x128xf32> to vector<1x128xf32>
    %956 = math.absf %955 : vector<1x128xf32>
    %957 = arith.cmpf ogt, %954, %956 : vector<1x128xf32>
    %958 = vector.shape_cast %957 : vector<1x128xi1> to vector<1x128xi1>
    %959 = vector.broadcast %958 : vector<1x128xi1> to vector<8x128xi1>
    %960 = arith.select %959, %935, %946 : vector<8x128xi1>, vector<8x128xf32>
    %961 = vector.shape_cast %957 : vector<1x128xi1> to vector<1x128xi1>
    %962 = vector.broadcast %961 : vector<1x128xi1> to vector<8x128xi1>
    %963 = arith.select %962, %946, %935 : vector<8x128xi1>, vector<8x128xf32>
    %cst_150 = arith.constant 0.000000e+00 : f32
    %964 = vector.broadcast %cst_150 : f32 to vector<1x128xf32>
    %965 = arith.subf %964, %952 : vector<1x128xf32>
    %966 = arith.select %957, %965, %952 : vector<1x128xi1>, vector<1x128xf32>
    %967 = vector.extract_strided_slice %937 {offsets = [0, 0], sizes = [1, 128], strides = [1, 1]} : vector<8x128xf32> to vector<1x128xf32>
    %968 = math.absf %967 : vector<1x128xf32>
    %969 = vector.extract_strided_slice %960 {offsets = [0, 0], sizes = [1, 128], strides = [1, 1]} : vector<8x128xf32> to vector<1x128xf32>
    %970 = math.absf %969 : vector<1x128xf32>
    %971 = arith.cmpf ogt, %968, %970 : vector<1x128xf32>
    %972 = vector.shape_cast %971 : vector<1x128xi1> to vector<1x128xi1>
    %973 = vector.broadcast %972 : vector<1x128xi1> to vector<8x128xi1>
    %974 = arith.select %973, %937, %960 : vector<8x128xi1>, vector<8x128xf32>
    %975 = vector.shape_cast %971 : vector<1x128xi1> to vector<1x128xi1>
    %976 = vector.broadcast %975 : vector<1x128xi1> to vector<8x128xi1>
    %977 = arith.select %976, %960, %937 : vector<8x128xi1>, vector<8x128xf32>
    %cst_151 = arith.constant 0.000000e+00 : f32
    %978 = vector.broadcast %cst_151 : f32 to vector<1x128xf32>
    %979 = arith.subf %978, %966 : vector<1x128xf32>
    %980 = arith.select %971, %979, %966 : vector<1x128xi1>, vector<1x128xf32>
    %981 = vector.extract_strided_slice %974 {offsets = [0, 0], sizes = [1, 128], strides = [1, 1]} : vector<8x128xf32> to vector<1x128xf32>
    %982 = arith.mulf %980, %981 : vector<1x128xf32>
    %983 = tpu.reciprocal %981 {approx = true} : vector<1x128xf32> -> vector<1x128xf32>
    %984 = arith.mulf %981, %983 : vector<1x128xf32>
    %cst_152 = arith.constant 2.000000e+00 : f32
    %985 = vector.broadcast %cst_152 : f32 to vector<1x128xf32>
    %986 = arith.subf %985, %984 : vector<1x128xf32>
    %987 = arith.mulf %983, %986 : vector<1x128xf32>
    %988 = vector.broadcast %987 : vector<1x128xf32> to vector<8x128xf32>
    %989 = arith.mulf %974, %988 : vector<8x128xf32>
    %990 = vector.extract_strided_slice %949 {offsets = [0, 0], sizes = [1, 128], strides = [1, 1]} : vector<8x128xf32> to vector<1x128xf32>
    %991 = vector.broadcast %990 : vector<1x128xf32> to vector<8x128xf32>
    %992 = arith.mulf %991, %989 : vector<8x128xf32>
    %993 = arith.subf %949, %992 : vector<8x128xf32>
    %994 = vector.extract_strided_slice %963 {offsets = [0, 0], sizes = [1, 128], strides = [1, 1]} : vector<8x128xf32> to vector<1x128xf32>
    %995 = vector.broadcast %994 : vector<1x128xf32> to vector<8x128xf32>
    %996 = arith.mulf %995, %989 : vector<8x128xf32>
    %997 = arith.subf %963, %996 : vector<8x128xf32>
    %998 = vector.extract_strided_slice %977 {offsets = [0, 0], sizes = [1, 128], strides = [1, 1]} : vector<8x128xf32> to vector<1x128xf32>
    %999 = vector.broadcast %998 : vector<1x128xf32> to vector<8x128xf32>
    %1000 = arith.mulf %999, %989 : vector<8x128xf32>
    %1001 = arith.subf %977, %1000 : vector<8x128xf32>
    %1002 = vector.extract_strided_slice %997 {offsets = [1, 0], sizes = [1, 128], strides = [1, 1]} : vector<8x128xf32> to vector<1x128xf32>
    %1003 = math.absf %1002 : vector<1x128xf32>
    %1004 = vector.extract_strided_slice %993 {offsets = [1, 0], sizes = [1, 128], strides = [1, 1]} : vector<8x128xf32> to vector<1x128xf32>
    %1005 = math.absf %1004 : vector<1x128xf32>
    %1006 = arith.cmpf ogt, %1003, %1005 : vector<1x128xf32>
    %1007 = vector.shape_cast %1006 : vector<1x128xi1> to vector<1x128xi1>
    %1008 = vector.broadcast %1007 : vector<1x128xi1> to vector<8x128xi1>
    %1009 = arith.select %1008, %997, %993 : vector<8x128xi1>, vector<8x128xf32>
    %1010 = vector.shape_cast %1006 : vector<1x128xi1> to vector<1x128xi1>
    %1011 = vector.broadcast %1010 : vector<1x128xi1> to vector<8x128xi1>
    %1012 = arith.select %1011, %993, %997 : vector<8x128xi1>, vector<8x128xf32>
    %cst_153 = arith.constant 0.000000e+00 : f32
    %1013 = vector.broadcast %cst_153 : f32 to vector<1x128xf32>
    %1014 = arith.subf %1013, %982 : vector<1x128xf32>
    %1015 = arith.select %1006, %1014, %982 : vector<1x128xi1>, vector<1x128xf32>
    %1016 = vector.extract_strided_slice %1001 {offsets = [1, 0], sizes = [1, 128], strides = [1, 1]} : vector<8x128xf32> to vector<1x128xf32>
    %1017 = math.absf %1016 : vector<1x128xf32>
    %1018 = vector.extract_strided_slice %1009 {offsets = [1, 0], sizes = [1, 128], strides = [1, 1]} : vector<8x128xf32> to vector<1x128xf32>
    %1019 = math.absf %1018 : vector<1x128xf32>
    %1020 = arith.cmpf ogt, %1017, %1019 : vector<1x128xf32>
    %1021 = vector.shape_cast %1020 : vector<1x128xi1> to vector<1x128xi1>
    %1022 = vector.broadcast %1021 : vector<1x128xi1> to vector<8x128xi1>
    %1023 = arith.select %1022, %1001, %1009 : vector<8x128xi1>, vector<8x128xf32>
    %1024 = vector.shape_cast %1020 : vector<1x128xi1> to vector<1x128xi1>
    %1025 = vector.broadcast %1024 : vector<1x128xi1> to vector<8x128xi1>
    %1026 = arith.select %1025, %1009, %1001 : vector<8x128xi1>, vector<8x128xf32>
    %cst_154 = arith.constant 0.000000e+00 : f32
    %1027 = vector.broadcast %cst_154 : f32 to vector<1x128xf32>
    %1028 = arith.subf %1027, %1015 : vector<1x128xf32>
    %1029 = arith.select %1020, %1028, %1015 : vector<1x128xi1>, vector<1x128xf32>
    %1030 = vector.extract_strided_slice %1023 {offsets = [1, 0], sizes = [1, 128], strides = [1, 1]} : vector<8x128xf32> to vector<1x128xf32>
    %1031 = arith.mulf %1029, %1030 : vector<1x128xf32>
    %1032 = tpu.reciprocal %1030 {approx = true} : vector<1x128xf32> -> vector<1x128xf32>
    %1033 = arith.mulf %1030, %1032 : vector<1x128xf32>
    %cst_155 = arith.constant 2.000000e+00 : f32
    %1034 = vector.broadcast %cst_155 : f32 to vector<1x128xf32>
    %1035 = arith.subf %1034, %1033 : vector<1x128xf32>
    %1036 = arith.mulf %1032, %1035 : vector<1x128xf32>
    %1037 = vector.broadcast %1036 : vector<1x128xf32> to vector<8x128xf32>
    %1038 = arith.mulf %1023, %1037 : vector<8x128xf32>
    %1039 = vector.extract_strided_slice %989 {offsets = [1, 0], sizes = [1, 128], strides = [1, 1]} : vector<8x128xf32> to vector<1x128xf32>
    %1040 = vector.broadcast %1039 : vector<1x128xf32> to vector<8x128xf32>
    %1041 = arith.mulf %1040, %1038 : vector<8x128xf32>
    %1042 = arith.subf %989, %1041 : vector<8x128xf32>
    %1043 = vector.extract_strided_slice %1012 {offsets = [1, 0], sizes = [1, 128], strides = [1, 1]} : vector<8x128xf32> to vector<1x128xf32>
    %1044 = vector.broadcast %1043 : vector<1x128xf32> to vector<8x128xf32>
    %1045 = arith.mulf %1044, %1038 : vector<8x128xf32>
    %1046 = arith.subf %1012, %1045 : vector<8x128xf32>
    %1047 = vector.extract_strided_slice %1026 {offsets = [1, 0], sizes = [1, 128], strides = [1, 1]} : vector<8x128xf32> to vector<1x128xf32>
    %1048 = vector.broadcast %1047 : vector<1x128xf32> to vector<8x128xf32>
    %1049 = arith.mulf %1048, %1038 : vector<8x128xf32>
    %1050 = arith.subf %1026, %1049 : vector<8x128xf32>
    %1051 = vector.extract_strided_slice %1050 {offsets = [2, 0], sizes = [1, 128], strides = [1, 1]} : vector<8x128xf32> to vector<1x128xf32>
    %1052 = math.absf %1051 : vector<1x128xf32>
    %1053 = vector.extract_strided_slice %1046 {offsets = [2, 0], sizes = [1, 128], strides = [1, 1]} : vector<8x128xf32> to vector<1x128xf32>
    %1054 = math.absf %1053 : vector<1x128xf32>
    %1055 = arith.cmpf ogt, %1052, %1054 : vector<1x128xf32>
    %1056 = vector.shape_cast %1055 : vector<1x128xi1> to vector<1x128xi1>
    %1057 = vector.broadcast %1056 : vector<1x128xi1> to vector<8x128xi1>
    %1058 = arith.select %1057, %1050, %1046 : vector<8x128xi1>, vector<8x128xf32>
    %1059 = vector.shape_cast %1055 : vector<1x128xi1> to vector<1x128xi1>
    %1060 = vector.broadcast %1059 : vector<1x128xi1> to vector<8x128xi1>
    %1061 = arith.select %1060, %1046, %1050 : vector<8x128xi1>, vector<8x128xf32>
    %cst_156 = arith.constant 0.000000e+00 : f32
    %1062 = vector.broadcast %cst_156 : f32 to vector<1x128xf32>
    %1063 = arith.subf %1062, %1031 : vector<1x128xf32>
    %1064 = arith.select %1055, %1063, %1031 : vector<1x128xi1>, vector<1x128xf32>
    %1065 = vector.extract_strided_slice %1058 {offsets = [2, 0], sizes = [1, 128], strides = [1, 1]} : vector<8x128xf32> to vector<1x128xf32>
    %1066 = arith.mulf %1064, %1065 : vector<1x128xf32>
    %1067 = tpu.reciprocal %1065 {approx = true} : vector<1x128xf32> -> vector<1x128xf32>
    %1068 = arith.mulf %1065, %1067 : vector<1x128xf32>
    %cst_157 = arith.constant 2.000000e+00 : f32
    %1069 = vector.broadcast %cst_157 : f32 to vector<1x128xf32>
    %1070 = arith.subf %1069, %1068 : vector<1x128xf32>
    %1071 = arith.mulf %1067, %1070 : vector<1x128xf32>
    %1072 = vector.broadcast %1071 : vector<1x128xf32> to vector<8x128xf32>
    %1073 = arith.mulf %1058, %1072 : vector<8x128xf32>
    %1074 = vector.extract_strided_slice %1042 {offsets = [2, 0], sizes = [1, 128], strides = [1, 1]} : vector<8x128xf32> to vector<1x128xf32>
    %1075 = vector.broadcast %1074 : vector<1x128xf32> to vector<8x128xf32>
    %1076 = arith.mulf %1075, %1073 : vector<8x128xf32>
    %1077 = arith.subf %1042, %1076 : vector<8x128xf32>
    %1078 = vector.extract_strided_slice %1038 {offsets = [2, 0], sizes = [1, 128], strides = [1, 1]} : vector<8x128xf32> to vector<1x128xf32>
    %1079 = vector.broadcast %1078 : vector<1x128xf32> to vector<8x128xf32>
    %1080 = arith.mulf %1079, %1073 : vector<8x128xf32>
    %1081 = arith.subf %1038, %1080 : vector<8x128xf32>
    %1082 = vector.extract_strided_slice %1061 {offsets = [2, 0], sizes = [1, 128], strides = [1, 1]} : vector<8x128xf32> to vector<1x128xf32>
    %1083 = vector.broadcast %1082 : vector<1x128xf32> to vector<8x128xf32>
    %1084 = arith.mulf %1083, %1073 : vector<8x128xf32>
    %1085 = arith.subf %1061, %1084 : vector<8x128xf32>
    %1086 = vector.extract_strided_slice %1085 {offsets = [3, 0], sizes = [1, 128], strides = [1, 1]} : vector<8x128xf32> to vector<1x128xf32>
    %1087 = arith.mulf %1066, %1086 : vector<1x128xf32>
    %1088 = tpu.reciprocal %1086 {approx = true} : vector<1x128xf32> -> vector<1x128xf32>
    %1089 = arith.mulf %1086, %1088 : vector<1x128xf32>
    %cst_158 = arith.constant 2.000000e+00 : f32
    %1090 = vector.broadcast %cst_158 : f32 to vector<1x128xf32>
    %1091 = arith.subf %1090, %1089 : vector<1x128xf32>
    %1092 = arith.mulf %1088, %1091 : vector<1x128xf32>
    %1093 = vector.broadcast %1092 : vector<1x128xf32> to vector<8x128xf32>
    %1094 = arith.mulf %1085, %1093 : vector<8x128xf32>
    %1095 = vector.extract_strided_slice %1077 {offsets = [3, 0], sizes = [1, 128], strides = [1, 1]} : vector<8x128xf32> to vector<1x128xf32>
    %1096 = vector.broadcast %1095 : vector<1x128xf32> to vector<8x128xf32>
    %1097 = arith.mulf %1096, %1094 : vector<8x128xf32>
    %1098 = arith.subf %1077, %1097 : vector<8x128xf32>
    %1099 = vector.extract_strided_slice %1081 {offsets = [3, 0], sizes = [1, 128], strides = [1, 1]} : vector<8x128xf32> to vector<1x128xf32>
    %1100 = vector.broadcast %1099 : vector<1x128xf32> to vector<8x128xf32>
    %1101 = arith.mulf %1100, %1094 : vector<8x128xf32>
    %1102 = arith.subf %1081, %1101 : vector<8x128xf32>
    %1103 = vector.extract_strided_slice %1073 {offsets = [3, 0], sizes = [1, 128], strides = [1, 1]} : vector<8x128xf32> to vector<1x128xf32>
    %1104 = vector.broadcast %1103 : vector<1x128xf32> to vector<8x128xf32>
    %1105 = arith.mulf %1104, %1094 : vector<8x128xf32>
    %1106 = arith.subf %1073, %1105 : vector<8x128xf32>
    %1107 = vector.extract_strided_slice %1098 {offsets = [4, 0], sizes = [1, 128], strides = [1, 1]} : vector<8x128xf32> to vector<1x128xf32>
    %1108 = vector.extract_strided_slice %1102 {offsets = [5, 0], sizes = [1, 128], strides = [1, 1]} : vector<8x128xf32> to vector<1x128xf32>
    %1109 = arith.addf %1107, %1108 : vector<1x128xf32>
    %1110 = vector.extract_strided_slice %1106 {offsets = [6, 0], sizes = [1, 128], strides = [1, 1]} : vector<8x128xf32> to vector<1x128xf32>
    %1111 = arith.addf %1109, %1110 : vector<1x128xf32>
    %1112 = vector.extract_strided_slice %1094 {offsets = [7, 0], sizes = [1, 128], strides = [1, 1]} : vector<8x128xf32> to vector<1x128xf32>
    %1113 = arith.addf %1111, %1112 : vector<1x128xf32>
    %1114 = arith.mulf %903, %1087 : vector<1x128xf32>
    %1115 = arith.addf %929, %1113 : vector<1x128xf32>
    %cst_159 = arith.constant -5.000000e-01 : f32
    %1116 = vector.broadcast %cst_159 : f32 to vector<1x128xf32>
    %1117 = arith.mulf %1116, %1115 : vector<1x128xf32>
    %1118 = arith.mulf %1117, %1114 : vector<1x128xf32>
    %1119 = tpu.concatenate %372, %745, %1118 in 0 : vector<1x128xf32>, vector<1x128xf32>, vector<1x128xf32> -> vector<3x128xf32>
    %c0_160 = arith.constant 0 : index
    %c0_161 = arith.constant 0 : index
    %1120 = vector.load %arg4[%c0_160, %c0_161] : memref<3x128xf32, #tpu.memory_space<vmem>>, vector<3x128xf32>
    tpu.vector_store %arg4[%c0_160, %c0_161], %1119 {strides = array<i32>} : memref<3x128xf32, #tpu.memory_space<vmem>>, vector<3x128xf32>,
    %1121 = tpu.concatenate %368, %741, %1114 in 0 : vector<1x128xf32>, vector<1x128xf32>, vector<1x128xf32> -> vector<3x128xf32>
    %c0_162 = arith.constant 0 : index
    %c0_163 = arith.constant 0 : index
    %1122 = vector.load %arg5[%c0_162, %c0_163] : memref<3x128xf32, #tpu.memory_space<vmem>>, vector<3x128xf32>
    tpu.vector_store %arg5[%c0_162, %c0_163], %1121 {strides = array<i32>} : memref<3x128xf32, #tpu.memory_space<vmem>>, vector<3x128xf32>,
    return
  }
  func.func @transform_0(%arg0: i32, %arg1: i32) -> (i32, i32, i32, i32) {
    %c0_i32 = arith.constant 0 : i32
    %c0_i32_0 = arith.constant 0 : i32
    %c0_i32_1 = arith.constant 0 : i32
    return %arg1, %c0_i32, %c0_i32_0, %arg0 : i32, i32, i32, i32
  }
  func.func @transform_1(%arg0: i32, %arg1: i32) -> (i32, i32, i32, i32) {
    %c0_i32 = arith.constant 0 : i32
    %c0_i32_0 = arith.constant 0 : i32
    %c0_i32_1 = arith.constant 0 : i32
    return %arg1, %c0_i32, %c0_i32_0, %arg0 : i32, i32, i32, i32
  }
  func.func @transform_2(%arg0: i32, %arg1: i32) -> (i32, i32) {
    %c0_i32 = arith.constant 0 : i32
    return %arg1, %arg0 : i32, i32
  }
  func.func @transform_3(%arg0: i32, %arg1: i32) -> (i32, i32) {
    %c0_i32 = arith.constant 0 : i32
    return %arg1, %arg0 : i32, i32
  }
}

</mosaic_0001>

<llo_original>
// kernel: tpu_custom_call.1
$region0: #{tpu_custom_call.1}
  #allocation0 [shape = 'u32[]', space=smem, size = 0x4, offset = 0x4, fixed_abs, tag = 'smem constant byte address 0x4 - core index']
  #allocation1 [shape = 'u32[144,128]{1,0:T(1,128)}', space=vmem, size = 0x12000, scoped, tag = 'internal scratch']
  %s0 = inlined_call_operand.hbm [shape: f32[3,4,8,128], index: 0, kind: input, shape index: {}]
  %s1 = inlined_call_operand.hbm [shape: f32[3,4,8,128], index: 1, kind: input, shape index: {}]
  %s2 = inlined_call_operand.hbm [shape: f32[3,128], index: 2, kind: output, shape index: {0}]
  %s3 = inlined_call_operand.hbm [shape: f32[3,128], index: 3, kind: output, shape index: {1}]
  %4 = xla_tuple %s2, %s3
  %s5 = sld [smem:[#allocation0]]
  $region34: #{tpu_custom_call.1} parent=0
    _
  %s7 = ssub.s32 1, %s5
  %s8 = scalar_select 0, %s7, %s5
  $region1: #{tpu_custom_call.1} parent=0
    #allocation2 [shape = 'u8[49152]{0}', space=vmem, size = 0xc000, scoped, tag = 'input window, operand 0, single buffered']
    #allocation3 [shape = 's32[1]{0}', space=sflag, size = 0x4, scoped, tag = 'scoped memory for tpu_custom_call.1']
    #allocation4 [shape = 's32[1]{0}', space=sflag, size = 0x4, scoped, tag = 'scoped memory for tpu_custom_call.1']
    #allocation5 [shape = 'u8[49152]{0}', space=vmem, size = 0xc000, scoped, tag = 'input window, operand 1, single buffered']
    #allocation6 [shape = 's32[1]{0}', space=sflag, size = 0x4, scoped, tag = 'scoped memory for tpu_custom_call.1']
    #allocation7 [shape = 'u8[2048]{0}', space=vmem, size = 0x800, scoped, tag = 'output window, operand 0, single buffered']
    #allocation8 [shape = 'u8[2048]{0}', space=vmem, size = 0x800, scoped, tag = 'output window, operand 1, single buffered']
    #allocation9 [shape = 's32[1]{0}', space=sflag, size = 0x4, scoped, tag = 'scoped memory for tpu_custom_call.1']
    %9 = vsyncpa [#allocation3], 0
    %10 = vsyncpa [#allocation6], 0
    %11 = vsyncpa [#allocation4], 0
    %12 = vsyncpa [#allocation9], 0
    // Predicated region
    $region2: #{tpu_custom_call.1} parent=1 // pred_check
      _
    $region3: #{tpu_custom_call.1} parent=1 // pred_check_branch
      %14 = sbr.rel (0) target = $region5
    $region4: #{tpu_custom_call.1} parent=1 // pred_region
      %s16 = ssub.s32 1536, 1536
      %17 = vsyncadd [#allocation3], %s16
      %s18 = sshll.u32 [#allocation2], 4
      %s19 = int_to_ptr.vmem [resolvable:$true] %s18
      %24 = dma.hbm_to_vmem [thread:$0]  %s0, 1536, %s19, [#allocation3], 128, 128, 8
    $region5: #{tpu_custom_call.1} parent=1 // pred_fallthru
      _
    // Predicated region
    $region6: #{tpu_custom_call.1} parent=1 // pred_check
      _
    $region7: #{tpu_custom_call.1} parent=1 // pred_check_branch
      %26 = sbr.rel (0) target = $region9
    $region8: #{tpu_custom_call.1} parent=1 // pred_region
      %s28 = ssub.s32 1536, 1536
      %29 = vsyncadd [#allocation6], %s28
      %s30 = sshll.u32 [#allocation5], 4
      %s31 = int_to_ptr.vmem [resolvable:$true] %s30
      %36 = dma.hbm_to_vmem [thread:$0]  %s1, 1536, %s31, [#allocation6], 128, 128, 8
    $region9: #{tpu_custom_call.1} parent=1 // pred_fallthru
      _
    // Predicated region
    $region10: #{tpu_custom_call.1} parent=1 // pred_check
      _
    $region11: #{tpu_custom_call.1} parent=1 // pred_check_branch
      %38 = sbr.rel (0) target = $region13
    $region12: #{tpu_custom_call.1} parent=1 // pred_region
      %39 = dma.done [#allocation3], 1536
    $region13: #{tpu_custom_call.1} parent=1 // pred_fallthru
      _
    // Predicated region
    $region14: #{tpu_custom_call.1} parent=1 // pred_check
      _
    $region15: #{tpu_custom_call.1} parent=1 // pred_check_branch
      %41 = sbr.rel (0) target = $region17
    $region16: #{tpu_custom_call.1} parent=1 // pred_region
      %42 = dma.done [#allocation6], 1536
    $region17: #{tpu_custom_call.1} parent=1 // pred_fallthru
      _
    %v43 = vld [vmem:[#allocation2] sm:$0xff]
    %s44 = scalar_lea.vmem [#allocation2], 8
    %v45 = vld [vmem:[%s44] sm:$0xff]
    %s46 = scalar_lea.vmem [#allocation2], 16
    %v47 = vld [vmem:[%s46] sm:$0xff]
    %s48 = scalar_lea.vmem [#allocation2], 24
    %v49 = vld [vmem:[%s48] sm:$0xff]
    %v50 = vand.u32 2147483647, %v45
    %v51 = vand.u32 2147483647, %v43
    %vm52 = vcmp.gt.f32.partialorder %v50, %v51
    %v53 = vsel %vm52, 1, 0
    %v54 = vlaneseq
    %v55 = vshrl.u32 %v54, 7
    %v56 = vsub.s32 0, %v55
    %v57 = vrot.slane %v53, %v56
    %vm58 = vcmp.eq.s32.totalorder %v57, 1
    %v59 = vsel %vm58, %v45, %v43
    %v60 = vsel %vm58, %v43, %v45
    %v61 = vsel %vm52, -1.0, 1.0
    %v62 = vand.u32 2147483647, %v47
    %v63 = vand.u32 2147483647, %v59
    %vm64 = vcmp.gt.f32.partialorder %v62, %v63
    %v65 = vsel %vm64, 1, 0
    %v66 = vlaneseq
    %v67 = vshrl.u32 %v66, 7
    %v68 = vsub.s32 0, %v67
    %v69 = vrot.slane %v65, %v68
    %vm70 = vcmp.eq.s32.totalorder %v69, 1
    %v71 = vsel %vm70, %v47, %v59
    %v72 = vsel %vm70, %v59, %v47
    %v73 = vsub.f32 0.0, %v61
    %v74 = vsel %vm64, %v73, %v61
    %v75 = vand.u32 2147483647, %v49
    %v76 = vand.u32 2147483647, %v71
    %vm77 = vcmp.gt.f32.partialorder %v75, %v76
    %v78 = vsel %vm77, 1, 0
    %v79 = vlaneseq
    %v80 = vshrl.u32 %v79, 7
    %v81 = vsub.s32 0, %v80
    %v82 = vrot.slane %v78, %v81
    %vm83 = vcmp.eq.s32.totalorder %v82, 1
    %v84 = vsel %vm83, %v49, %v71
    %v85 = vsel %vm83, %v71, %v49
    %v86 = vsub.f32 0.0, %v74
    %v87 = vsel %vm77, %v86, %v74
    %v88 = vmul.f32 %v87, %v84
    %v89 = vrcp.pop %v84
    %v90 = vmul.f32 %v84, %v89
    %v91 = vsub.f32 2.0, %v90
    %v92 = vmul.f32 %v89, %v91
    %v93 = vlaneseq
    %v94 = vshrl.u32 %v93, 7
    %v95 = vsub.s32 0, %v94
    %v96 = vrot.slane %v92, %v95
    %v97 = vmul.f32 %v84, %v96
    %v98 = vlaneseq
    %v99 = vshrl.u32 %v98, 7
    %v100 = vsub.s32 0, %v99
    %v101 = vrot.slane %v60, %v100
    %v102 = vmul.f32 %v101, %v97
    %v103 = vsub.f32 %v60, %v102
    %v104 = vlaneseq
    %v105 = vshrl.u32 %v104, 7
    %v106 = vsub.s32 0, %v105
    %v107 = vrot.slane %v72, %v106
    %v108 = vmul.f32 %v107, %v97
    %v109 = vsub.f32 %v72, %v108
    %v110 = vlaneseq
    %v111 = vshrl.u32 %v110, 7
    %v112 = vsub.s32 0, %v111
    %v113 = vrot.slane %v85, %v112
    %v114 = vmul.f32 %v113, %v97
    %v115 = vsub.f32 %v85, %v114
    %v116 = vand.u32 2147483647, %v109
    %v117 = vand.u32 2147483647, %v103
    %vm118 = vcmp.gt.f32.partialorder %v116, %v117
    %v119 = vsel %vm118, 1, 0
    %v120 = vlaneseq
    %v121 = vshrl.u32 %v120, 7
    %v122 = vsub.s32 1, %v121
    %v123 = vrot.slane %v119, %v122
    %vm124 = vcmp.eq.s32.totalorder %v123, 1
    %v125 = vsel %vm124, %v109, %v103
    %v126 = vsel %vm124, %v103, %v109
    %v127 = vsub.f32 0.0, %v88
    %v129 = vrot.slane %v127, 7
    %v132 = vrot.slane %v88, 7
    %v134 = vsel %vm118, %v129, %v132
    %v135 = vand.u32 2147483647, %v115
    %v136 = vand.u32 2147483647, %v125
    %vm137 = vcmp.gt.f32.partialorder %v135, %v136
    %v138 = vsel %vm137, 1, 0
    %v139 = vlaneseq
    %v140 = vshrl.u32 %v139, 7
    %v141 = vsub.s32 1, %v140
    %v142 = vrot.slane %v138, %v141
    %vm143 = vcmp.eq.s32.totalorder %v142, 1
    %v144 = vsel %vm143, %v115, %v125
    %v145 = vsel %vm143, %v125, %v115
    %v146 = vsub.f32 0.0, %v134
    %v147 = vsel %vm137, %v146, %v134
    %v148 = vmul.f32 %v147, %v144
    %v149 = vrcp.pop %v144
    %v150 = vmul.f32 %v144, %v149
    %v151 = vsub.f32 2.0, %v150
    %v152 = vmul.f32 %v149, %v151
    %v153 = vlaneseq
    %v154 = vshrl.u32 %v153, 7
    %v155 = vsub.s32 1, %v154
    %v156 = vrot.slane %v152, %v155
    %v157 = vmul.f32 %v144, %v156
    %v158 = vlaneseq
    %v159 = vshrl.u32 %v158, 7
    %v160 = vsub.s32 1, %v159
    %v161 = vrot.slane %v97, %v160
    %v162 = vmul.f32 %v161, %v157
    %v163 = vsub.f32 %v97, %v162
    %v164 = vlaneseq
    %v165 = vshrl.u32 %v164, 7
    %v166 = vsub.s32 1, %v165
    %v167 = vrot.slane %v126, %v166
    %v168 = vmul.f32 %v167, %v157
    %v169 = vsub.f32 %v126, %v168
    %v170 = vlaneseq
    %v171 = vshrl.u32 %v170, 7
    %v172 = vsub.s32 1, %v171
    %v173 = vrot.slane %v145, %v172
    %v174 = vmul.f32 %v173, %v157
    %v175 = vsub.f32 %v145, %v174
    %v176 = vand.u32 2147483647, %v175
    %v177 = vand.u32 2147483647, %v169
    %vm178 = vcmp.gt.f32.partialorder %v176, %v177
    %v179 = vsel %vm178, 1, 0
    %v180 = vlaneseq
    %v181 = vshrl.u32 %v180, 7
    %v182 = vsub.s32 2, %v181
    %v183 = vrot.slane %v179, %v182
    %vm184 = vcmp.eq.s32.totalorder %v183, 1
    %v185 = vsel %vm184, %v175, %v169
    %v186 = vsel %vm184, %v169, %v175
    %v187 = vsub.f32 0.0, %v148
    %v189 = vrot.slane %v187, 7
    %v192 = vrot.slane %v148, 7
    %v194 = vsel %vm178, %v189, %v192
    %v195 = vmul.f32 %v194, %v185
    %v196 = vrcp.pop %v185
    %v197 = vmul.f32 %v185, %v196
    %v198 = vsub.f32 2.0, %v197
    %v199 = vmul.f32 %v196, %v198
    %v200 = vlaneseq
    %v201 = vshrl.u32 %v200, 7
    %v202 = vsub.s32 2, %v201
    %v203 = vrot.slane %v199, %v202
    %v204 = vmul.f32 %v185, %v203
    %v205 = vlaneseq
    %v206 = vshrl.u32 %v205, 7
    %v207 = vsub.s32 2, %v206
    %v208 = vrot.slane %v163, %v207
    %v209 = vmul.f32 %v208, %v204
    %v210 = vsub.f32 %v163, %v209
    %v211 = vlaneseq
    %v212 = vshrl.u32 %v211, 7
    %v213 = vsub.s32 2, %v212
    %v214 = vrot.slane %v157, %v213
    %v215 = vmul.f32 %v214, %v204
    %v216 = vsub.f32 %v157, %v215
    %v217 = vlaneseq
    %v218 = vshrl.u32 %v217, 7
    %v219 = vsub.s32 2, %v218
    %v220 = vrot.slane %v186, %v219
    %v221 = vmul.f32 %v220, %v204
    %v222 = vsub.f32 %v186, %v221
    %v224 = vrot.slane %v222, 1
    %v226 = vmul.f32 %v195, %v224
    %v227 = vrcp.pop %v222
    %v228 = vmul.f32 %v222, %v227
    %v229 = vsub.f32 2.0, %v228
    %v230 = vmul.f32 %v227, %v229
    %v231 = vlaneseq
    %v232 = vshrl.u32 %v231, 7
    %v233 = vsub.s32 3, %v232
    %v234 = vrot.slane %v230, %v233
    %v235 = vmul.f32 %v222, %v234
    %v236 = vlaneseq
    %v237 = vshrl.u32 %v236, 7
    %v238 = vsub.s32 3, %v237
    %v239 = vrot.slane %v210, %v238
    %v240 = vmul.f32 %v239, %v235
    %v241 = vsub.f32 %v210, %v240
    %v242 = vlaneseq
    %v243 = vshrl.u32 %v242, 7
    %v244 = vsub.s32 3, %v243
    %v245 = vrot.slane %v216, %v244
    %v246 = vmul.f32 %v245, %v235
    %v247 = vsub.f32 %v216, %v246
    %v248 = vlaneseq
    %v249 = vshrl.u32 %v248, 7
    %v250 = vsub.s32 3, %v249
    %v251 = vrot.slane %v204, %v250
    %v252 = vmul.f32 %v251, %v235
    %v253 = vsub.f32 %v204, %v252
    %v255 = vrot.slane %v247, 1
    %v257 = vadd.f32 %v241, %v255
    %v259 = vrot.slane %v253, 2
    %v261 = vadd.f32 %v257, %v259
    %v263 = vrot.slane %v235, 3
    %v265 = vadd.f32 %v261, %v263
    %v266 = vld [vmem:[#allocation5] sm:$0xff]
    %s267 = scalar_lea.vmem [#allocation5], 8
    %v268 = vld [vmem:[%s267] sm:$0xff]
    %s269 = scalar_lea.vmem [#allocation5], 16
    %v270 = vld [vmem:[%s269] sm:$0xff]
    %s271 = scalar_lea.vmem [#allocation5], 24
    %v272 = vld [vmem:[%s271] sm:$0xff]
    %v273 = vand.u32 2147483647, %v268
    %v274 = vand.u32 2147483647, %v266
    %vm275 = vcmp.gt.f32.partialorder %v273, %v274
    %v276 = vsel %vm275, 1, 0
    %v277 = vlaneseq
    %v278 = vshrl.u32 %v277, 7
    %v279 = vsub.s32 0, %v278
    %v280 = vrot.slane %v276, %v279
    %vm281 = vcmp.eq.s32.totalorder %v280, 1
    %v282 = vsel %vm281, %v268, %v266
    %v283 = vsel %vm281, %v266, %v268
    %v284 = vsel %vm275, -1.0, 1.0
    %v285 = vand.u32 2147483647, %v270
    %v286 = vand.u32 2147483647, %v282
    %vm287 = vcmp.gt.f32.partialorder %v285, %v286
    %v288 = vsel %vm287, 1, 0
    %v289 = vlaneseq
    %v290 = vshrl.u32 %v289, 7
    %v291 = vsub.s32 0, %v290
    %v292 = vrot.slane %v288, %v291
    %vm293 = vcmp.eq.s32.totalorder %v292, 1
    %v294 = vsel %vm293, %v270, %v282
    %v295 = vsel %vm293, %v282, %v270
    %v296 = vsub.f32 0.0, %v284
    %v297 = vsel %vm287, %v296, %v284
    %v298 = vand.u32 2147483647, %v272
    %v299 = vand.u32 2147483647, %v294
    %vm300 = vcmp.gt.f32.partialorder %v298, %v299
    %v301 = vsel %vm300, 1, 0
    %v302 = vlaneseq
    %v303 = vshrl.u32 %v302, 7
    %v304 = vsub.s32 0, %v303
    %v305 = vrot.slane %v301, %v304
    %vm306 = vcmp.eq.s32.totalorder %v305, 1
    %v307 = vsel %vm306, %v272, %v294
    %v308 = vsel %vm306, %v294, %v272
    %v309 = vsub.f32 0.0, %v297
    %v310 = vsel %vm300, %v309, %v297
    %v311 = vmul.f32 %v310, %v307
    %v312 = vrcp.pop %v307
    %v313 = vmul.f32 %v307, %v312
    %v314 = vsub.f32 2.0, %v313
    %v315 = vmul.f32 %v312, %v314
    %v316 = vlaneseq
    %v317 = vshrl.u32 %v316, 7
    %v318 = vsub.s32 0, %v317
    %v319 = vrot.slane %v315, %v318
    %v320 = vmul.f32 %v307, %v319
    %v321 = vlaneseq
    %v322 = vshrl.u32 %v321, 7
    %v323 = vsub.s32 0, %v322
    %v324 = vrot.slane %v283, %v323
    %v325 = vmul.f32 %v324, %v320
    %v326 = vsub.f32 %v283, %v325
    %v327 = vlaneseq
    %v328 = vshrl.u32 %v327, 7
    %v329 = vsub.s32 0, %v328
    %v330 = vrot.slane %v295, %v329
    %v331 = vmul.f32 %v330, %v320
    %v332 = vsub.f32 %v295, %v331
    %v333 = vlaneseq
    %v334 = vshrl.u32 %v333, 7
    %v335 = vsub.s32 0, %v334
    %v336 = vrot.slane %v308, %v335
    %v337 = vmul.f32 %v336, %v320
    %v338 = vsub.f32 %v308, %v337
    %v339 = vand.u32 2147483647, %v332
    %v340 = vand.u32 2147483647, %v326
    %vm341 = vcmp.gt.f32.partialorder %v339, %v340
    %v342 = vsel %vm341, 1, 0
    %v343 = vlaneseq
    %v344 = vshrl.u32 %v343, 7
    %v345 = vsub.s32 1, %v344
    %v346 = vrot.slane %v342, %v345
    %vm347 = vcmp.eq.s32.totalorder %v346, 1
    %v348 = vsel %vm347, %v332, %v326
    %v349 = vsel %vm347, %v326, %v332
    %v350 = vsub.f32 0.0, %v311
    %v352 = vrot.slane %v350, 7
    %v355 = vrot.slane %v311, 7
    %v357 = vsel %vm341, %v352, %v355
    %v358 = vand.u32 2147483647, %v338
    %v359 = vand.u32 2147483647, %v348
    %vm360 = vcmp.gt.f32.partialorder %v358, %v359
    %v361 = vsel %vm360, 1, 0
    %v362 = vlaneseq
    %v363 = vshrl.u32 %v362, 7
    %v364 = vsub.s32 1, %v363
    %v365 = vrot.slane %v361, %v364
    %vm366 = vcmp.eq.s32.totalorder %v365, 1
    %v367 = vsel %vm366, %v338, %v348
    %v368 = vsel %vm366, %v348, %v338
    %v369 = vsub.f32 0.0, %v357
    %v370 = vsel %vm360, %v369, %v357
    %v371 = vmul.f32 %v370, %v367
    %v372 = vrcp.pop %v367
    %v373 = vmul.f32 %v367, %v372
    %v374 = vsub.f32 2.0, %v373
    %v375 = vmul.f32 %v372, %v374
    %v376 = vlaneseq
    %v377 = vshrl.u32 %v376, 7
    %v378 = vsub.s32 1, %v377
    %v379 = vrot.slane %v375, %v378
    %v380 = vmul.f32 %v367, %v379
    %v381 = vlaneseq
    %v382 = vshrl.u32 %v381, 7
    %v383 = vsub.s32 1, %v382
    %v384 = vrot.slane %v320, %v383
    %v385 = vmul.f32 %v384, %v380
    %v386 = vsub.f32 %v320, %v385
    %v387 = vlaneseq
    %v388 = vshrl.u32 %v387, 7
    %v389 = vsub.s32 1, %v388
    %v390 = vrot.slane %v349, %v389
    %v391 = vmul.f32 %v390, %v380
    %v392 = vsub.f32 %v349, %v391
    %v393 = vlaneseq
    %v394 = vshrl.u32 %v393, 7
    %v395 = vsub.s32 1, %v394
    %v396 = vrot.slane %v368, %v395
    %v397 = vmul.f32 %v396, %v380
    %v398 = vsub.f32 %v368, %v397
    %v399 = vand.u32 2147483647, %v398
    %v400 = vand.u32 2147483647, %v392
    %vm401 = vcmp.gt.f32.partialorder %v399, %v400
    %v402 = vsel %vm401, 1, 0
    %v403 = vlaneseq
    %v404 = vshrl.u32 %v403, 7
    %v405 = vsub.s32 2, %v404
    %v406 = vrot.slane %v402, %v405
    %vm407 = vcmp.eq.s32.totalorder %v406, 1
    %v408 = vsel %vm407, %v398, %v392
    %v409 = vsel %vm407, %v392, %v398
    %v410 = vsub.f32 0.0, %v371
    %v412 = vrot.slane %v410, 7
    %v415 = vrot.slane %v371, 7
    %v417 = vsel %vm401, %v412, %v415
    %v418 = vmul.f32 %v417, %v408
    %v419 = vrcp.pop %v408
    %v420 = vmul.f32 %v408, %v419
    %v421 = vsub.f32 2.0, %v420
    %v422 = vmul.f32 %v419, %v421
    %v423 = vlaneseq
    %v424 = vshrl.u32 %v423, 7
    %v425 = vsub.s32 2, %v424
    %v426 = vrot.slane %v422, %v425
    %v427 = vmul.f32 %v408, %v426
    %v428 = vlaneseq
    %v429 = vshrl.u32 %v428, 7
    %v430 = vsub.s32 2, %v429
    %v431 = vrot.slane %v386, %v430
    %v432 = vmul.f32 %v431, %v427
    %v433 = vsub.f32 %v386, %v432
    %v434 = vlaneseq
    %v435 = vshrl.u32 %v434, 7
    %v436 = vsub.s32 2, %v435
    %v437 = vrot.slane %v380, %v436
    %v438 = vmul.f32 %v437, %v427
    %v439 = vsub.f32 %v380, %v438
    %v440 = vlaneseq
    %v441 = vshrl.u32 %v440, 7
    %v442 = vsub.s32 2, %v441
    %v443 = vrot.slane %v409, %v442
    %v444 = vmul.f32 %v443, %v427
    %v445 = vsub.f32 %v409, %v444
    %v447 = vrot.slane %v445, 1
    %v449 = vmul.f32 %v418, %v447
    %v450 = vrcp.pop %v445
    %v451 = vmul.f32 %v445, %v450
    %v452 = vsub.f32 2.0, %v451
    %v453 = vmul.f32 %v450, %v452
    %v454 = vlaneseq
    %v455 = vshrl.u32 %v454, 7
    %v456 = vsub.s32 3, %v455
    %v457 = vrot.slane %v453, %v456
    %v458 = vmul.f32 %v445, %v457
    %v459 = vlaneseq
    %v460 = vshrl.u32 %v459, 7
    %v461 = vsub.s32 3, %v460
    %v462 = vrot.slane %v433, %v461
    %v463 = vmul.f32 %v462, %v458
    %v464 = vsub.f32 %v433, %v463
    %v465 = vlaneseq
    %v466 = vshrl.u32 %v465, 7
    %v467 = vsub.s32 3, %v466
    %v468 = vrot.slane %v439, %v467
    %v469 = vmul.f32 %v468, %v458
    %v470 = vsub.f32 %v439, %v469
    %v471 = vlaneseq
    %v472 = vshrl.u32 %v471, 7
    %v473 = vsub.s32 3, %v472
    %v474 = vrot.slane %v427, %v473
    %v475 = vmul.f32 %v474, %v458
    %v476 = vsub.f32 %v427, %v475
    %v478 = vrot.slane %v470, 1
    %v480 = vadd.f32 %v464, %v478
    %v482 = vrot.slane %v476, 2
    %v484 = vadd.f32 %v480, %v482
    %v486 = vrot.slane %v458, 3
    %v488 = vadd.f32 %v484, %v486
    %v489 = vmul.f32 %v226, %v449
    %v490 = vadd.f32 %v265, %v488
    %v491 = vmul.f32 %v490, -0.5
    %v493 = vrot.slane %v489, 6
    %v495 = vmul.f32 %v491, %v493
    %s496 = scalar_lea.vmem [#allocation2], 32
    %v497 = vld [vmem:[%s496] sm:$0xff]
    %s498 = scalar_lea.vmem [#allocation2], 40
    %v499 = vld [vmem:[%s498] sm:$0xff]
    %s500 = scalar_lea.vmem [#allocation2], 48
    %v501 = vld [vmem:[%s500] sm:$0xff]
    %s502 = scalar_lea.vmem [#allocation2], 56
    %v503 = vld [vmem:[%s502] sm:$0xff]
    %v504 = vand.u32 2147483647, %v499
    %v505 = vand.u32 2147483647, %v497
    %vm506 = vcmp.gt.f32.partialorder %v504, %v505
    %v507 = vsel %vm506, 1, 0
    %v508 = vlaneseq
    %v509 = vshrl.u32 %v508, 7
    %v510 = vsub.s32 0, %v509
    %v511 = vrot.slane %v507, %v510
    %vm512 = vcmp.eq.s32.totalorder %v511, 1
    %v513 = vsel %vm512, %v499, %v497
    %v514 = vsel %vm512, %v497, %v499
    %v515 = vsel %vm506, -1.0, 1.0
    %v516 = vand.u32 2147483647, %v501
    %v517 = vand.u32 2147483647, %v513
    %vm518 = vcmp.gt.f32.partialorder %v516, %v517
    %v519 = vsel %vm518, 1, 0
    %v520 = vlaneseq
    %v521 = vshrl.u32 %v520, 7
    %v522 = vsub.s32 0, %v521
    %v523 = vrot.slane %v519, %v522
    %vm524 = vcmp.eq.s32.totalorder %v523, 1
    %v525 = vsel %vm524, %v501, %v513
    %v526 = vsel %vm524, %v513, %v501
    %v527 = vsub.f32 0.0, %v515
    %v528 = vsel %vm518, %v527, %v515
    %v529 = vand.u32 2147483647, %v503
    %v530 = vand.u32 2147483647, %v525
    %vm531 = vcmp.gt.f32.partialorder %v529, %v530
    %v532 = vsel %vm531, 1, 0
    %v533 = vlaneseq
    %v534 = vshrl.u32 %v533, 7
    %v535 = vsub.s32 0, %v534
    %v536 = vrot.slane %v532, %v535
    %vm537 = vcmp.eq.s32.totalorder %v536, 1
    %v538 = vsel %vm537, %v503, %v525
    %v539 = vsel %vm537, %v525, %v503
    %v540 = vsub.f32 0.0, %v528
    %v541 = vsel %vm531, %v540, %v528
    %v542 = vmul.f32 %v541, %v538
    %v543 = vrcp.pop %v538
    %v544 = vmul.f32 %v538, %v543
    %v545 = vsub.f32 2.0, %v544
    %v546 = vmul.f32 %v543, %v545
    %v547 = vlaneseq
    %v548 = vshrl.u32 %v547, 7
    %v549 = vsub.s32 0, %v548
    %v550 = vrot.slane %v546, %v549
    %v551 = vmul.f32 %v538, %v550
    %v552 = vlaneseq
    %v553 = vshrl.u32 %v552, 7
    %v554 = vsub.s32 0, %v553
    %v555 = vrot.slane %v514, %v554
    %v556 = vmul.f32 %v555, %v551
    %v557 = vsub.f32 %v514, %v556
    %v558 = vlaneseq
    %v559 = vshrl.u32 %v558, 7
    %v560 = vsub.s32 0, %v559
    %v561 = vrot.slane %v526, %v560
    %v562 = vmul.f32 %v561, %v551
    %v563 = vsub.f32 %v526, %v562
    %v564 = vlaneseq
    %v565 = vshrl.u32 %v564, 7
    %v566 = vsub.s32 0, %v565
    %v567 = vrot.slane %v539, %v566
    %v568 = vmul.f32 %v567, %v551
    %v569 = vsub.f32 %v539, %v568
    %v570 = vand.u32 2147483647, %v563
    %v571 = vand.u32 2147483647, %v557
    %vm572 = vcmp.gt.f32.partialorder %v570, %v571
    %v573 = vsel %vm572, 1, 0
    %v574 = vlaneseq
    %v575 = vshrl.u32 %v574, 7
    %v576 = vsub.s32 1, %v575
    %v577 = vrot.slane %v573, %v576
    %vm578 = vcmp.eq.s32.totalorder %v577, 1
    %v579 = vsel %vm578, %v563, %v557
    %v580 = vsel %vm578, %v557, %v563
    %v581 = vsub.f32 0.0, %v542
    %v583 = vrot.slane %v581, 7
    %v586 = vrot.slane %v542, 7
    %v588 = vsel %vm572, %v583, %v586
    %v589 = vand.u32 2147483647, %v569
    %v590 = vand.u32 2147483647, %v579
    %vm591 = vcmp.gt.f32.partialorder %v589, %v590
    %v592 = vsel %vm591, 1, 0
    %v593 = vlaneseq
    %v594 = vshrl.u32 %v593, 7
    %v595 = vsub.s32 1, %v594
    %v596 = vrot.slane %v592, %v595
    %vm597 = vcmp.eq.s32.totalorder %v596, 1
    %v598 = vsel %vm597, %v569, %v579
    %v599 = vsel %vm597, %v579, %v569
    %v600 = vsub.f32 0.0, %v588
    %v601 = vsel %vm591, %v600, %v588
    %v602 = vmul.f32 %v601, %v598
    %v603 = vrcp.pop %v598
    %v604 = vmul.f32 %v598, %v603
    %v605 = vsub.f32 2.0, %v604
    %v606 = vmul.f32 %v603, %v605
    %v607 = vlaneseq
    %v608 = vshrl.u32 %v607, 7
    %v609 = vsub.s32 1, %v608
    %v610 = vrot.slane %v606, %v609
    %v611 = vmul.f32 %v598, %v610
    %v612 = vlaneseq
    %v613 = vshrl.u32 %v612, 7
    %v614 = vsub.s32 1, %v613
    %v615 = vrot.slane %v551, %v614
    %v616 = vmul.f32 %v615, %v611
    %v617 = vsub.f32 %v551, %v616
    %v618 = vlaneseq
    %v619 = vshrl.u32 %v618, 7
    %v620 = vsub.s32 1, %v619
    %v621 = vrot.slane %v580, %v620
    %v622 = vmul.f32 %v621, %v611
    %v623 = vsub.f32 %v580, %v622
    %v624 = vlaneseq
    %v625 = vshrl.u32 %v624, 7
    %v626 = vsub.s32 1, %v625
    %v627 = vrot.slane %v599, %v626
    %v628 = vmul.f32 %v627, %v611
    %v629 = vsub.f32 %v599, %v628
    %v630 = vand.u32 2147483647, %v629
    %v631 = vand.u32 2147483647, %v623
    %vm632 = vcmp.gt.f32.partialorder %v630, %v631
    %v633 = vsel %vm632, 1, 0
    %v634 = vlaneseq
    %v635 = vshrl.u32 %v634, 7
    %v636 = vsub.s32 2, %v635
    %v637 = vrot.slane %v633, %v636
    %vm638 = vcmp.eq.s32.totalorder %v637, 1
    %v639 = vsel %vm638, %v629, %v623
    %v640 = vsel %vm638, %v623, %v629
    %v641 = vsub.f32 0.0, %v602
    %v643 = vrot.slane %v641, 7
    %v646 = vrot.slane %v602, 7
    %v648 = vsel %vm632, %v643, %v646
    %v649 = vmul.f32 %v648, %v639
    %v650 = vrcp.pop %v639
    %v651 = vmul.f32 %v639, %v650
    %v652 = vsub.f32 2.0, %v651
    %v653 = vmul.f32 %v650, %v652
    %v654 = vlaneseq
    %v655 = vshrl.u32 %v654, 7
    %v656 = vsub.s32 2, %v655
    %v657 = vrot.slane %v653, %v656
    %v658 = vmul.f32 %v639, %v657
    %v659 = vlaneseq
    %v660 = vshrl.u32 %v659, 7
    %v661 = vsub.s32 2, %v660
    %v662 = vrot.slane %v617, %v661
    %v663 = vmul.f32 %v662, %v658
    %v664 = vsub.f32 %v617, %v663
    %v665 = vlaneseq
    %v666 = vshrl.u32 %v665, 7
    %v667 = vsub.s32 2, %v666
    %v668 = vrot.slane %v611, %v667
    %v669 = vmul.f32 %v668, %v658
    %v670 = vsub.f32 %v611, %v669
    %v671 = vlaneseq
    %v672 = vshrl.u32 %v671, 7
    %v673 = vsub.s32 2, %v672
    %v674 = vrot.slane %v640, %v673
    %v675 = vmul.f32 %v674, %v658
    %v676 = vsub.f32 %v640, %v675
    %v678 = vrot.slane %v676, 1
    %v680 = vmul.f32 %v649, %v678
    %v681 = vrcp.pop %v676
    %v682 = vmul.f32 %v676, %v681
    %v683 = vsub.f32 2.0, %v682
    %v684 = vmul.f32 %v681, %v683
    %v685 = vlaneseq
    %v686 = vshrl.u32 %v685, 7
    %v687 = vsub.s32 3, %v686
    %v688 = vrot.slane %v684, %v687
    %v689 = vmul.f32 %v676, %v688
    %v690 = vlaneseq
    %v691 = vshrl.u32 %v690, 7
    %v692 = vsub.s32 3, %v691
    %v693 = vrot.slane %v664, %v692
    %v694 = vmul.f32 %v693, %v689
    %v695 = vsub.f32 %v664, %v694
    %v696 = vlaneseq
    %v697 = vshrl.u32 %v696, 7
    %v698 = vsub.s32 3, %v697
    %v699 = vrot.slane %v670, %v698
    %v700 = vmul.f32 %v699, %v689
    %v701 = vsub.f32 %v670, %v700
    %v702 = vlaneseq
    %v703 = vshrl.u32 %v702, 7
    %v704 = vsub.s32 3, %v703
    %v705 = vrot.slane %v658, %v704
    %v706 = vmul.f32 %v705, %v689
    %v707 = vsub.f32 %v658, %v706
    %v709 = vrot.slane %v701, 1
    %v711 = vadd.f32 %v695, %v709
    %v713 = vrot.slane %v707, 2
    %v715 = vadd.f32 %v711, %v713
    %v717 = vrot.slane %v689, 3
    %v719 = vadd.f32 %v715, %v717
    %s720 = scalar_lea.vmem [#allocation5], 32
    %v721 = vld [vmem:[%s720] sm:$0xff]
    %s722 = scalar_lea.vmem [#allocation5], 40
    %v723 = vld [vmem:[%s722] sm:$0xff]
    %s724 = scalar_lea.vmem [#allocation5], 48
    %v725 = vld [vmem:[%s724] sm:$0xff]
    %s726 = scalar_lea.vmem [#allocation5], 56
    %v727 = vld [vmem:[%s726] sm:$0xff]
    %v728 = vand.u32 2147483647, %v723
    %v729 = vand.u32 2147483647, %v721
    %vm730 = vcmp.gt.f32.partialorder %v728, %v729
    %v731 = vsel %vm730, 1, 0
    %v732 = vlaneseq
    %v733 = vshrl.u32 %v732, 7
    %v734 = vsub.s32 0, %v733
    %v735 = vrot.slane %v731, %v734
    %vm736 = vcmp.eq.s32.totalorder %v735, 1
    %v737 = vsel %vm736, %v723, %v721
    %v738 = vsel %vm736, %v721, %v723
    %v739 = vsel %vm730, -1.0, 1.0
    %v740 = vand.u32 2147483647, %v725
    %v741 = vand.u32 2147483647, %v737
    %vm742 = vcmp.gt.f32.partialorder %v740, %v741
    %v743 = vsel %vm742, 1, 0
    %v744 = vlaneseq
    %v745 = vshrl.u32 %v744, 7
    %v746 = vsub.s32 0, %v745
    %v747 = vrot.slane %v743, %v746
    %vm748 = vcmp.eq.s32.totalorder %v747, 1
    %v749 = vsel %vm748, %v725, %v737
    %v750 = vsel %vm748, %v737, %v725
    %v751 = vsub.f32 0.0, %v739
    %v752 = vsel %vm742, %v751, %v739
    %v753 = vand.u32 2147483647, %v727
    %v754 = vand.u32 2147483647, %v749
    %vm755 = vcmp.gt.f32.partialorder %v753, %v754
    %v756 = vsel %vm755, 1, 0
    %v757 = vlaneseq
    %v758 = vshrl.u32 %v757, 7
    %v759 = vsub.s32 0, %v758
    %v760 = vrot.slane %v756, %v759
    %vm761 = vcmp.eq.s32.totalorder %v760, 1
    %v762 = vsel %vm761, %v727, %v749
    %v763 = vsel %vm761, %v749, %v727
    %v764 = vsub.f32 0.0, %v752
    %v765 = vsel %vm755, %v764, %v752
    %v766 = vmul.f32 %v765, %v762
    %v767 = vrcp.pop %v762
    %v768 = vmul.f32 %v762, %v767
    %v769 = vsub.f32 2.0, %v768
    %v770 = vmul.f32 %v767, %v769
    %v771 = vlaneseq
    %v772 = vshrl.u32 %v771, 7
    %v773 = vsub.s32 0, %v772
    %v774 = vrot.slane %v770, %v773
    %v775 = vmul.f32 %v762, %v774
    %v776 = vlaneseq
    %v777 = vshrl.u32 %v776, 7
    %v778 = vsub.s32 0, %v777
    %v779 = vrot.slane %v738, %v778
    %v780 = vmul.f32 %v779, %v775
    %v781 = vsub.f32 %v738, %v780
    %v782 = vlaneseq
    %v783 = vshrl.u32 %v782, 7
    %v784 = vsub.s32 0, %v783
    %v785 = vrot.slane %v750, %v784
    %v786 = vmul.f32 %v785, %v775
    %v787 = vsub.f32 %v750, %v786
    %v788 = vlaneseq
    %v789 = vshrl.u32 %v788, 7
    %v790 = vsub.s32 0, %v789
    %v791 = vrot.slane %v763, %v790
    %v792 = vmul.f32 %v791, %v775
    %v793 = vsub.f32 %v763, %v792
    %v794 = vand.u32 2147483647, %v787
    %v795 = vand.u32 2147483647, %v781
    %vm796 = vcmp.gt.f32.partialorder %v794, %v795
    %v797 = vsel %vm796, 1, 0
    %v798 = vlaneseq
    %v799 = vshrl.u32 %v798, 7
    %v800 = vsub.s32 1, %v799
    %v801 = vrot.slane %v797, %v800
    %vm802 = vcmp.eq.s32.totalorder %v801, 1
    %v803 = vsel %vm802, %v787, %v781
    %v804 = vsel %vm802, %v781, %v787
    %v805 = vsub.f32 0.0, %v766
    %v807 = vrot.slane %v805, 7
    %v810 = vrot.slane %v766, 7
    %v812 = vsel %vm796, %v807, %v810
    %v813 = vand.u32 2147483647, %v793
    %v814 = vand.u32 2147483647, %v803
    %vm815 = vcmp.gt.f32.partialorder %v813, %v814
    %v816 = vsel %vm815, 1, 0
    %v817 = vlaneseq
    %v818 = vshrl.u32 %v817, 7
    %v819 = vsub.s32 1, %v818
    %v820 = vrot.slane %v816, %v819
    %vm821 = vcmp.eq.s32.totalorder %v820, 1
    %v822 = vsel %vm821, %v793, %v803
    %v823 = vsel %vm821, %v803, %v793
    %v824 = vsub.f32 0.0, %v812
    %v825 = vsel %vm815, %v824, %v812
    %v826 = vmul.f32 %v825, %v822
    %v827 = vrcp.pop %v822
    %v828 = vmul.f32 %v822, %v827
    %v829 = vsub.f32 2.0, %v828
    %v830 = vmul.f32 %v827, %v829
    %v831 = vlaneseq
    %v832 = vshrl.u32 %v831, 7
    %v833 = vsub.s32 1, %v832
    %v834 = vrot.slane %v830, %v833
    %v835 = vmul.f32 %v822, %v834
    %v836 = vlaneseq
    %v837 = vshrl.u32 %v836, 7
    %v838 = vsub.s32 1, %v837
    %v839 = vrot.slane %v775, %v838
    %v840 = vmul.f32 %v839, %v835
    %v841 = vsub.f32 %v775, %v840
    %v842 = vlaneseq
    %v843 = vshrl.u32 %v842, 7
    %v844 = vsub.s32 1, %v843
    %v845 = vrot.slane %v804, %v844
    %v846 = vmul.f32 %v845, %v835
    %v847 = vsub.f32 %v804, %v846
    %v848 = vlaneseq
    %v849 = vshrl.u32 %v848, 7
    %v850 = vsub.s32 1, %v849
    %v851 = vrot.slane %v823, %v850
    %v852 = vmul.f32 %v851, %v835
    %v853 = vsub.f32 %v823, %v852
    %v854 = vand.u32 2147483647, %v853
    %v855 = vand.u32 2147483647, %v847
    %vm856 = vcmp.gt.f32.partialorder %v854, %v855
    %v857 = vsel %vm856, 1, 0
    %v858 = vlaneseq
    %v859 = vshrl.u32 %v858, 7
    %v860 = vsub.s32 2, %v859
    %v861 = vrot.slane %v857, %v860
    %vm862 = vcmp.eq.s32.totalorder %v861, 1
    %v863 = vsel %vm862, %v853, %v847
    %v864 = vsel %vm862, %v847, %v853
    %v865 = vsub.f32 0.0, %v826
    %v867 = vrot.slane %v865, 7
    %v870 = vrot.slane %v826, 7
    %v872 = vsel %vm856, %v867, %v870
    %v873 = vmul.f32 %v872, %v863
    %v874 = vrcp.pop %v863
    %v875 = vmul.f32 %v863, %v874
    %v876 = vsub.f32 2.0, %v875
    %v877 = vmul.f32 %v874, %v876
    %v878 = vlaneseq
    %v879 = vshrl.u32 %v878, 7
    %v880 = vsub.s32 2, %v879
    %v881 = vrot.slane %v877, %v880
    %v882 = vmul.f32 %v863, %v881
    %v883 = vlaneseq
    %v884 = vshrl.u32 %v883, 7
    %v885 = vsub.s32 2, %v884
    %v886 = vrot.slane %v841, %v885
    %v887 = vmul.f32 %v886, %v882
    %v888 = vsub.f32 %v841, %v887
    %v889 = vlaneseq
    %v890 = vshrl.u32 %v889, 7
    %v891 = vsub.s32 2, %v890
    %v892 = vrot.slane %v835, %v891
    %v893 = vmul.f32 %v892, %v882
    %v894 = vsub.f32 %v835, %v893
    %v895 = vlaneseq
    %v896 = vshrl.u32 %v895, 7
    %v897 = vsub.s32 2, %v896
    %v898 = vrot.slane %v864, %v897
    %v899 = vmul.f32 %v898, %v882
    %v900 = vsub.f32 %v864, %v899
    %v902 = vrot.slane %v900, 1
    %v904 = vmul.f32 %v873, %v902
    %v905 = vrcp.pop %v900
    %v906 = vmul.f32 %v900, %v905
    %v907 = vsub.f32 2.0, %v906
    %v908 = vmul.f32 %v905, %v907
    %v909 = vlaneseq
    %v910 = vshrl.u32 %v909, 7
    %v911 = vsub.s32 3, %v910
    %v912 = vrot.slane %v908, %v911
    %v913 = vmul.f32 %v900, %v912
    %v914 = vlaneseq
    %v915 = vshrl.u32 %v914, 7
    %v916 = vsub.s32 3, %v915
    %v917 = vrot.slane %v888, %v916
    %v918 = vmul.f32 %v917, %v913
    %v919 = vsub.f32 %v888, %v918
    %v920 = vlaneseq
    %v921 = vshrl.u32 %v920, 7
    %v922 = vsub.s32 3, %v921
    %v923 = vrot.slane %v894, %v922
    %v924 = vmul.f32 %v923, %v913
    %v925 = vsub.f32 %v894, %v924
    %v926 = vlaneseq
    %v927 = vshrl.u32 %v926, 7
    %v928 = vsub.s32 3, %v927
    %v929 = vrot.slane %v882, %v928
    %v930 = vmul.f32 %v929, %v913
    %v931 = vsub.f32 %v882, %v930
    %v933 = vrot.slane %v925, 1
    %v935 = vadd.f32 %v919, %v933
    %v937 = vrot.slane %v931, 2
    %v939 = vadd.f32 %v935, %v937
    %v941 = vrot.slane %v913, 3
    %v943 = vadd.f32 %v939, %v941
    %v944 = vmul.f32 %v680, %v904
    %v945 = vadd.f32 %v719, %v943
    %v946 = vmul.f32 %v945, -0.5
    %v948 = vrot.slane %v944, 6
    %v950 = vmul.f32 %v946, %v948
    %s951 = scalar_lea.vmem [#allocation2], 64
    %v952 = vld [vmem:[%s951] sm:$0xff]
    %s953 = scalar_lea.vmem [#allocation2], 72
    %v954 = vld [vmem:[%s953] sm:$0xff]
    %s955 = scalar_lea.vmem [#allocation2], 80
    %v956 = vld [vmem:[%s955] sm:$0xff]
    %s957 = scalar_lea.vmem [#allocation2], 88
    %v958 = vld [vmem:[%s957] sm:$0xff]
    %v959 = vand.u32 2147483647, %v954
    %v960 = vand.u32 2147483647, %v952
    %vm961 = vcmp.gt.f32.partialorder %v959, %v960
    %v962 = vsel %vm961, 1, 0
    %v963 = vlaneseq
    %v964 = vshrl.u32 %v963, 7
    %v965 = vsub.s32 0, %v964
    %v966 = vrot.slane %v962, %v965
    %vm967 = vcmp.eq.s32.totalorder %v966, 1
    %v968 = vsel %vm967, %v954, %v952
    %v969 = vsel %vm967, %v952, %v954
    %v970 = vsel %vm961, -1.0, 1.0
    %v971 = vand.u32 2147483647, %v956
    %v972 = vand.u32 2147483647, %v968
    %vm973 = vcmp.gt.f32.partialorder %v971, %v972
    %v974 = vsel %vm973, 1, 0
    %v975 = vlaneseq
    %v976 = vshrl.u32 %v975, 7
    %v977 = vsub.s32 0, %v976
    %v978 = vrot.slane %v974, %v977
    %vm979 = vcmp.eq.s32.totalorder %v978, 1
    %v980 = vsel %vm979, %v956, %v968
    %v981 = vsel %vm979, %v968, %v956
    %v982 = vsub.f32 0.0, %v970
    %v983 = vsel %vm973, %v982, %v970
    %v984 = vand.u32 2147483647, %v958
    %v985 = vand.u32 2147483647, %v980
    %vm986 = vcmp.gt.f32.partialorder %v984, %v985
    %v987 = vsel %vm986, 1, 0
    %v988 = vlaneseq
    %v989 = vshrl.u32 %v988, 7
    %v990 = vsub.s32 0, %v989
    %v991 = vrot.slane %v987, %v990
    %vm992 = vcmp.eq.s32.totalorder %v991, 1
    %v993 = vsel %vm992, %v958, %v980
    %v994 = vsel %vm992, %v980, %v958
    %v995 = vsub.f32 0.0, %v983
    %v996 = vsel %vm986, %v995, %v983
    %v997 = vmul.f32 %v996, %v993
    %v998 = vrcp.pop %v993
    %v999 = vmul.f32 %v993, %v998
    %v1000 = vsub.f32 2.0, %v999
    %v1001 = vmul.f32 %v998, %v1000
    %v1002 = vlaneseq
    %v1003 = vshrl.u32 %v1002, 7
    %v1004 = vsub.s32 0, %v1003
    %v1005 = vrot.slane %v1001, %v1004
    %v1006 = vmul.f32 %v993, %v1005
    %v1007 = vlaneseq
    %v1008 = vshrl.u32 %v1007, 7
    %v1009 = vsub.s32 0, %v1008
    %v1010 = vrot.slane %v969, %v1009
    %v1011 = vmul.f32 %v1010, %v1006
    %v1012 = vsub.f32 %v969, %v1011
    %v1013 = vlaneseq
    %v1014 = vshrl.u32 %v1013, 7
    %v1015 = vsub.s32 0, %v1014
    %v1016 = vrot.slane %v981, %v1015
    %v1017 = vmul.f32 %v1016, %v1006
    %v1018 = vsub.f32 %v981, %v1017
    %v1019 = vlaneseq
    %v1020 = vshrl.u32 %v1019, 7
    %v1021 = vsub.s32 0, %v1020
    %v1022 = vrot.slane %v994, %v1021
    %v1023 = vmul.f32 %v1022, %v1006
    %v1024 = vsub.f32 %v994, %v1023
    %v1025 = vand.u32 2147483647, %v1018
    %v1026 = vand.u32 2147483647, %v1012
    %vm1027 = vcmp.gt.f32.partialorder %v1025, %v1026
    %v1028 = vsel %vm1027, 1, 0
    %v1029 = vlaneseq
    %v1030 = vshrl.u32 %v1029, 7
    %v1031 = vsub.s32 1, %v1030
    %v1032 = vrot.slane %v1028, %v1031
    %vm1033 = vcmp.eq.s32.totalorder %v1032, 1
    %v1034 = vsel %vm1033, %v1018, %v1012
    %v1035 = vsel %vm1033, %v1012, %v1018
    %v1036 = vsub.f32 0.0, %v997
    %v1038 = vrot.slane %v1036, 7
    %v1041 = vrot.slane %v997, 7
    %v1043 = vsel %vm1027, %v1038, %v1041
    %v1044 = vand.u32 2147483647, %v1024
    %v1045 = vand.u32 2147483647, %v1034
    %vm1046 = vcmp.gt.f32.partialorder %v1044, %v1045
    %v1047 = vsel %vm1046, 1, 0
    %v1048 = vlaneseq
    %v1049 = vshrl.u32 %v1048, 7
    %v1050 = vsub.s32 1, %v1049
    %v1051 = vrot.slane %v1047, %v1050
    %vm1052 = vcmp.eq.s32.totalorder %v1051, 1
    %v1053 = vsel %vm1052, %v1024, %v1034
    %v1054 = vsel %vm1052, %v1034, %v1024
    %v1055 = vsub.f32 0.0, %v1043
    %v1056 = vsel %vm1046, %v1055, %v1043
    %v1057 = vmul.f32 %v1056, %v1053
    %v1058 = vrcp.pop %v1053
    %v1059 = vmul.f32 %v1053, %v1058
    %v1060 = vsub.f32 2.0, %v1059
    %v1061 = vmul.f32 %v1058, %v1060
    %v1062 = vlaneseq
    %v1063 = vshrl.u32 %v1062, 7
    %v1064 = vsub.s32 1, %v1063
    %v1065 = vrot.slane %v1061, %v1064
    %v1066 = vmul.f32 %v1053, %v1065
    %v1067 = vlaneseq
    %v1068 = vshrl.u32 %v1067, 7
    %v1069 = vsub.s32 1, %v1068
    %v1070 = vrot.slane %v1006, %v1069
    %v1071 = vmul.f32 %v1070, %v1066
    %v1072 = vsub.f32 %v1006, %v1071
    %v1073 = vlaneseq
    %v1074 = vshrl.u32 %v1073, 7
    %v1075 = vsub.s32 1, %v1074
    %v1076 = vrot.slane %v1035, %v1075
    %v1077 = vmul.f32 %v1076, %v1066
    %v1078 = vsub.f32 %v1035, %v1077
    %v1079 = vlaneseq
    %v1080 = vshrl.u32 %v1079, 7
    %v1081 = vsub.s32 1, %v1080
    %v1082 = vrot.slane %v1054, %v1081
    %v1083 = vmul.f32 %v1082, %v1066
    %v1084 = vsub.f32 %v1054, %v1083
    %v1085 = vand.u32 2147483647, %v1084
    %v1086 = vand.u32 2147483647, %v1078
    %vm1087 = vcmp.gt.f32.partialorder %v1085, %v1086
    %v1088 = vsel %vm1087, 1, 0
    %v1089 = vlaneseq
    %v1090 = vshrl.u32 %v1089, 7
    %v1091 = vsub.s32 2, %v1090
    %v1092 = vrot.slane %v1088, %v1091
    %vm1093 = vcmp.eq.s32.totalorder %v1092, 1
    %v1094 = vsel %vm1093, %v1084, %v1078
    %v1095 = vsel %vm1093, %v1078, %v1084
    %v1096 = vsub.f32 0.0, %v1057
    %v1098 = vrot.slane %v1096, 7
    %v1101 = vrot.slane %v1057, 7
    %v1103 = vsel %vm1087, %v1098, %v1101
    %v1104 = vmul.f32 %v1103, %v1094
    %v1105 = vrcp.pop %v1094
    %v1106 = vmul.f32 %v1094, %v1105
    %v1107 = vsub.f32 2.0, %v1106
    %v1108 = vmul.f32 %v1105, %v1107
    %v1109 = vlaneseq
    %v1110 = vshrl.u32 %v1109, 7
    %v1111 = vsub.s32 2, %v1110
    %v1112 = vrot.slane %v1108, %v1111
    %v1113 = vmul.f32 %v1094, %v1112
    %v1114 = vlaneseq
    %v1115 = vshrl.u32 %v1114, 7
    %v1116 = vsub.s32 2, %v1115
    %v1117 = vrot.slane %v1072, %v1116
    %v1118 = vmul.f32 %v1117, %v1113
    %v1119 = vsub.f32 %v1072, %v1118
    %v1120 = vlaneseq
    %v1121 = vshrl.u32 %v1120, 7
    %v1122 = vsub.s32 2, %v1121
    %v1123 = vrot.slane %v1066, %v1122
    %v1124 = vmul.f32 %v1123, %v1113
    %v1125 = vsub.f32 %v1066, %v1124
    %v1126 = vlaneseq
    %v1127 = vshrl.u32 %v1126, 7
    %v1128 = vsub.s32 2, %v1127
    %v1129 = vrot.slane %v1095, %v1128
    %v1130 = vmul.f32 %v1129, %v1113
    %v1131 = vsub.f32 %v1095, %v1130
    %v1133 = vrot.slane %v1131, 1
    %v1135 = vmul.f32 %v1104, %v1133
    %v1136 = vrcp.pop %v1131
    %v1137 = vmul.f32 %v1131, %v1136
    %v1138 = vsub.f32 2.0, %v1137
    %v1139 = vmul.f32 %v1136, %v1138
    %v1140 = vlaneseq
    %v1141 = vshrl.u32 %v1140, 7
    %v1142 = vsub.s32 3, %v1141
    %v1143 = vrot.slane %v1139, %v1142
    %v1144 = vmul.f32 %v1131, %v1143
    %v1145 = vlaneseq
    %v1146 = vshrl.u32 %v1145, 7
    %v1147 = vsub.s32 3, %v1146
    %v1148 = vrot.slane %v1119, %v1147
    %v1149 = vmul.f32 %v1148, %v1144
    %v1150 = vsub.f32 %v1119, %v1149
    %v1151 = vlaneseq
    %v1152 = vshrl.u32 %v1151, 7
    %v1153 = vsub.s32 3, %v1152
    %v1154 = vrot.slane %v1125, %v1153
    %v1155 = vmul.f32 %v1154, %v1144
    %v1156 = vsub.f32 %v1125, %v1155
    %v1157 = vlaneseq
    %v1158 = vshrl.u32 %v1157, 7
    %v1159 = vsub.s32 3, %v1158
    %v1160 = vrot.slane %v1113, %v1159
    %v1161 = vmul.f32 %v1160, %v1144
    %v1162 = vsub.f32 %v1113, %v1161
    %v1164 = vrot.slane %v1156, 1
    %v1166 = vadd.f32 %v1150, %v1164
    %v1168 = vrot.slane %v1162, 2
    %v1170 = vadd.f32 %v1166, %v1168
    %v1172 = vrot.slane %v1144, 3
    %v1174 = vadd.f32 %v1170, %v1172
    %s1175 = scalar_lea.vmem [#allocation5], 64
    %v1176 = vld [vmem:[%s1175] sm:$0xff]
    %s1177 = scalar_lea.vmem [#allocation5], 72
    %v1178 = vld [vmem:[%s1177] sm:$0xff]
    %s1179 = scalar_lea.vmem [#allocation5], 80
    %v1180 = vld [vmem:[%s1179] sm:$0xff]
    %s1181 = scalar_lea.vmem [#allocation5], 88
    %v1182 = vld [vmem:[%s1181] sm:$0xff]
    %v1183 = vand.u32 2147483647, %v1178
    %v1184 = vand.u32 2147483647, %v1176
    %vm1185 = vcmp.gt.f32.partialorder %v1183, %v1184
    %v1186 = vsel %vm1185, 1, 0
    %v1187 = vlaneseq
    %v1188 = vshrl.u32 %v1187, 7
    %v1189 = vsub.s32 0, %v1188
    %v1190 = vrot.slane %v1186, %v1189
    %vm1191 = vcmp.eq.s32.totalorder %v1190, 1
    %v1192 = vsel %vm1191, %v1178, %v1176
    %v1193 = vsel %vm1191, %v1176, %v1178
    %v1194 = vsel %vm1185, -1.0, 1.0
    %v1195 = vand.u32 2147483647, %v1180
    %v1196 = vand.u32 2147483647, %v1192
    %vm1197 = vcmp.gt.f32.partialorder %v1195, %v1196
    %v1198 = vsel %vm1197, 1, 0
    %v1199 = vlaneseq
    %v1200 = vshrl.u32 %v1199, 7
    %v1201 = vsub.s32 0, %v1200
    %v1202 = vrot.slane %v1198, %v1201
    %vm1203 = vcmp.eq.s32.totalorder %v1202, 1
    %v1204 = vsel %vm1203, %v1180, %v1192
    %v1205 = vsel %vm1203, %v1192, %v1180
    %v1206 = vsub.f32 0.0, %v1194
    %v1207 = vsel %vm1197, %v1206, %v1194
    %v1208 = vand.u32 2147483647, %v1182
    %v1209 = vand.u32 2147483647, %v1204
    %vm1210 = vcmp.gt.f32.partialorder %v1208, %v1209
    %v1211 = vsel %vm1210, 1, 0
    %v1212 = vlaneseq
    %v1213 = vshrl.u32 %v1212, 7
    %v1214 = vsub.s32 0, %v1213
    %v1215 = vrot.slane %v1211, %v1214
    %vm1216 = vcmp.eq.s32.totalorder %v1215, 1
    %v1217 = vsel %vm1216, %v1182, %v1204
    %v1218 = vsel %vm1216, %v1204, %v1182
    %v1219 = vsub.f32 0.0, %v1207
    %v1220 = vsel %vm1210, %v1219, %v1207
    %v1221 = vmul.f32 %v1220, %v1217
    %v1222 = vrcp.pop %v1217
    %v1223 = vmul.f32 %v1217, %v1222
    %v1224 = vsub.f32 2.0, %v1223
    %v1225 = vmul.f32 %v1222, %v1224
    %v1226 = vlaneseq
    %v1227 = vshrl.u32 %v1226, 7
    %v1228 = vsub.s32 0, %v1227
    %v1229 = vrot.slane %v1225, %v1228
    %v1230 = vmul.f32 %v1217, %v1229
    %v1231 = vlaneseq
    %v1232 = vshrl.u32 %v1231, 7
    %v1233 = vsub.s32 0, %v1232
    %v1234 = vrot.slane %v1193, %v1233
    %v1235 = vmul.f32 %v1234, %v1230
    %v1236 = vsub.f32 %v1193, %v1235
    %v1237 = vlaneseq
    %v1238 = vshrl.u32 %v1237, 7
    %v1239 = vsub.s32 0, %v1238
    %v1240 = vrot.slane %v1205, %v1239
    %v1241 = vmul.f32 %v1240, %v1230
    %v1242 = vsub.f32 %v1205, %v1241
    %v1243 = vlaneseq
    %v1244 = vshrl.u32 %v1243, 7
    %v1245 = vsub.s32 0, %v1244
    %v1246 = vrot.slane %v1218, %v1245
    %v1247 = vmul.f32 %v1246, %v1230
    %v1248 = vsub.f32 %v1218, %v1247
    %v1249 = vand.u32 2147483647, %v1242
    %v1250 = vand.u32 2147483647, %v1236
    %vm1251 = vcmp.gt.f32.partialorder %v1249, %v1250
    %v1252 = vsel %vm1251, 1, 0
    %v1253 = vlaneseq
    %v1254 = vshrl.u32 %v1253, 7
    %v1255 = vsub.s32 1, %v1254
    %v1256 = vrot.slane %v1252, %v1255
    %vm1257 = vcmp.eq.s32.totalorder %v1256, 1
    %v1258 = vsel %vm1257, %v1242, %v1236
    %v1259 = vsel %vm1257, %v1236, %v1242
    %v1260 = vsub.f32 0.0, %v1221
    %v1262 = vrot.slane %v1260, 7
    %v1265 = vrot.slane %v1221, 7
    %v1267 = vsel %vm1251, %v1262, %v1265
    %v1268 = vand.u32 2147483647, %v1248
    %v1269 = vand.u32 2147483647, %v1258
    %vm1270 = vcmp.gt.f32.partialorder %v1268, %v1269
    %v1271 = vsel %vm1270, 1, 0
    %v1272 = vlaneseq
    %v1273 = vshrl.u32 %v1272, 7
    %v1274 = vsub.s32 1, %v1273
    %v1275 = vrot.slane %v1271, %v1274
    %vm1276 = vcmp.eq.s32.totalorder %v1275, 1
    %v1277 = vsel %vm1276, %v1248, %v1258
    %v1278 = vsel %vm1276, %v1258, %v1248
    %v1279 = vsub.f32 0.0, %v1267
    %v1280 = vsel %vm1270, %v1279, %v1267
    %v1281 = vmul.f32 %v1280, %v1277
    %v1282 = vrcp.pop %v1277
    %v1283 = vmul.f32 %v1277, %v1282
    %v1284 = vsub.f32 2.0, %v1283
    %v1285 = vmul.f32 %v1282, %v1284
    %v1286 = vlaneseq
    %v1287 = vshrl.u32 %v1286, 7
    %v1288 = vsub.s32 1, %v1287
    %v1289 = vrot.slane %v1285, %v1288
    %v1290 = vmul.f32 %v1277, %v1289
    %v1291 = vlaneseq
    %v1292 = vshrl.u32 %v1291, 7
    %v1293 = vsub.s32 1, %v1292
    %v1294 = vrot.slane %v1230, %v1293
    %v1295 = vmul.f32 %v1294, %v1290
    %v1296 = vsub.f32 %v1230, %v1295
    %v1297 = vlaneseq
    %v1298 = vshrl.u32 %v1297, 7
    %v1299 = vsub.s32 1, %v1298
    %v1300 = vrot.slane %v1259, %v1299
    %v1301 = vmul.f32 %v1300, %v1290
    %v1302 = vsub.f32 %v1259, %v1301
    %v1303 = vlaneseq
    %v1304 = vshrl.u32 %v1303, 7
    %v1305 = vsub.s32 1, %v1304
    %v1306 = vrot.slane %v1278, %v1305
    %v1307 = vmul.f32 %v1306, %v1290
    %v1308 = vsub.f32 %v1278, %v1307
    %v1309 = vand.u32 2147483647, %v1308
    %v1310 = vand.u32 2147483647, %v1302
    %vm1311 = vcmp.gt.f32.partialorder %v1309, %v1310
    %v1312 = vsel %vm1311, 1, 0
    %v1313 = vlaneseq
    %v1314 = vshrl.u32 %v1313, 7
    %v1315 = vsub.s32 2, %v1314
    %v1316 = vrot.slane %v1312, %v1315
    %vm1317 = vcmp.eq.s32.totalorder %v1316, 1
    %v1318 = vsel %vm1317, %v1308, %v1302
    %v1319 = vsel %vm1317, %v1302, %v1308
    %v1320 = vsub.f32 0.0, %v1281
    %v1322 = vrot.slane %v1320, 7
    %v1325 = vrot.slane %v1281, 7
    %v1327 = vsel %vm1311, %v1322, %v1325
    %v1328 = vmul.f32 %v1327, %v1318
    %v1329 = vrcp.pop %v1318
    %v1330 = vmul.f32 %v1318, %v1329
    %v1331 = vsub.f32 2.0, %v1330
    %v1332 = vmul.f32 %v1329, %v1331
    %v1333 = vlaneseq
    %v1334 = vshrl.u32 %v1333, 7
    %v1335 = vsub.s32 2, %v1334
    %v1336 = vrot.slane %v1332, %v1335
    %v1337 = vmul.f32 %v1318, %v1336
    %v1338 = vlaneseq
    %v1339 = vshrl.u32 %v1338, 7
    %v1340 = vsub.s32 2, %v1339
    %v1341 = vrot.slane %v1296, %v1340
    %v1342 = vmul.f32 %v1341, %v1337
    %v1343 = vsub.f32 %v1296, %v1342
    %v1344 = vlaneseq
    %v1345 = vshrl.u32 %v1344, 7
    %v1346 = vsub.s32 2, %v1345
    %v1347 = vrot.slane %v1290, %v1346
    %v1348 = vmul.f32 %v1347, %v1337
    %v1349 = vsub.f32 %v1290, %v1348
    %v1350 = vlaneseq
    %v1351 = vshrl.u32 %v1350, 7
    %v1352 = vsub.s32 2, %v1351
    %v1353 = vrot.slane %v1319, %v1352
    %v1354 = vmul.f32 %v1353, %v1337
    %v1355 = vsub.f32 %v1319, %v1354
    %v1357 = vrot.slane %v1355, 1
    %v1359 = vmul.f32 %v1328, %v1357
    %v1360 = vrcp.pop %v1355
    %v1361 = vmul.f32 %v1355, %v1360
    %v1362 = vsub.f32 2.0, %v1361
    %v1363 = vmul.f32 %v1360, %v1362
    %v1364 = vlaneseq
    %v1365 = vshrl.u32 %v1364, 7
    %v1366 = vsub.s32 3, %v1365
    %v1367 = vrot.slane %v1363, %v1366
    %v1368 = vmul.f32 %v1355, %v1367
    %v1369 = vlaneseq
    %v1370 = vshrl.u32 %v1369, 7
    %v1371 = vsub.s32 3, %v1370
    %v1372 = vrot.slane %v1343, %v1371
    %v1373 = vmul.f32 %v1372, %v1368
    %v1374 = vsub.f32 %v1343, %v1373
    %v1375 = vlaneseq
    %v1376 = vshrl.u32 %v1375, 7
    %v1377 = vsub.s32 3, %v1376
    %v1378 = vrot.slane %v1349, %v1377
    %v1379 = vmul.f32 %v1378, %v1368
    %v1380 = vsub.f32 %v1349, %v1379
    %v1381 = vlaneseq
    %v1382 = vshrl.u32 %v1381, 7
    %v1383 = vsub.s32 3, %v1382
    %v1384 = vrot.slane %v1337, %v1383
    %v1385 = vmul.f32 %v1384, %v1368
    %v1386 = vsub.f32 %v1337, %v1385
    %v1388 = vrot.slane %v1380, 1
    %v1390 = vadd.f32 %v1374, %v1388
    %v1392 = vrot.slane %v1386, 2
    %v1394 = vadd.f32 %v1390, %v1392
    %v1396 = vrot.slane %v1368, 3
    %v1398 = vadd.f32 %v1394, %v1396
    %v1399 = vmul.f32 %v1135, %v1359
    %v1400 = vadd.f32 %v1174, %v1398
    %v1401 = vmul.f32 %v1400, -0.5
    %v1403 = vrot.slane %v1399, 6
    %v1405 = vmul.f32 %v1401, %v1403
    %v1407 = vrot.slane %v495, 4
    %v1410 = vrot.slane %v950, 3
    %v1413 = vrot.slane %v1405, 2
    %vm1415 = vcmask 1040384
    %v1416 = vsel %vm1415, %v1407, %v1410
    %vm1417 = vcmask 1041408
    %v1418 = vsel %vm1417, %v1416, %v1413
    %1419 = vst [vmem:[#allocation7] sm:$0x7] %v1418
    %v1420 = vrot.slane %v489, 2
    %v1422 = vrot.slane %v944, 1
    %v1424 = vsel %vm1415, %v1420, %v1422
    %v1425 = vsel %vm1417, %v1424, %v1399
    %1426 = vst [vmem:[#allocation8] sm:$0x7] %v1425
    // Predicated region
    $region18: #{tpu_custom_call.1} parent=1 // pred_check
      _
    $region19: #{tpu_custom_call.1} parent=1 // pred_check_branch
      %1428 = sbr.rel (0) target = $region21
    $region20: #{tpu_custom_call.1} parent=1 // pred_region
      %s1430 = ssub.s32 64, 64
      %1431 = vsyncadd [#allocation4], %s1430
      %s1433 = sshll.u32 [#allocation7], 4
      %s1434 = int_to_ptr.vmem [resolvable:$true] %s1433
      %1436 = dma.vmem_to_hbm [thread:$0]  %s1434, 64, %s2, [#allocation4]
    $region21: #{tpu_custom_call.1} parent=1 // pred_fallthru
      _
    // Predicated region
    $region22: #{tpu_custom_call.1} parent=1 // pred_check
      _
    $region23: #{tpu_custom_call.1} parent=1 // pred_check_branch
      %1438 = sbr.rel (0) target = $region25
    $region24: #{tpu_custom_call.1} parent=1 // pred_region
      %s1440 = ssub.s32 64, 64
      %1441 = vsyncadd [#allocation9], %s1440
      %s1443 = sshll.u32 [#allocation8], 4
      %s1444 = int_to_ptr.vmem [resolvable:$true] %s1443
      %1446 = dma.vmem_to_hbm [thread:$0]  %s1444, 64, %s3, [#allocation9]
    $region25: #{tpu_custom_call.1} parent=1 // pred_fallthru
      _
    // Predicated region
    $region26: #{tpu_custom_call.1} parent=1 // pred_check
      _
    $region27: #{tpu_custom_call.1} parent=1 // pred_check_branch
      %1448 = sbr.rel (0) target = $region29
    $region28: #{tpu_custom_call.1} parent=1 // pred_region
      %1449 = dma.done [#allocation4], 64
    $region29: #{tpu_custom_call.1} parent=1 // pred_fallthru
      _
    // Predicated region
    $region30: #{tpu_custom_call.1} parent=1 // pred_check
      _
    $region31: #{tpu_custom_call.1} parent=1 // pred_check_branch
      %1451 = sbr.rel (0) target = $region33
    $region32: #{tpu_custom_call.1} parent=1 // pred_region
      %1452 = dma.done [#allocation9], 64
    $region33: #{tpu_custom_call.1} parent=1 // pred_fallthru
      _
    %1453 = vsyncpa [#allocation3], 1
    %1454 = vsyncpa [#allocation6], 1
    %1455 = vsyncpa [#allocation4], 1
    %1456 = vsyncpa [#allocation9], 1

</llo_original>
